<compile_context>
chip_gen: v5e
topology: v5e:2x2
jax: 0.10.0
libtpu: 0.0.40
codegen_flags: <defaults>
</compile_context>

<pallas_src>
import numpy as np
import jax
import jax.numpy as jnp
from jax.experimental import pallas as pl
from jax.experimental.pallas import tpu as pltpu

IMAGE_H = 900.0
IMAGE_W = 1600.0
LANES = 128
BOX_TILE = 8          # boxes per grid step (8 => sublane-aligned output block)
P_COLS = 4            # per-box SMEM params: x1, y1, x2, y2
OFF_IMG = -1.0e6      # "not visible in this camera" sentinel for uo/vo


# ----------------------------------------------------------------------------
# Pallas kernel: per-tile frustum stats + PCA yaw + oriented extents
# ----------------------------------------------------------------------------
def _frustum_tile_kernel(cam_ref, bidx_ref, box_ref, pts_ref, proj_ref, out_ref):
    """One grid step = one BOX_TILE-box tile, all boxes from one camera.

    cam_ref / bidx_ref : scalar-prefetch SMEM int32, used only by index_maps.
    box_ref  (SMEM f32, 1-D): flat per-box params, P_COLS per box
                               [x1, y1, x2, y2] (padded boxes use x2 < x1).
    pts_ref  (VMEM (3, nb, 128) f32): point cloud of this tile's batch element.
    proj_ref (VMEM (2, nb, 128) f32): masked image coords (uo, vo) of this
                               tile's camera; invisible points hold OFF_IMG.
    out_ref  (VMEM (BOX_TILE, 128) f32): per box, lanes 0..8 =
        [cx, cy, cz, dx, dy, dz, mxx-myy, 2*mxy, n_points_in_frustum].
    """
    del cam_ref, bidx_ref                       # only used by the index_maps
    t = pl.program_id(0)
    px = pts_ref[0, :, :]
    py = pts_ref[1, :, :]
    pz = pts_ref[2, :, :]
    uo = proj_ref[0, :, :]
    vo = proj_ref[1, :, :]
    lane = jax.lax.broadcasted_iota(jnp.int32, (1, LANES), 1)
    big = jnp.float32(1e30)
    base = t * (BOX_TILE * P_COLS)

    for j in range(BOX_TILE):                   # static unroll over the tile
        off = base + j * P_COLS
        x1 = box_ref[off + 0]
        y1 = box_ref[off + 1]
        x2 = box_ref[off + 2]
        y2 = box_ref[off + 3]
        on_box = (vo < y2) & (vo >= y1) & (uo < x2) & (uo >= x1)
        mf = on_box.astype(jnp.float32)

        # --- stage 1: count + first moments (reuse masked products) --------
        mfx = mf * px
        mfy = mf * py
        rows1 = jnp.concatenate(
            [jnp.sum(mf, axis=0, keepdims=True),
             jnp.sum(mfx, axis=0, keepdims=True),
             jnp.sum(mfy, axis=0, keepdims=True)], axis=0)        # (3, 128)
        s1 = jnp.sum(rows1, axis=-1, keepdims=True)               # (3, 1)
        n = s1[0:1, 0:1]
        nsafe = jnp.maximum(n, 1.0)
        mean_x = s1[1:2, 0:1] / nsafe
        mean_y = s1[2:3, 0:1] / nsafe

        # --- stage 2: centered second moments (avoids f32 cancellation) ----
        dxc = px - mean_x
        dyc = py - mean_y
        mdx = mf * dxc
        mdy = mf * dyc
        rows2 = jnp.concatenate(
            [jnp.sum(mdx * dxc, axis=0, keepdims=True),
             jnp.sum(mdy * dyc, axis=0, keepdims=True),
             jnp.sum(mdx * dyc, axis=0, keepdims=True)], axis=0)  # (3, 128)
        s2 = jnp.sum(rows2, axis=-1, keepdims=True)               # (3, 1)
        aa = s2[0:1, 0:1] - s2[1:2, 0:1]        # mxx - myy
        bb = 2.0 * s2[2:3, 0:1]                 # 2 * mxy

        # PCA yaw = 0.5 * atan2(bb, aa); cos/sin via half-angle identities
        # (yaw in (-pi/2, pi/2] => cos(yaw) >= 0, sign(sin) = sign(bb)).
        r = jnp.sqrt(aa * aa + bb * bb)
        cos2 = aa / jnp.maximum(r, 1e-20)
        cos_y = jnp.sqrt(jnp.maximum(0.5 * (1.0 + cos2), 0.0))
        sin_y = jnp.sqrt(jnp.maximum(0.5 * (1.0 - cos2), 0.0))
        sin_y = jnp.where(bb >= 0.0, sin_y, -sin_y)
        degen = r < 1e-12
        cos_y = jnp.where(degen, 1.0, cos_y)
        sin_y = jnp.where(degen, 0.0, sin_y)

        # --- oriented extents: two-stage masked min/max ---------------------
        xr = cos_y * px + sin_y * py            # rotate by -yaw
        yr = cos_y * py - sin_y * px
        min_rows = jnp.concatenate(
            [jnp.min(jnp.where(on_box, xr, big), axis=0, keepdims=True),
             jnp.min(jnp.where(on_box, yr, big), axis=0, keepdims=True),
             jnp.min(jnp.where(on_box, pz, big), axis=0, keepdims=True)],
            axis=0)                                               # (3, 128)
        max_rows = jnp.concatenate(
            [jnp.max(jnp.where(on_box, xr, -big), axis=0, keepdims=True),
             jnp.max(jnp.where(on_box, yr, -big), axis=0, keepdims=True),
             jnp.max(jnp.where(on_box, pz, -big), axis=0, keepdims=True)],
            axis=0)                                               # (3, 128)
        mins = jnp.min(min_rows, axis=-1, keepdims=True)          # (3, 1)
        maxs = jnp.max(max_rows, axis=-1, keepdims=True)          # (3, 1)
        x_min = mins[0:1, 0:1]
        y_min = mins[1:2, 0:1]
        z_min = mins[2:3, 0:1]
        x_max = maxs[0:1, 0:1]
        y_max = maxs[1:2, 0:1]
        z_max = maxs[2:3, 0:1]
        dx = x_max - x_min
        dy = y_max - y_min
        dz = z_max - z_min
        xm = 0.5 * (x_min + x_max)
        ym = 0.5 * (y_min + y_max)
        ctr_x = cos_y * xm - sin_y * ym         # rotate center back by +yaw
        ctr_y = sin_y * xm + cos_y * ym
        ctr_z = 0.5 * (z_min + z_max)

        row = jnp.zeros((1, LANES), jnp.float32)
        for k, val in enumerate((ctr_x, ctr_y, ctr_z, dx, dy, dz, aa, bb, n)):
            row = jnp.where(lane == k, val, row)
        row = jnp.where(n > 0.5, row, 0.0)      # empty / padded boxes -> zeros
        out_ref[pl.ds(j, 1), :] = row


# ----------------------------------------------------------------------------
# device-side wrapper: plain-JAX per-camera projection + fused box kernel
# ----------------------------------------------------------------------------
def _project_points(pts_pad, valid, M_all, t_all, A_all, At_all):
    """Project every point of every batch element into every camera.

    Returns
      pts3 : (B, 3, NPAD/128, 128)       points reshaped for the kernel
      proj : (B*NCAM, 2, NPAD/128, 128)  masked image coords (uo, vo);
             off-image / behind-camera / padded points hold OFF_IMG.
    """
    hi = jax.lax.Precision.HIGHEST
    cam = jnp.einsum('bcij,bjn->bcin', M_all, pts_pad, precision=hi)
    cam = cam + t_all[..., None]
    zc_raw = cam[:, :, 2, :]
    zc = jnp.clip(zc_raw, 1e-5, 1e5)
    inv_z = 1.0 / zc
    u = cam[:, :, 0, :] * inv_z
    v = cam[:, :, 1, :] * inv_z
    # image-aug transform applied to [u, v, z_clamped], matching the reference
    uvz = jnp.stack([u, v, zc], axis=2)
    img = jnp.einsum('bcij,bcjn->bcin', A_all, uvz, precision=hi)
    img = img + At_all[..., None]
    uo = img[:, :, 0, :]
    vo = img[:, :, 1, :]
    # z>0 excludes points behind the camera (review correctness concern; the
    # reference's clamp-to-1e-5 rejects them via the bounds test anyway).
    on_img = ((vo < IMAGE_H) & (vo >= 0.0) & (uo < IMAGE_W) & (uo >= 0.0)
              & (zc_raw > 0.0) & valid[:, None, :])
    uo_m = jnp.where(on_img, uo, OFF_IMG)
    vo_m = jnp.where(on_img, vo, OFF_IMG)
    bsz, ncam = M_all.shape[0], M_all.shape[1]
    npad = pts_pad.shape[-1]
    proj = jnp.stack([uo_m, vo_m], axis=2).reshape(
        bsz * ncam, 2, npad // LANES, LANES)
    pts3 = pts_pad.reshape(bsz, 3, npad // LANES, LANES)
    return pts3, proj


def _frustum_boxes_pallas(cam_idx, batch_idx, box_params, pts3, proj):
    num_tiles = cam_idx.shape[0]
    nb = pts3.shape[2]
    grid_spec = pltpu.PrefetchScalarGridSpec(
        num_scalar_prefetch=2,
        grid=(num_tiles,),
        in_specs=[
            # flat per-box params, whole array resident in SMEM
            pl.BlockSpec(memory_space=pltpu.MemorySpace.SMEM),
            # point-cloud slab of this tile's batch element
            pl.BlockSpec((pl.Squeezed(), 3, nb, LANES),
                         lambda i, cam, bidx: (bidx[i], 0, 0, 0)),
            # precomputed projection slab of this tile's camera
            pl.BlockSpec((pl.Squeezed(), 2, nb, LANES),
                         lambda i, cam, bidx: (cam[i], 0, 0, 0)),
        ],
        out_specs=pl.BlockSpec((BOX_TILE, LANES),
                               lambda i, cam, bidx: (i, 0)),
    )
    return pl.pallas_call(
        _frustum_tile_kernel,
        out_shape=jax.ShapeDtypeStruct((num_tiles * BOX_TILE, LANES),
                                       jnp.float32),
        grid_spec=grid_spec,
        compiler_params=pltpu.CompilerParams(
            dimension_semantics=("parallel",)),
    )(cam_idx, batch_idx, box_params, pts3, proj)


@jax.jit
def _frustum_device(pts_pad, valid, M_all, t_all, A_all, At_all,
                    cam_idx, batch_idx, box_params):
    """Projection (plain JAX) + fused per-box kernel: one dispatch per forward."""
    pts3, proj = _project_points(pts_pad, valid, M_all, t_all, A_all, At_all)
    return _frustum_boxes_pallas(cam_idx, batch_idx, box_params, pts3, proj)


# ----------------------------------------------------------------------------
# host-side glue (mirrors the reference module's control flow)
# ----------------------------------------------------------------------------
def compose_lidar2image(lidar_aug, lidar2image_c):
    """Fold the inverse lidar-aug transform into the lidar2image affine map."""
    la = np.asarray(lidar_aug, np.float64)
    l2i = np.asarray(lidar2image_c, np.float64)
    la_rot_inv = np.linalg.inv(la[:3, :3])
    M = l2i[:3, :3] @ la_rot_inv
    tt = l2i[:3, 3] - M @ la[:3, 3]
    return M, tt


def _bucket_pow2(n, minimum):
    """Smallest power of two >= max(n, minimum); bounds the set of compiled shapes."""
    p = int(minimum)
    n = max(int(n), p)
    while p < n:
        p *= 2
    return p


class FrustumOV3DETPallas:
    def __init__(self, score_thresh=0.5):
        self.score_thr = score_thresh
        self.image_order = [2, 0, 1, 5, 3, 4]
        self.image_size = [900, 1600]
        # kept for parity with the reference; unused there as well
        self.point_cloud_range = [-54.0, -54.0, -5.0, 54.0, 54.0, 3.0]
        self.frustum_min = 2.0
        self.frustum_max = 60.0
        self.box_fmt = 'xyxy'
        self.nms_2d = 0.6
        self.min_frustum_points = 100

    def forward(self, batch_dict):
        bboxes = self.get_bboxes(batch_dict)
        batch_dict['final_box_dicts'] = bboxes
        return batch_dict

    def get_bboxes(self, batch_dict):
        boxes, labels, scores, batch_idx = self.get_proposals(batch_dict)
        # NOTE: the reference uses `[empty_dict] * batch_size`, which aliases a
        # single dict across all batches (a real bug); fixed here.
        ret_dict = []
        for k in range(batch_dict['batch_size']):
            mask = batch_idx == k
            ret_dict.append(dict(
                pred_boxes=boxes[mask],
                pred_scores=scores[mask],
                pred_labels=labels[mask].astype(jnp.int32),
            ))
        return ret_dict

    def get_proposals(self, batch_dict):
        batch_size = int(batch_dict['batch_size'])
        points = np.asarray(batch_dict['points'])
        lidar_aug_matrix = np.asarray(batch_dict['lidar_aug_matrix'])
        lidar2image = np.asarray(batch_dict['lidar2image'])
        img_aug_matrix = np.asarray(batch_dict['img_aug_matrix'])
        ncam = lidar2image.shape[1]

        # TODO(synk): self.image_detector loads preprocessed 2D detections from
        # JSON files; replaced by deterministic synthetic detections in batch_dict.
        det_boxes = np.asarray(batch_dict['det_boxes'])
        det_labels = np.asarray(batch_dict['det_labels'])
        det_scores = np.asarray(batch_dict['det_scores'])
        det_batch_idx = np.asarray(batch_dict['det_batch_idx'])
        det_cam_idx = np.asarray(batch_dict['det_cam_idx'])

        # -- per-batch point clouds, padded to one pow2 bucket ----------------
        per_batch = [points[points[:, 0] == b, 1:4].astype(np.float32)
                     for b in range(batch_size)]
        npad = _bucket_pow2(max([p.shape[0] for p in per_batch] + [1]), LANES)
        pts_pad = np.zeros((batch_size, 3, npad), np.float32)
        valid = np.zeros((batch_size, npad), bool)
        for b, p in enumerate(per_batch):
            pts_pad[b, :, :p.shape[0]] = p.T
            valid[b, :p.shape[0]] = True

        # -- composed per-(batch, camera) projection transforms ---------------
        M_all = np.zeros((batch_size, ncam, 3, 3), np.float32)
        t_all = np.zeros((batch_size, ncam, 3), np.float32)
        A_all = np.zeros((batch_size, ncam, 3, 3), np.float32)
        At_all = np.zeros((batch_size, ncam, 3), np.float32)
        for b in range(batch_size):
            for c in range(ncam):
                M, tt = compose_lidar2image(lidar_aug_matrix[b],
                                            lidar2image[b, c])
                M_all[b, c], t_all[b, c] = M, tt
                A_all[b, c] = img_aug_matrix[b, c, :3, :3]
                At_all[b, c] = img_aug_matrix[b, c, :3, 3]

        # -- per-(batch, camera) box groups, padded to BOX_TILE multiples -----
        pad_row = [0.0, 0.0, -1.0, -1.0]        # contains no point
        tile_cam, tile_batch, box_rows, meta = [], [], [], []
        row_ptr = 0
        for b in range(batch_size):
            bmask = det_batch_idx == b
            cur_boxes, cur_labels = det_boxes[bmask], det_labels[bmask]
            cur_scores, cur_cam = det_scores[bmask], det_cam_idx[bmask]
            for c in self.image_order:
                cmask = cur_cam == c
                # TODO(synk): 2D batched_nms skipped (host-side, no Pallas equivalent).
                kept = [(box, lab, sc) for box, lab, sc in
                        zip(cur_boxes[cmask], cur_labels[cmask],
                            cur_scores[cmask]) if sc >= self.score_thr]
                if not kept:
                    continue
                n_rows = -(-len(kept) // BOX_TILE) * BOX_TILE
                for _ in range(n_rows // BOX_TILE):
                    tile_cam.append(b * ncam + c)
                    tile_batch.append(b)
                for j in range(n_rows):
                    if j < len(kept):
                        box, lab, sc = kept[j]
                        box_rows.append([float(box[0]), float(box[1]),
                                         float(box[2]), float(box[3])])
                        meta.append((row_ptr, b, int(lab), float(sc)))
                    else:
                        box_rows.append(list(pad_row))
                    row_ptr += 1

        proposal_boxes, frust_labels = [], []
        frust_scores, frust_batch_idx = [], []

        if box_rows:
            # pad tile count to a pow2 bucket -> bounded set of compiled shapes
            num_tiles_pad = _bucket_pow2(len(tile_cam), 1)
            for _ in range(num_tiles_pad - len(tile_cam)):
                tile_cam.append(0)
                tile_batch.append(0)
                box_rows.extend([list(pad_row)] * BOX_TILE)

            out = _frustum_device(
                jnp.asarray(pts_pad), jnp.asarray(valid),
                jnp.asarray(M_all), jnp.asarray(t_all),
                jnp.asarray(A_all), jnp.asarray(At_all),
                jnp.asarray(np.asarray(tile_cam, np.int32)),
                jnp.asarray(np.asarray(tile_batch, np.int32)),
                jnp.asarray(np.asarray(box_rows, np.float32).reshape(-1)))
            out = np.asarray(out)               # single device->host sync

            # TODO(synk): step-interval subsampling + DBSCAN outlier removal
            # have no Pallas equivalent and are skipped.
            for row_i, b, lab, sc in meta:
                if out[row_i, 8] < self.min_frustum_points:
                    continue
                # compute_bbox returns -yaw; get_proposals re-negates -> +yaw
                yaw = 0.5 * np.arctan2(out[row_i, 7], out[row_i, 6])
                box7 = np.concatenate(
                    [out[row_i, 0:6], [yaw]]).astype(np.float32)
                proposal_boxes.append(box7.reshape(1, 7))
                frust_labels.append(lab)
                frust_scores.append(sc)
                frust_batch_idx.append(b)

        if proposal_boxes:
            proposal_boxes = jnp.asarray(
                np.concatenate(proposal_boxes, axis=0).reshape(-1, 7))
            frust_labels = jnp.asarray(np.array(frust_labels, np.int32))
            frust_scores = jnp.asarray(np.array(frust_scores, np.float32))
            frust_batch_idx = jnp.asarray(np.array(frust_batch_idx, np.int32))
        else:
            proposal_boxes = jnp.zeros((0, 7), jnp.float32)
            frust_labels = jnp.zeros((0,), jnp.int32)
            frust_scores = jnp.zeros((0,), jnp.float32)
            frust_batch_idx = jnp.zeros((0,), jnp.int32)
        return proposal_boxes, frust_labels, frust_scores, frust_batch_idx


# ----------------------------------------------------------------------------
# deterministic synthetic inputs
# ----------------------------------------------------------------------------
def build_batch_dict(key):
    B, NCAM, N = 2, 6, 2048

    k1, k2 = jax.random.split(key)
    xy = jax.random.uniform(k1, (B, N, 2), minval=-30.0, maxval=30.0)
    zz = jax.random.uniform(k2, (B, N, 1), minval=-2.0, maxval=2.0)
    pts = jnp.concatenate([xy, zz], axis=-1)
    bidx = jnp.repeat(jnp.arange(B, dtype=jnp.float32)[:, None, None], N, axis=1)
    points = jnp.concatenate([bidx, pts], axis=-1).reshape(B * N, 4)

    def Rz(a):
        c, s = np.cos(a), np.sin(a)
        return np.array([[c, -s, 0.0], [s, c, 0.0], [0.0, 0.0, 1.0]])

    R_base = np.array([[0.0, 0.0, 1.0], [-1.0, 0.0, 0.0], [0.0, -1.0, 0.0]])
    K = np.array([[500.0, 0.0, 800.0], [0.0, 500.0, 450.0], [0.0, 0.0, 1.0]])

    camera2lidar = np.zeros((B, NCAM, 4, 4))
    camera_intrinsics = np.zeros((B, NCAM, 4, 4))
    lidar2image = np.zeros((B, NCAM, 4, 4))
    img_aug_matrix = np.tile(np.eye(4), (B, NCAM, 1, 1))
    lidar_aug_matrix = np.tile(np.eye(4), (B, 1, 1))
    lidar_aug_matrix[:, :3, :3] = Rz(0.02)
    lidar_aug_matrix[:, :3, 3] = np.array([0.1, -0.2, 0.05])

    for b in range(B):
        for c in range(NCAM):
            ang = np.deg2rad(60.0 * c)
            Rc = Rz(ang) @ R_base
            tc = np.array([0.5 * np.cos(ang), 0.5 * np.sin(ang), 1.6])
            c2l = np.eye(4)
            c2l[:3, :3] = Rc
            c2l[:3, 3] = tc
            camera2lidar[b, c] = c2l
            l2c = np.linalg.inv(c2l)
            K4 = np.eye(4)
            K4[:3, :3] = K
            lidar2image[b, c] = K4 @ l2c
            ci = np.eye(4)
            ci[:3, :3] = K
            camera_intrinsics[b, c] = ci

    det_boxes, det_labels, det_scores, det_b, det_c = [], [], [], [], []
    for b in range(B):
        for c in range(NCAM):
            det_boxes.append([200.0, 200.0, 1400.0, 700.0])
            det_labels.append(1 + (c % 3))
            det_scores.append(0.9)
            det_b.append(b)
            det_c.append(c)
            det_boxes.append([100.0, 150.0, 600.0, 500.0])   # below score_thr
            det_labels.append(2)
            det_scores.append(0.3)
            det_b.append(b)
            det_c.append(c)

    return {
        'batch_size': B,
        'points': points,
        'camera_intrinsics': jnp.asarray(camera_intrinsics, jnp.float32),
        'camera2lidar': jnp.asarray(camera2lidar, jnp.float32),
        'lidar2image': jnp.asarray(lidar2image, jnp.float32),
        'img_aug_matrix': jnp.asarray(img_aug_matrix, jnp.float32),
        'lidar_aug_matrix': jnp.asarray(lidar_aug_matrix, jnp.float32),
        'det_boxes': np.array(det_boxes, np.float32),
        'det_labels': np.array(det_labels, np.int32),
        'det_scores': np.array(det_scores, np.float32),
        'det_batch_idx': np.array(det_b, np.int32),
        'det_cam_idx': np.array(det_c, np.int32),
    }


if __name__ == "__main__":
    key = jax.random.PRNGKey(0)
    batch_dict = build_batch_dict(key)
    model = FrustumOV3DETPallas(score_thresh=0.5)
    out = model.forward(batch_dict)
    for d in out['final_box_dicts']:
        jax.block_until_ready(d['pred_boxes'])
        jax.block_until_ready(d['pred_scores'])
        jax.block_until_ready(d['pred_labels'])
    print("KERNEL_OK")
</pallas_src>

<mosaic_0001>
module attributes {stable_mosaic.version = 11 : i64} {
  func.func @_frustum_tile_kernel(%arg0: i32, %arg1: memref<16xi32, #tpu.memory_space<smem>>, %arg2: memref<16xi32, #tpu.memory_space<smem>>, %arg3: memref<512xf32, #tpu.memory_space<smem>>, %arg4: memref<1x3x16x128xf32, #tpu.memory_space<vmem>>, %arg5: memref<1x2x16x128xf32, #tpu.memory_space<vmem>>, %arg6: memref<8x128xf32, #tpu.memory_space<vmem>>) attributes {dimension_semantics = [#tpu.dimension_semantics<parallel>], iteration_bounds = array<i64: 16>, scalar_prefetch = 2 : i64, scratch_operands = 0 : i64, tpu.core_type = #tpu.core_type<tc>, window_params = [{transform_indices = @transform_0, window_bounds = array<i64: 512>}, {transform_indices = @transform_1, window_bounds = array<i64: 1, 3, 16, 128>}, {transform_indices = @transform_2, window_bounds = array<i64: 1, 2, 16, 128>}, {transform_indices = @transform_3, window_bounds = array<i64: 8, 128>}]} {
    %c0 = arith.constant 0 : index
    %c0_0 = arith.constant 0 : index
    %c0_1 = arith.constant 0 : index
    %c0_2 = arith.constant 0 : index
    %0 = vector.load %arg4[%c0, %c0_0, %c0_1, %c0_2] : memref<1x3x16x128xf32, #tpu.memory_space<vmem>>, vector<1x1x16x128xf32>
    %1 = vector.shape_cast %0 : vector<1x1x16x128xf32> to vector<16x128xf32>
    %c0_3 = arith.constant 0 : index
    %c1 = arith.constant 1 : index
    %c0_4 = arith.constant 0 : index
    %c0_5 = arith.constant 0 : index
    %2 = vector.load %arg4[%c0_3, %c1, %c0_4, %c0_5] : memref<1x3x16x128xf32, #tpu.memory_space<vmem>>, vector<1x1x16x128xf32>
    %3 = vector.shape_cast %2 : vector<1x1x16x128xf32> to vector<16x128xf32>
    %c0_6 = arith.constant 0 : index
    %c2 = arith.constant 2 : index
    %c0_7 = arith.constant 0 : index
    %c0_8 = arith.constant 0 : index
    %4 = vector.load %arg4[%c0_6, %c2, %c0_7, %c0_8] : memref<1x3x16x128xf32, #tpu.memory_space<vmem>>, vector<1x1x16x128xf32>
    %5 = vector.shape_cast %4 : vector<1x1x16x128xf32> to vector<16x128xf32>
    %c0_9 = arith.constant 0 : index
    %c0_10 = arith.constant 0 : index
    %c0_11 = arith.constant 0 : index
    %c0_12 = arith.constant 0 : index
    %6 = vector.load %arg5[%c0_9, %c0_10, %c0_11, %c0_12] : memref<1x2x16x128xf32, #tpu.memory_space<vmem>>, vector<1x1x16x128xf32>
    %7 = vector.shape_cast %6 : vector<1x1x16x128xf32> to vector<16x128xf32>
    %c0_13 = arith.constant 0 : index
    %c1_14 = arith.constant 1 : index
    %c0_15 = arith.constant 0 : index
    %c0_16 = arith.constant 0 : index
    %8 = vector.load %arg5[%c0_13, %c1_14, %c0_15, %c0_16] : memref<1x2x16x128xf32, #tpu.memory_space<vmem>>, vector<1x1x16x128xf32>
    %9 = vector.shape_cast %8 : vector<1x1x16x128xf32> to vector<16x128xf32>
    %10 = tpu.iota {dimensions = array<i32: 1>} : vector<1x128xi32>
    %c32_i32 = arith.constant 32 : i32
    %11 = arith.muli %arg0, %c32_i32 : i32
    %c0_i32 = arith.constant 0 : i32
    %12 = arith.addi %11, %c0_i32 : i32
    %c0_i32_17 = arith.constant 0 : i32
    %13 = arith.addi %12, %c0_i32_17 : i32
    %14 = arith.index_cast %13 : i32 to index
    %15 = memref.load %arg3[%14] : memref<512xf32, #tpu.memory_space<smem>>
    %c1_i32 = arith.constant 1 : i32
    %16 = arith.addi %12, %c1_i32 : i32
    %17 = arith.index_cast %16 : i32 to index
    %18 = memref.load %arg3[%17] : memref<512xf32, #tpu.memory_space<smem>>
    %c2_i32 = arith.constant 2 : i32
    %19 = arith.addi %12, %c2_i32 : i32
    %20 = arith.index_cast %19 : i32 to index
    %21 = memref.load %arg3[%20] : memref<512xf32, #tpu.memory_space<smem>>
    %c3_i32 = arith.constant 3 : i32
    %22 = arith.addi %12, %c3_i32 : i32
    %23 = arith.index_cast %22 : i32 to index
    %24 = memref.load %arg3[%23] : memref<512xf32, #tpu.memory_space<smem>>
    %25 = vector.broadcast %24 : f32 to vector<16x128xf32>
    %26 = arith.cmpf olt, %9, %25 : vector<16x128xf32>
    %27 = vector.broadcast %18 : f32 to vector<16x128xf32>
    %28 = arith.cmpf oge, %9, %27 : vector<16x128xf32>
    %29 = arith.andi %26, %28 : vector<16x128xi1>
    %30 = vector.broadcast %21 : f32 to vector<16x128xf32>
    %31 = arith.cmpf olt, %7, %30 : vector<16x128xf32>
    %32 = arith.andi %29, %31 : vector<16x128xi1>
    %33 = vector.broadcast %15 : f32 to vector<16x128xf32>
    %34 = arith.cmpf oge, %7, %33 : vector<16x128xf32>
    %35 = arith.andi %32, %34 : vector<16x128xi1>
    %36 = arith.extui %35 : vector<16x128xi1> to vector<16x128xi32>
    %37 = arith.sitofp %36 : vector<16x128xi32> to vector<16x128xf32>
    %38 = arith.mulf %37, %1 : vector<16x128xf32>
    %39 = arith.mulf %37, %3 : vector<16x128xf32>
    %cst = arith.constant dense<0.000000e+00> : vector<128xf32>
    %40 = vector.multi_reduction <add>, %37, %cst [0] : vector<16x128xf32> to vector<128xf32>
    %41 = vector.shape_cast %40 : vector<128xf32> to vector<1x128xf32>
    %cst_18 = arith.constant dense<0.000000e+00> : vector<128xf32>
    %42 = vector.multi_reduction <add>, %38, %cst_18 [0] : vector<16x128xf32> to vector<128xf32>
    %43 = vector.shape_cast %42 : vector<128xf32> to vector<1x128xf32>
    %cst_19 = arith.constant dense<0.000000e+00> : vector<128xf32>
    %44 = vector.multi_reduction <add>, %39, %cst_19 [0] : vector<16x128xf32> to vector<128xf32>
    %45 = vector.shape_cast %44 : vector<128xf32> to vector<1x128xf32>
    %46 = tpu.concatenate %41, %43, %45 in 0 : vector<1x128xf32>, vector<1x128xf32>, vector<1x128xf32> -> vector<3x128xf32>
    %cst_20 = arith.constant dense<0.000000e+00> : vector<3xf32>
    %47 = vector.multi_reduction <add>, %46, %cst_20 [1] : vector<3x128xf32> to vector<3xf32>
    %48 = vector.shape_cast %47 : vector<3xf32> to vector<3x1xf32>
    %49 = vector.extract_strided_slice %48 {offsets = [0, 0], sizes = [1, 1], strides = [1, 1]} : vector<3x1xf32> to vector<1x1xf32>
    %cst_21 = arith.constant 1.000000e+00 : f32
    %50 = vector.broadcast %cst_21 : f32 to vector<1x1xf32>
    %51 = arith.maximumf %49, %50 : vector<1x1xf32>
    %52 = vector.extract_strided_slice %48 {offsets = [1, 0], sizes = [1, 1], strides = [1, 1]} : vector<3x1xf32> to vector<1x1xf32>
    %53 = arith.divf %52, %51 : vector<1x1xf32>
    %54 = vector.extract_strided_slice %48 {offsets = [2, 0], sizes = [1, 1], strides = [1, 1]} : vector<3x1xf32> to vector<1x1xf32>
    %55 = arith.divf %54, %51 : vector<1x1xf32>
    %56 = vector.broadcast %53 : vector<1x1xf32> to vector<16x128xf32>
    %57 = arith.subf %1, %56 : vector<16x128xf32>
    %58 = vector.broadcast %55 : vector<1x1xf32> to vector<16x128xf32>
    %59 = arith.subf %3, %58 : vector<16x128xf32>
    %60 = arith.mulf %37, %57 : vector<16x128xf32>
    %61 = arith.mulf %37, %59 : vector<16x128xf32>
    %62 = arith.mulf %60, %57 : vector<16x128xf32>
    %cst_22 = arith.constant dense<0.000000e+00> : vector<128xf32>
    %63 = vector.multi_reduction <add>, %62, %cst_22 [0] : vector<16x128xf32> to vector<128xf32>
    %64 = vector.shape_cast %63 : vector<128xf32> to vector<1x128xf32>
    %65 = arith.mulf %61, %59 : vector<16x128xf32>
    %cst_23 = arith.constant dense<0.000000e+00> : vector<128xf32>
    %66 = vector.multi_reduction <add>, %65, %cst_23 [0] : vector<16x128xf32> to vector<128xf32>
    %67 = vector.shape_cast %66 : vector<128xf32> to vector<1x128xf32>
    %68 = arith.mulf %60, %59 : vector<16x128xf32>
    %cst_24 = arith.constant dense<0.000000e+00> : vector<128xf32>
    %69 = vector.multi_reduction <add>, %68, %cst_24 [0] : vector<16x128xf32> to vector<128xf32>
    %70 = vector.shape_cast %69 : vector<128xf32> to vector<1x128xf32>
    %71 = tpu.concatenate %64, %67, %70 in 0 : vector<1x128xf32>, vector<1x128xf32>, vector<1x128xf32> -> vector<3x128xf32>
    %cst_25 = arith.constant dense<0.000000e+00> : vector<3xf32>
    %72 = vector.multi_reduction <add>, %71, %cst_25 [1] : vector<3x128xf32> to vector<3xf32>
    %73 = vector.shape_cast %72 : vector<3xf32> to vector<3x1xf32>
    %74 = vector.extract_strided_slice %73 {offsets = [0, 0], sizes = [1, 1], strides = [1, 1]} : vector<3x1xf32> to vector<1x1xf32>
    %75 = vector.extract_strided_slice %73 {offsets = [1, 0], sizes = [1, 1], strides = [1, 1]} : vector<3x1xf32> to vector<1x1xf32>
    %76 = arith.subf %74, %75 : vector<1x1xf32>
    %77 = vector.extract_strided_slice %73 {offsets = [2, 0], sizes = [1, 1], strides = [1, 1]} : vector<3x1xf32> to vector<1x1xf32>
    %cst_26 = arith.constant 2.000000e+00 : f32
    %78 = vector.broadcast %cst_26 : f32 to vector<1x1xf32>
    %79 = arith.mulf %78, %77 : vector<1x1xf32>
    %80 = arith.mulf %76, %76 : vector<1x1xf32>
    %81 = arith.mulf %79, %79 : vector<1x1xf32>
    %82 = arith.addf %80, %81 : vector<1x1xf32>
    %83 = math.sqrt %82 : vector<1x1xf32>
    %cst_27 = arith.constant 9.99999968E-21 : f32
    %84 = vector.broadcast %cst_27 : f32 to vector<1x1xf32>
    %85 = arith.maximumf %83, %84 : vector<1x1xf32>
    %86 = arith.divf %76, %85 : vector<1x1xf32>
    %cst_28 = arith.constant 1.000000e+00 : f32
    %87 = vector.broadcast %cst_28 : f32 to vector<1x1xf32>
    %88 = arith.addf %87, %86 : vector<1x1xf32>
    %cst_29 = arith.constant 5.000000e-01 : f32
    %89 = vector.broadcast %cst_29 : f32 to vector<1x1xf32>
    %90 = arith.mulf %89, %88 : vector<1x1xf32>
    %cst_30 = arith.constant 0.000000e+00 : f32
    %91 = vector.broadcast %cst_30 : f32 to vector<1x1xf32>
    %92 = arith.maximumf %90, %91 : vector<1x1xf32>
    %93 = math.sqrt %92 : vector<1x1xf32>
    %cst_31 = arith.constant 1.000000e+00 : f32
    %94 = vector.broadcast %cst_31 : f32 to vector<1x1xf32>
    %95 = arith.subf %94, %86 : vector<1x1xf32>
    %cst_32 = arith.constant 5.000000e-01 : f32
    %96 = vector.broadcast %cst_32 : f32 to vector<1x1xf32>
    %97 = arith.mulf %96, %95 : vector<1x1xf32>
    %cst_33 = arith.constant 0.000000e+00 : f32
    %98 = vector.broadcast %cst_33 : f32 to vector<1x1xf32>
    %99 = arith.maximumf %97, %98 : vector<1x1xf32>
    %100 = math.sqrt %99 : vector<1x1xf32>
    %cst_34 = arith.constant 0.000000e+00 : f32
    %101 = vector.broadcast %cst_34 : f32 to vector<1x1xf32>
    %102 = arith.cmpf oge, %79, %101 : vector<1x1xf32>
    %cst_35 = arith.constant 0.000000e+00 : f32
    %103 = vector.broadcast %cst_35 : f32 to vector<1x1xf32>
    %104 = arith.subf %103, %100 : vector<1x1xf32>
    %105 = arith.select %102, %100, %104 : vector<1x1xi1>, vector<1x1xf32>
    %cst_36 = arith.constant 9.99999996E-13 : f32
    %106 = vector.broadcast %cst_36 : f32 to vector<1x1xf32>
    %107 = arith.cmpf olt, %83, %106 : vector<1x1xf32>
    %cst_37 = arith.constant 1.000000e+00 : f32
    %108 = vector.broadcast %cst_37 : f32 to vector<1x1xf32>
    %109 = arith.select %107, %108, %93 : vector<1x1xi1>, vector<1x1xf32>
    %cst_38 = arith.constant 0.000000e+00 : f32
    %110 = vector.broadcast %cst_38 : f32 to vector<1x1xf32>
    %111 = arith.select %107, %110, %105 : vector<1x1xi1>, vector<1x1xf32>
    %112 = vector.broadcast %109 : vector<1x1xf32> to vector<16x128xf32>
    %113 = arith.mulf %112, %1 : vector<16x128xf32>
    %114 = vector.broadcast %111 : vector<1x1xf32> to vector<16x128xf32>
    %115 = arith.mulf %114, %3 : vector<16x128xf32>
    %116 = arith.addf %113, %115 : vector<16x128xf32>
    %117 = vector.broadcast %109 : vector<1x1xf32> to vector<16x128xf32>
    %118 = arith.mulf %117, %3 : vector<16x128xf32>
    %119 = vector.broadcast %111 : vector<1x1xf32> to vector<16x128xf32>
    %120 = arith.mulf %119, %1 : vector<16x128xf32>
    %121 = arith.subf %118, %120 : vector<16x128xf32>
    %cst_39 = arith.constant 1.000000e+30 : f32
    %122 = vector.broadcast %cst_39 : f32 to vector<16x128xf32>
    %123 = arith.select %35, %116, %122 : vector<16x128xi1>, vector<16x128xf32>
    %cst_40 = arith.constant dense<0x7F800000> : vector<128xf32>
    %124 = vector.multi_reduction <minimumf>, %123, %cst_40 [0] : vector<16x128xf32> to vector<128xf32>
    %125 = vector.shape_cast %124 : vector<128xf32> to vector<1x128xf32>
    %cst_41 = arith.constant 1.000000e+30 : f32
    %126 = vector.broadcast %cst_41 : f32 to vector<16x128xf32>
    %127 = arith.select %35, %121, %126 : vector<16x128xi1>, vector<16x128xf32>
    %cst_42 = arith.constant dense<0x7F800000> : vector<128xf32>
    %128 = vector.multi_reduction <minimumf>, %127, %cst_42 [0] : vector<16x128xf32> to vector<128xf32>
    %129 = vector.shape_cast %128 : vector<128xf32> to vector<1x128xf32>
    %cst_43 = arith.constant 1.000000e+30 : f32
    %130 = vector.broadcast %cst_43 : f32 to vector<16x128xf32>
    %131 = arith.select %35, %5, %130 : vector<16x128xi1>, vector<16x128xf32>
    %cst_44 = arith.constant dense<0x7F800000> : vector<128xf32>
    %132 = vector.multi_reduction <minimumf>, %131, %cst_44 [0] : vector<16x128xf32> to vector<128xf32>
    %133 = vector.shape_cast %132 : vector<128xf32> to vector<1x128xf32>
    %134 = tpu.concatenate %125, %129, %133 in 0 : vector<1x128xf32>, vector<1x128xf32>, vector<1x128xf32> -> vector<3x128xf32>
    %cst_45 = arith.constant 0.000000e+00 : f32
    %cst_46 = arith.constant 1.000000e+30 : f32
    %135 = arith.subf %cst_45, %cst_46 : f32
    %136 = vector.broadcast %135 : f32 to vector<16x128xf32>
    %137 = arith.select %35, %116, %136 : vector<16x128xi1>, vector<16x128xf32>
    %cst_47 = arith.constant dense<0xFF800000> : vector<128xf32>
    %138 = vector.multi_reduction <maximumf>, %137, %cst_47 [0] : vector<16x128xf32> to vector<128xf32>
    %139 = vector.shape_cast %138 : vector<128xf32> to vector<1x128xf32>
    %cst_48 = arith.constant 0.000000e+00 : f32
    %cst_49 = arith.constant 1.000000e+30 : f32
    %140 = arith.subf %cst_48, %cst_49 : f32
    %141 = vector.broadcast %140 : f32 to vector<16x128xf32>
    %142 = arith.select %35, %121, %141 : vector<16x128xi1>, vector<16x128xf32>
    %cst_50 = arith.constant dense<0xFF800000> : vector<128xf32>
    %143 = vector.multi_reduction <maximumf>, %142, %cst_50 [0] : vector<16x128xf32> to vector<128xf32>
    %144 = vector.shape_cast %143 : vector<128xf32> to vector<1x128xf32>
    %cst_51 = arith.constant 0.000000e+00 : f32
    %cst_52 = arith.constant 1.000000e+30 : f32
    %145 = arith.subf %cst_51, %cst_52 : f32
    %146 = vector.broadcast %145 : f32 to vector<16x128xf32>
    %147 = arith.select %35, %5, %146 : vector<16x128xi1>, vector<16x128xf32>
    %cst_53 = arith.constant dense<0xFF800000> : vector<128xf32>
    %148 = vector.multi_reduction <maximumf>, %147, %cst_53 [0] : vector<16x128xf32> to vector<128xf32>
    %149 = vector.shape_cast %148 : vector<128xf32> to vector<1x128xf32>
    %150 = tpu.concatenate %139, %144, %149 in 0 : vector<1x128xf32>, vector<1x128xf32>, vector<1x128xf32> -> vector<3x128xf32>
    %cst_54 = arith.constant dense<0x7F800000> : vector<3xf32>
    %151 = vector.multi_reduction <minimumf>, %134, %cst_54 [1] : vector<3x128xf32> to vector<3xf32>
    %152 = vector.shape_cast %151 : vector<3xf32> to vector<3x1xf32>
    %cst_55 = arith.constant dense<0xFF800000> : vector<3xf32>
    %153 = vector.multi_reduction <maximumf>, %150, %cst_55 [1] : vector<3x128xf32> to vector<3xf32>
    %154 = vector.shape_cast %153 : vector<3xf32> to vector<3x1xf32>
    %155 = vector.extract_strided_slice %152 {offsets = [0, 0], sizes = [1, 1], strides = [1, 1]} : vector<3x1xf32> to vector<1x1xf32>
    %156 = vector.extract_strided_slice %152 {offsets = [1, 0], sizes = [1, 1], strides = [1, 1]} : vector<3x1xf32> to vector<1x1xf32>
    %157 = vector.extract_strided_slice %152 {offsets = [2, 0], sizes = [1, 1], strides = [1, 1]} : vector<3x1xf32> to vector<1x1xf32>
    %158 = vector.extract_strided_slice %154 {offsets = [0, 0], sizes = [1, 1], strides = [1, 1]} : vector<3x1xf32> to vector<1x1xf32>
    %159 = vector.extract_strided_slice %154 {offsets = [1, 0], sizes = [1, 1], strides = [1, 1]} : vector<3x1xf32> to vector<1x1xf32>
    %160 = vector.extract_strided_slice %154 {offsets = [2, 0], sizes = [1, 1], strides = [1, 1]} : vector<3x1xf32> to vector<1x1xf32>
    %161 = arith.subf %158, %155 : vector<1x1xf32>
    %162 = arith.subf %159, %156 : vector<1x1xf32>
    %163 = arith.subf %160, %157 : vector<1x1xf32>
    %164 = arith.addf %155, %158 : vector<1x1xf32>
    %cst_56 = arith.constant 5.000000e-01 : f32
    %165 = vector.broadcast %cst_56 : f32 to vector<1x1xf32>
    %166 = arith.mulf %165, %164 : vector<1x1xf32>
    %167 = arith.addf %156, %159 : vector<1x1xf32>
    %cst_57 = arith.constant 5.000000e-01 : f32
    %168 = vector.broadcast %cst_57 : f32 to vector<1x1xf32>
    %169 = arith.mulf %168, %167 : vector<1x1xf32>
    %170 = arith.mulf %109, %166 : vector<1x1xf32>
    %171 = arith.mulf %111, %169 : vector<1x1xf32>
    %172 = arith.subf %170, %171 : vector<1x1xf32>
    %173 = arith.mulf %111, %166 : vector<1x1xf32>
    %174 = arith.mulf %109, %169 : vector<1x1xf32>
    %175 = arith.addf %173, %174 : vector<1x1xf32>
    %176 = arith.addf %157, %160 : vector<1x1xf32>
    %cst_58 = arith.constant 5.000000e-01 : f32
    %177 = vector.broadcast %cst_58 : f32 to vector<1x1xf32>
    %178 = arith.mulf %177, %176 : vector<1x1xf32>
    %cst_59 = arith.constant 0.000000e+00 : f32
    %179 = vector.broadcast %cst_59 : f32 to vector<1x128xf32>
    %c0_i32_60 = arith.constant 0 : i32
    %180 = vector.broadcast %c0_i32_60 : i32 to vector<1x128xi32>
    %181 = arith.cmpi eq, %10, %180 : vector<1x128xi32>
    %182 = vector.shape_cast %172 : vector<1x1xf32> to vector<1x1xf32>
    %183 = vector.broadcast %182 : vector<1x1xf32> to vector<1x128xf32>
    %184 = arith.select %181, %183, %179 : vector<1x128xi1>, vector<1x128xf32>
    %c1_i32_61 = arith.constant 1 : i32
    %185 = vector.broadcast %c1_i32_61 : i32 to vector<1x128xi32>
    %186 = arith.cmpi eq, %10, %185 : vector<1x128xi32>
    %187 = vector.shape_cast %175 : vector<1x1xf32> to vector<1x1xf32>
    %188 = vector.broadcast %187 : vector<1x1xf32> to vector<1x128xf32>
    %189 = arith.select %186, %188, %184 : vector<1x128xi1>, vector<1x128xf32>
    %c2_i32_62 = arith.constant 2 : i32
    %190 = vector.broadcast %c2_i32_62 : i32 to vector<1x128xi32>
    %191 = arith.cmpi eq, %10, %190 : vector<1x128xi32>
    %192 = vector.shape_cast %178 : vector<1x1xf32> to vector<1x1xf32>
    %193 = vector.broadcast %192 : vector<1x1xf32> to vector<1x128xf32>
    %194 = arith.select %191, %193, %189 : vector<1x128xi1>, vector<1x128xf32>
    %c3_i32_63 = arith.constant 3 : i32
    %195 = vector.broadcast %c3_i32_63 : i32 to vector<1x128xi32>
    %196 = arith.cmpi eq, %10, %195 : vector<1x128xi32>
    %197 = vector.shape_cast %161 : vector<1x1xf32> to vector<1x1xf32>
    %198 = vector.broadcast %197 : vector<1x1xf32> to vector<1x128xf32>
    %199 = arith.select %196, %198, %194 : vector<1x128xi1>, vector<1x128xf32>
    %c4_i32 = arith.constant 4 : i32
    %200 = vector.broadcast %c4_i32 : i32 to vector<1x128xi32>
    %201 = arith.cmpi eq, %10, %200 : vector<1x128xi32>
    %202 = vector.shape_cast %162 : vector<1x1xf32> to vector<1x1xf32>
    %203 = vector.broadcast %202 : vector<1x1xf32> to vector<1x128xf32>
    %204 = arith.select %201, %203, %199 : vector<1x128xi1>, vector<1x128xf32>
    %c5_i32 = arith.constant 5 : i32
    %205 = vector.broadcast %c5_i32 : i32 to vector<1x128xi32>
    %206 = arith.cmpi eq, %10, %205 : vector<1x128xi32>
    %207 = vector.shape_cast %163 : vector<1x1xf32> to vector<1x1xf32>
    %208 = vector.broadcast %207 : vector<1x1xf32> to vector<1x128xf32>
    %209 = arith.select %206, %208, %204 : vector<1x128xi1>, vector<1x128xf32>
    %c6_i32 = arith.constant 6 : i32
    %210 = vector.broadcast %c6_i32 : i32 to vector<1x128xi32>
    %211 = arith.cmpi eq, %10, %210 : vector<1x128xi32>
    %212 = vector.shape_cast %76 : vector<1x1xf32> to vector<1x1xf32>
    %213 = vector.broadcast %212 : vector<1x1xf32> to vector<1x128xf32>
    %214 = arith.select %211, %213, %209 : vector<1x128xi1>, vector<1x128xf32>
    %c7_i32 = arith.constant 7 : i32
    %215 = vector.broadcast %c7_i32 : i32 to vector<1x128xi32>
    %216 = arith.cmpi eq, %10, %215 : vector<1x128xi32>
    %217 = vector.shape_cast %79 : vector<1x1xf32> to vector<1x1xf32>
    %218 = vector.broadcast %217 : vector<1x1xf32> to vector<1x128xf32>
    %219 = arith.select %216, %218, %214 : vector<1x128xi1>, vector<1x128xf32>
    %c8_i32 = arith.constant 8 : i32
    %220 = vector.broadcast %c8_i32 : i32 to vector<1x128xi32>
    %221 = arith.cmpi eq, %10, %220 : vector<1x128xi32>
    %222 = vector.shape_cast %49 : vector<1x1xf32> to vector<1x1xf32>
    %223 = vector.broadcast %222 : vector<1x1xf32> to vector<1x128xf32>
    %224 = arith.select %221, %223, %219 : vector<1x128xi1>, vector<1x128xf32>
    %cst_64 = arith.constant 5.000000e-01 : f32
    %225 = vector.broadcast %cst_64 : f32 to vector<1x1xf32>
    %226 = arith.cmpf ogt, %49, %225 : vector<1x1xf32>
    %cst_65 = arith.constant 0.000000e+00 : f32
    %227 = vector.shape_cast %226 : vector<1x1xi1> to vector<1x1xi1>
    %228 = vector.broadcast %227 : vector<1x1xi1> to vector<1x128xi1>
    %229 = vector.broadcast %cst_65 : f32 to vector<1x128xf32>
    %230 = arith.select %228, %224, %229 : vector<1x128xi1>, vector<1x128xf32>
    %c0_66 = arith.constant 0 : index
    %c0_67 = arith.constant 0 : index
    %231 = vector.load %arg6[%c0_66, %c0_67] : memref<8x128xf32, #tpu.memory_space<vmem>>, vector<1x128xf32>
    tpu.vector_store %arg6[%c0_66, %c0_67], %230 {strides = array<i32>} : memref<8x128xf32, #tpu.memory_space<vmem>>, vector<1x128xf32>,
    %c4_i32_68 = arith.constant 4 : i32
    %232 = arith.addi %11, %c4_i32_68 : i32
    %c0_i32_69 = arith.constant 0 : i32
    %233 = arith.addi %232, %c0_i32_69 : i32
    %234 = arith.index_cast %233 : i32 to index
    %235 = memref.load %arg3[%234] : memref<512xf32, #tpu.memory_space<smem>>
    %c1_i32_70 = arith.constant 1 : i32
    %236 = arith.addi %232, %c1_i32_70 : i32
    %237 = arith.index_cast %236 : i32 to index
    %238 = memref.load %arg3[%237] : memref<512xf32, #tpu.memory_space<smem>>
    %c2_i32_71 = arith.constant 2 : i32
    %239 = arith.addi %232, %c2_i32_71 : i32
    %240 = arith.index_cast %239 : i32 to index
    %241 = memref.load %arg3[%240] : memref<512xf32, #tpu.memory_space<smem>>
    %c3_i32_72 = arith.constant 3 : i32
    %242 = arith.addi %232, %c3_i32_72 : i32
    %243 = arith.index_cast %242 : i32 to index
    %244 = memref.load %arg3[%243] : memref<512xf32, #tpu.memory_space<smem>>
    %245 = vector.broadcast %244 : f32 to vector<16x128xf32>
    %246 = arith.cmpf olt, %9, %245 : vector<16x128xf32>
    %247 = vector.broadcast %238 : f32 to vector<16x128xf32>
    %248 = arith.cmpf oge, %9, %247 : vector<16x128xf32>
    %249 = arith.andi %246, %248 : vector<16x128xi1>
    %250 = vector.broadcast %241 : f32 to vector<16x128xf32>
    %251 = arith.cmpf olt, %7, %250 : vector<16x128xf32>
    %252 = arith.andi %249, %251 : vector<16x128xi1>
    %253 = vector.broadcast %235 : f32 to vector<16x128xf32>
    %254 = arith.cmpf oge, %7, %253 : vector<16x128xf32>
    %255 = arith.andi %252, %254 : vector<16x128xi1>
    %256 = arith.extui %255 : vector<16x128xi1> to vector<16x128xi32>
    %257 = arith.sitofp %256 : vector<16x128xi32> to vector<16x128xf32>
    %258 = arith.mulf %257, %1 : vector<16x128xf32>
    %259 = arith.mulf %257, %3 : vector<16x128xf32>
    %cst_73 = arith.constant dense<0.000000e+00> : vector<128xf32>
    %260 = vector.multi_reduction <add>, %257, %cst_73 [0] : vector<16x128xf32> to vector<128xf32>
    %261 = vector.shape_cast %260 : vector<128xf32> to vector<1x128xf32>
    %cst_74 = arith.constant dense<0.000000e+00> : vector<128xf32>
    %262 = vector.multi_reduction <add>, %258, %cst_74 [0] : vector<16x128xf32> to vector<128xf32>
    %263 = vector.shape_cast %262 : vector<128xf32> to vector<1x128xf32>
    %cst_75 = arith.constant dense<0.000000e+00> : vector<128xf32>
    %264 = vector.multi_reduction <add>, %259, %cst_75 [0] : vector<16x128xf32> to vector<128xf32>
    %265 = vector.shape_cast %264 : vector<128xf32> to vector<1x128xf32>
    %266 = tpu.concatenate %261, %263, %265 in 0 : vector<1x128xf32>, vector<1x128xf32>, vector<1x128xf32> -> vector<3x128xf32>
    %cst_76 = arith.constant dense<0.000000e+00> : vector<3xf32>
    %267 = vector.multi_reduction <add>, %266, %cst_76 [1] : vector<3x128xf32> to vector<3xf32>
    %268 = vector.shape_cast %267 : vector<3xf32> to vector<3x1xf32>
    %269 = vector.extract_strided_slice %268 {offsets = [0, 0], sizes = [1, 1], strides = [1, 1]} : vector<3x1xf32> to vector<1x1xf32>
    %cst_77 = arith.constant 1.000000e+00 : f32
    %270 = vector.broadcast %cst_77 : f32 to vector<1x1xf32>
    %271 = arith.maximumf %269, %270 : vector<1x1xf32>
    %272 = vector.extract_strided_slice %268 {offsets = [1, 0], sizes = [1, 1], strides = [1, 1]} : vector<3x1xf32> to vector<1x1xf32>
    %273 = arith.divf %272, %271 : vector<1x1xf32>
    %274 = vector.extract_strided_slice %268 {offsets = [2, 0], sizes = [1, 1], strides = [1, 1]} : vector<3x1xf32> to vector<1x1xf32>
    %275 = arith.divf %274, %271 : vector<1x1xf32>
    %276 = vector.broadcast %273 : vector<1x1xf32> to vector<16x128xf32>
    %277 = arith.subf %1, %276 : vector<16x128xf32>
    %278 = vector.broadcast %275 : vector<1x1xf32> to vector<16x128xf32>
    %279 = arith.subf %3, %278 : vector<16x128xf32>
    %280 = arith.mulf %257, %277 : vector<16x128xf32>
    %281 = arith.mulf %257, %279 : vector<16x128xf32>
    %282 = arith.mulf %280, %277 : vector<16x128xf32>
    %cst_78 = arith.constant dense<0.000000e+00> : vector<128xf32>
    %283 = vector.multi_reduction <add>, %282, %cst_78 [0] : vector<16x128xf32> to vector<128xf32>
    %284 = vector.shape_cast %283 : vector<128xf32> to vector<1x128xf32>
    %285 = arith.mulf %281, %279 : vector<16x128xf32>
    %cst_79 = arith.constant dense<0.000000e+00> : vector<128xf32>
    %286 = vector.multi_reduction <add>, %285, %cst_79 [0] : vector<16x128xf32> to vector<128xf32>
    %287 = vector.shape_cast %286 : vector<128xf32> to vector<1x128xf32>
    %288 = arith.mulf %280, %279 : vector<16x128xf32>
    %cst_80 = arith.constant dense<0.000000e+00> : vector<128xf32>
    %289 = vector.multi_reduction <add>, %288, %cst_80 [0] : vector<16x128xf32> to vector<128xf32>
    %290 = vector.shape_cast %289 : vector<128xf32> to vector<1x128xf32>
    %291 = tpu.concatenate %284, %287, %290 in 0 : vector<1x128xf32>, vector<1x128xf32>, vector<1x128xf32> -> vector<3x128xf32>
    %cst_81 = arith.constant dense<0.000000e+00> : vector<3xf32>
    %292 = vector.multi_reduction <add>, %291, %cst_81 [1] : vector<3x128xf32> to vector<3xf32>
    %293 = vector.shape_cast %292 : vector<3xf32> to vector<3x1xf32>
    %294 = vector.extract_strided_slice %293 {offsets = [0, 0], sizes = [1, 1], strides = [1, 1]} : vector<3x1xf32> to vector<1x1xf32>
    %295 = vector.extract_strided_slice %293 {offsets = [1, 0], sizes = [1, 1], strides = [1, 1]} : vector<3x1xf32> to vector<1x1xf32>
    %296 = arith.subf %294, %295 : vector<1x1xf32>
    %297 = vector.extract_strided_slice %293 {offsets = [2, 0], sizes = [1, 1], strides = [1, 1]} : vector<3x1xf32> to vector<1x1xf32>
    %cst_82 = arith.constant 2.000000e+00 : f32
    %298 = vector.broadcast %cst_82 : f32 to vector<1x1xf32>
    %299 = arith.mulf %298, %297 : vector<1x1xf32>
    %300 = arith.mulf %296, %296 : vector<1x1xf32>
    %301 = arith.mulf %299, %299 : vector<1x1xf32>
    %302 = arith.addf %300, %301 : vector<1x1xf32>
    %303 = math.sqrt %302 : vector<1x1xf32>
    %cst_83 = arith.constant 9.99999968E-21 : f32
    %304 = vector.broadcast %cst_83 : f32 to vector<1x1xf32>
    %305 = arith.maximumf %303, %304 : vector<1x1xf32>
    %306 = arith.divf %296, %305 : vector<1x1xf32>
    %cst_84 = arith.constant 1.000000e+00 : f32
    %307 = vector.broadcast %cst_84 : f32 to vector<1x1xf32>
    %308 = arith.addf %307, %306 : vector<1x1xf32>
    %cst_85 = arith.constant 5.000000e-01 : f32
    %309 = vector.broadcast %cst_85 : f32 to vector<1x1xf32>
    %310 = arith.mulf %309, %308 : vector<1x1xf32>
    %cst_86 = arith.constant 0.000000e+00 : f32
    %311 = vector.broadcast %cst_86 : f32 to vector<1x1xf32>
    %312 = arith.maximumf %310, %311 : vector<1x1xf32>
    %313 = math.sqrt %312 : vector<1x1xf32>
    %cst_87 = arith.constant 1.000000e+00 : f32
    %314 = vector.broadcast %cst_87 : f32 to vector<1x1xf32>
    %315 = arith.subf %314, %306 : vector<1x1xf32>
    %cst_88 = arith.constant 5.000000e-01 : f32
    %316 = vector.broadcast %cst_88 : f32 to vector<1x1xf32>
    %317 = arith.mulf %316, %315 : vector<1x1xf32>
    %cst_89 = arith.constant 0.000000e+00 : f32
    %318 = vector.broadcast %cst_89 : f32 to vector<1x1xf32>
    %319 = arith.maximumf %317, %318 : vector<1x1xf32>
    %320 = math.sqrt %319 : vector<1x1xf32>
    %cst_90 = arith.constant 0.000000e+00 : f32
    %321 = vector.broadcast %cst_90 : f32 to vector<1x1xf32>
    %322 = arith.cmpf oge, %299, %321 : vector<1x1xf32>
    %cst_91 = arith.constant 0.000000e+00 : f32
    %323 = vector.broadcast %cst_91 : f32 to vector<1x1xf32>
    %324 = arith.subf %323, %320 : vector<1x1xf32>
    %325 = arith.select %322, %320, %324 : vector<1x1xi1>, vector<1x1xf32>
    %cst_92 = arith.constant 9.99999996E-13 : f32
    %326 = vector.broadcast %cst_92 : f32 to vector<1x1xf32>
    %327 = arith.cmpf olt, %303, %326 : vector<1x1xf32>
    %cst_93 = arith.constant 1.000000e+00 : f32
    %328 = vector.broadcast %cst_93 : f32 to vector<1x1xf32>
    %329 = arith.select %327, %328, %313 : vector<1x1xi1>, vector<1x1xf32>
    %cst_94 = arith.constant 0.000000e+00 : f32
    %330 = vector.broadcast %cst_94 : f32 to vector<1x1xf32>
    %331 = arith.select %327, %330, %325 : vector<1x1xi1>, vector<1x1xf32>
    %332 = vector.broadcast %329 : vector<1x1xf32> to vector<16x128xf32>
    %333 = arith.mulf %332, %1 : vector<16x128xf32>
    %334 = vector.broadcast %331 : vector<1x1xf32> to vector<16x128xf32>
    %335 = arith.mulf %334, %3 : vector<16x128xf32>
    %336 = arith.addf %333, %335 : vector<16x128xf32>
    %337 = vector.broadcast %329 : vector<1x1xf32> to vector<16x128xf32>
    %338 = arith.mulf %337, %3 : vector<16x128xf32>
    %339 = vector.broadcast %331 : vector<1x1xf32> to vector<16x128xf32>
    %340 = arith.mulf %339, %1 : vector<16x128xf32>
    %341 = arith.subf %338, %340 : vector<16x128xf32>
    %cst_95 = arith.constant 1.000000e+30 : f32
    %342 = vector.broadcast %cst_95 : f32 to vector<16x128xf32>
    %343 = arith.select %255, %336, %342 : vector<16x128xi1>, vector<16x128xf32>
    %cst_96 = arith.constant dense<0x7F800000> : vector<128xf32>
    %344 = vector.multi_reduction <minimumf>, %343, %cst_96 [0] : vector<16x128xf32> to vector<128xf32>
    %345 = vector.shape_cast %344 : vector<128xf32> to vector<1x128xf32>
    %cst_97 = arith.constant 1.000000e+30 : f32
    %346 = vector.broadcast %cst_97 : f32 to vector<16x128xf32>
    %347 = arith.select %255, %341, %346 : vector<16x128xi1>, vector<16x128xf32>
    %cst_98 = arith.constant dense<0x7F800000> : vector<128xf32>
    %348 = vector.multi_reduction <minimumf>, %347, %cst_98 [0] : vector<16x128xf32> to vector<128xf32>
    %349 = vector.shape_cast %348 : vector<128xf32> to vector<1x128xf32>
    %cst_99 = arith.constant 1.000000e+30 : f32
    %350 = vector.broadcast %cst_99 : f32 to vector<16x128xf32>
    %351 = arith.select %255, %5, %350 : vector<16x128xi1>, vector<16x128xf32>
    %cst_100 = arith.constant dense<0x7F800000> : vector<128xf32>
    %352 = vector.multi_reduction <minimumf>, %351, %cst_100 [0] : vector<16x128xf32> to vector<128xf32>
    %353 = vector.shape_cast %352 : vector<128xf32> to vector<1x128xf32>
    %354 = tpu.concatenate %345, %349, %353 in 0 : vector<1x128xf32>, vector<1x128xf32>, vector<1x128xf32> -> vector<3x128xf32>
    %cst_101 = arith.constant 0.000000e+00 : f32
    %cst_102 = arith.constant 1.000000e+30 : f32
    %355 = arith.subf %cst_101, %cst_102 : f32
    %356 = vector.broadcast %355 : f32 to vector<16x128xf32>
    %357 = arith.select %255, %336, %356 : vector<16x128xi1>, vector<16x128xf32>
    %cst_103 = arith.constant dense<0xFF800000> : vector<128xf32>
    %358 = vector.multi_reduction <maximumf>, %357, %cst_103 [0] : vector<16x128xf32> to vector<128xf32>
    %359 = vector.shape_cast %358 : vector<128xf32> to vector<1x128xf32>
    %cst_104 = arith.constant 0.000000e+00 : f32
    %cst_105 = arith.constant 1.000000e+30 : f32
    %360 = arith.subf %cst_104, %cst_105 : f32
    %361 = vector.broadcast %360 : f32 to vector<16x128xf32>
    %362 = arith.select %255, %341, %361 : vector<16x128xi1>, vector<16x128xf32>
    %cst_106 = arith.constant dense<0xFF800000> : vector<128xf32>
    %363 = vector.multi_reduction <maximumf>, %362, %cst_106 [0] : vector<16x128xf32> to vector<128xf32>
    %364 = vector.shape_cast %363 : vector<128xf32> to vector<1x128xf32>
    %cst_107 = arith.constant 0.000000e+00 : f32
    %cst_108 = arith.constant 1.000000e+30 : f32
    %365 = arith.subf %cst_107, %cst_108 : f32
    %366 = vector.broadcast %365 : f32 to vector<16x128xf32>
    %367 = arith.select %255, %5, %366 : vector<16x128xi1>, vector<16x128xf32>
    %cst_109 = arith.constant dense<0xFF800000> : vector<128xf32>
    %368 = vector.multi_reduction <maximumf>, %367, %cst_109 [0] : vector<16x128xf32> to vector<128xf32>
    %369 = vector.shape_cast %368 : vector<128xf32> to vector<1x128xf32>
    %370 = tpu.concatenate %359, %364, %369 in 0 : vector<1x128xf32>, vector<1x128xf32>, vector<1x128xf32> -> vector<3x128xf32>
    %cst_110 = arith.constant dense<0x7F800000> : vector<3xf32>
    %371 = vector.multi_reduction <minimumf>, %354, %cst_110 [1] : vector<3x128xf32> to vector<3xf32>
    %372 = vector.shape_cast %371 : vector<3xf32> to vector<3x1xf32>
    %cst_111 = arith.constant dense<0xFF800000> : vector<3xf32>
    %373 = vector.multi_reduction <maximumf>, %370, %cst_111 [1] : vector<3x128xf32> to vector<3xf32>
    %374 = vector.shape_cast %373 : vector<3xf32> to vector<3x1xf32>
    %375 = vector.extract_strided_slice %372 {offsets = [0, 0], sizes = [1, 1], strides = [1, 1]} : vector<3x1xf32> to vector<1x1xf32>
    %376 = vector.extract_strided_slice %372 {offsets = [1, 0], sizes = [1, 1], strides = [1, 1]} : vector<3x1xf32> to vector<1x1xf32>
    %377 = vector.extract_strided_slice %372 {offsets = [2, 0], sizes = [1, 1], strides = [1, 1]} : vector<3x1xf32> to vector<1x1xf32>
    %378 = vector.extract_strided_slice %374 {offsets = [0, 0], sizes = [1, 1], strides = [1, 1]} : vector<3x1xf32> to vector<1x1xf32>
    %379 = vector.extract_strided_slice %374 {offsets = [1, 0], sizes = [1, 1], strides = [1, 1]} : vector<3x1xf32> to vector<1x1xf32>
    %380 = vector.extract_strided_slice %374 {offsets = [2, 0], sizes = [1, 1], strides = [1, 1]} : vector<3x1xf32> to vector<1x1xf32>
    %381 = arith.subf %378, %375 : vector<1x1xf32>
    %382 = arith.subf %379, %376 : vector<1x1xf32>
    %383 = arith.subf %380, %377 : vector<1x1xf32>
    %384 = arith.addf %375, %378 : vector<1x1xf32>
    %cst_112 = arith.constant 5.000000e-01 : f32
    %385 = vector.broadcast %cst_112 : f32 to vector<1x1xf32>
    %386 = arith.mulf %385, %384 : vector<1x1xf32>
    %387 = arith.addf %376, %379 : vector<1x1xf32>
    %cst_113 = arith.constant 5.000000e-01 : f32
    %388 = vector.broadcast %cst_113 : f32 to vector<1x1xf32>
    %389 = arith.mulf %388, %387 : vector<1x1xf32>
    %390 = arith.mulf %329, %386 : vector<1x1xf32>
    %391 = arith.mulf %331, %389 : vector<1x1xf32>
    %392 = arith.subf %390, %391 : vector<1x1xf32>
    %393 = arith.mulf %331, %386 : vector<1x1xf32>
    %394 = arith.mulf %329, %389 : vector<1x1xf32>
    %395 = arith.addf %393, %394 : vector<1x1xf32>
    %396 = arith.addf %377, %380 : vector<1x1xf32>
    %cst_114 = arith.constant 5.000000e-01 : f32
    %397 = vector.broadcast %cst_114 : f32 to vector<1x1xf32>
    %398 = arith.mulf %397, %396 : vector<1x1xf32>
    %cst_115 = arith.constant 0.000000e+00 : f32
    %399 = vector.broadcast %cst_115 : f32 to vector<1x128xf32>
    %c0_i32_116 = arith.constant 0 : i32
    %400 = vector.broadcast %c0_i32_116 : i32 to vector<1x128xi32>
    %401 = arith.cmpi eq, %10, %400 : vector<1x128xi32>
    %402 = vector.shape_cast %392 : vector<1x1xf32> to vector<1x1xf32>
    %403 = vector.broadcast %402 : vector<1x1xf32> to vector<1x128xf32>
    %404 = arith.select %401, %403, %399 : vector<1x128xi1>, vector<1x128xf32>
    %c1_i32_117 = arith.constant 1 : i32
    %405 = vector.broadcast %c1_i32_117 : i32 to vector<1x128xi32>
    %406 = arith.cmpi eq, %10, %405 : vector<1x128xi32>
    %407 = vector.shape_cast %395 : vector<1x1xf32> to vector<1x1xf32>
    %408 = vector.broadcast %407 : vector<1x1xf32> to vector<1x128xf32>
    %409 = arith.select %406, %408, %404 : vector<1x128xi1>, vector<1x128xf32>
    %c2_i32_118 = arith.constant 2 : i32
    %410 = vector.broadcast %c2_i32_118 : i32 to vector<1x128xi32>
    %411 = arith.cmpi eq, %10, %410 : vector<1x128xi32>
    %412 = vector.shape_cast %398 : vector<1x1xf32> to vector<1x1xf32>
    %413 = vector.broadcast %412 : vector<1x1xf32> to vector<1x128xf32>
    %414 = arith.select %411, %413, %409 : vector<1x128xi1>, vector<1x128xf32>
    %c3_i32_119 = arith.constant 3 : i32
    %415 = vector.broadcast %c3_i32_119 : i32 to vector<1x128xi32>
    %416 = arith.cmpi eq, %10, %415 : vector<1x128xi32>
    %417 = vector.shape_cast %381 : vector<1x1xf32> to vector<1x1xf32>
    %418 = vector.broadcast %417 : vector<1x1xf32> to vector<1x128xf32>
    %419 = arith.select %416, %418, %414 : vector<1x128xi1>, vector<1x128xf32>
    %c4_i32_120 = arith.constant 4 : i32
    %420 = vector.broadcast %c4_i32_120 : i32 to vector<1x128xi32>
    %421 = arith.cmpi eq, %10, %420 : vector<1x128xi32>
    %422 = vector.shape_cast %382 : vector<1x1xf32> to vector<1x1xf32>
    %423 = vector.broadcast %422 : vector<1x1xf32> to vector<1x128xf32>
    %424 = arith.select %421, %423, %419 : vector<1x128xi1>, vector<1x128xf32>
    %c5_i32_121 = arith.constant 5 : i32
    %425 = vector.broadcast %c5_i32_121 : i32 to vector<1x128xi32>
    %426 = arith.cmpi eq, %10, %425 : vector<1x128xi32>
    %427 = vector.shape_cast %383 : vector<1x1xf32> to vector<1x1xf32>
    %428 = vector.broadcast %427 : vector<1x1xf32> to vector<1x128xf32>
    %429 = arith.select %426, %428, %424 : vector<1x128xi1>, vector<1x128xf32>
    %c6_i32_122 = arith.constant 6 : i32
    %430 = vector.broadcast %c6_i32_122 : i32 to vector<1x128xi32>
    %431 = arith.cmpi eq, %10, %430 : vector<1x128xi32>
    %432 = vector.shape_cast %296 : vector<1x1xf32> to vector<1x1xf32>
    %433 = vector.broadcast %432 : vector<1x1xf32> to vector<1x128xf32>
    %434 = arith.select %431, %433, %429 : vector<1x128xi1>, vector<1x128xf32>
    %c7_i32_123 = arith.constant 7 : i32
    %435 = vector.broadcast %c7_i32_123 : i32 to vector<1x128xi32>
    %436 = arith.cmpi eq, %10, %435 : vector<1x128xi32>
    %437 = vector.shape_cast %299 : vector<1x1xf32> to vector<1x1xf32>
    %438 = vector.broadcast %437 : vector<1x1xf32> to vector<1x128xf32>
    %439 = arith.select %436, %438, %434 : vector<1x128xi1>, vector<1x128xf32>
    %c8_i32_124 = arith.constant 8 : i32
    %440 = vector.broadcast %c8_i32_124 : i32 to vector<1x128xi32>
    %441 = arith.cmpi eq, %10, %440 : vector<1x128xi32>
    %442 = vector.shape_cast %269 : vector<1x1xf32> to vector<1x1xf32>
    %443 = vector.broadcast %442 : vector<1x1xf32> to vector<1x128xf32>
    %444 = arith.select %441, %443, %439 : vector<1x128xi1>, vector<1x128xf32>
    %cst_125 = arith.constant 5.000000e-01 : f32
    %445 = vector.broadcast %cst_125 : f32 to vector<1x1xf32>
    %446 = arith.cmpf ogt, %269, %445 : vector<1x1xf32>
    %cst_126 = arith.constant 0.000000e+00 : f32
    %447 = vector.shape_cast %446 : vector<1x1xi1> to vector<1x1xi1>
    %448 = vector.broadcast %447 : vector<1x1xi1> to vector<1x128xi1>
    %449 = vector.broadcast %cst_126 : f32 to vector<1x128xf32>
    %450 = arith.select %448, %444, %449 : vector<1x128xi1>, vector<1x128xf32>
    %c1_127 = arith.constant 1 : index
    %c0_128 = arith.constant 0 : index
    %451 = vector.load %arg6[%c1_127, %c0_128] : memref<8x128xf32, #tpu.memory_space<vmem>>, vector<1x128xf32>
    tpu.vector_store %arg6[%c1_127, %c0_128], %450 {strides = array<i32>} : memref<8x128xf32, #tpu.memory_space<vmem>>, vector<1x128xf32>,
    %c8_i32_129 = arith.constant 8 : i32
    %452 = arith.addi %11, %c8_i32_129 : i32
    %c0_i32_130 = arith.constant 0 : i32
    %453 = arith.addi %452, %c0_i32_130 : i32
    %454 = arith.index_cast %453 : i32 to index
    %455 = memref.load %arg3[%454] : memref<512xf32, #tpu.memory_space<smem>>
    %c1_i32_131 = arith.constant 1 : i32
    %456 = arith.addi %452, %c1_i32_131 : i32
    %457 = arith.index_cast %456 : i32 to index
    %458 = memref.load %arg3[%457] : memref<512xf32, #tpu.memory_space<smem>>
    %c2_i32_132 = arith.constant 2 : i32
    %459 = arith.addi %452, %c2_i32_132 : i32
    %460 = arith.index_cast %459 : i32 to index
    %461 = memref.load %arg3[%460] : memref<512xf32, #tpu.memory_space<smem>>
    %c3_i32_133 = arith.constant 3 : i32
    %462 = arith.addi %452, %c3_i32_133 : i32
    %463 = arith.index_cast %462 : i32 to index
    %464 = memref.load %arg3[%463] : memref<512xf32, #tpu.memory_space<smem>>
    %465 = vector.broadcast %464 : f32 to vector<16x128xf32>
    %466 = arith.cmpf olt, %9, %465 : vector<16x128xf32>
    %467 = vector.broadcast %458 : f32 to vector<16x128xf32>
    %468 = arith.cmpf oge, %9, %467 : vector<16x128xf32>
    %469 = arith.andi %466, %468 : vector<16x128xi1>
    %470 = vector.broadcast %461 : f32 to vector<16x128xf32>
    %471 = arith.cmpf olt, %7, %470 : vector<16x128xf32>
    %472 = arith.andi %469, %471 : vector<16x128xi1>
    %473 = vector.broadcast %455 : f32 to vector<16x128xf32>
    %474 = arith.cmpf oge, %7, %473 : vector<16x128xf32>
    %475 = arith.andi %472, %474 : vector<16x128xi1>
    %476 = arith.extui %475 : vector<16x128xi1> to vector<16x128xi32>
    %477 = arith.sitofp %476 : vector<16x128xi32> to vector<16x128xf32>
    %478 = arith.mulf %477, %1 : vector<16x128xf32>
    %479 = arith.mulf %477, %3 : vector<16x128xf32>
    %cst_134 = arith.constant dense<0.000000e+00> : vector<128xf32>
    %480 = vector.multi_reduction <add>, %477, %cst_134 [0] : vector<16x128xf32> to vector<128xf32>
    %481 = vector.shape_cast %480 : vector<128xf32> to vector<1x128xf32>
    %cst_135 = arith.constant dense<0.000000e+00> : vector<128xf32>
    %482 = vector.multi_reduction <add>, %478, %cst_135 [0] : vector<16x128xf32> to vector<128xf32>
    %483 = vector.shape_cast %482 : vector<128xf32> to vector<1x128xf32>
    %cst_136 = arith.constant dense<0.000000e+00> : vector<128xf32>
    %484 = vector.multi_reduction <add>, %479, %cst_136 [0] : vector<16x128xf32> to vector<128xf32>
    %485 = vector.shape_cast %484 : vector<128xf32> to vector<1x128xf32>
    %486 = tpu.concatenate %481, %483, %485 in 0 : vector<1x128xf32>, vector<1x128xf32>, vector<1x128xf32> -> vector<3x128xf32>
    %cst_137 = arith.constant dense<0.000000e+00> : vector<3xf32>
    %487 = vector.multi_reduction <add>, %486, %cst_137 [1] : vector<3x128xf32> to vector<3xf32>
    %488 = vector.shape_cast %487 : vector<3xf32> to vector<3x1xf32>
    %489 = vector.extract_strided_slice %488 {offsets = [0, 0], sizes = [1, 1], strides = [1, 1]} : vector<3x1xf32> to vector<1x1xf32>
    %cst_138 = arith.constant 1.000000e+00 : f32
    %490 = vector.broadcast %cst_138 : f32 to vector<1x1xf32>
    %491 = arith.maximumf %489, %490 : vector<1x1xf32>
    %492 = vector.extract_strided_slice %488 {offsets = [1, 0], sizes = [1, 1], strides = [1, 1]} : vector<3x1xf32> to vector<1x1xf32>
    %493 = arith.divf %492, %491 : vector<1x1xf32>
    %494 = vector.extract_strided_slice %488 {offsets = [2, 0], sizes = [1, 1], strides = [1, 1]} : vector<3x1xf32> to vector<1x1xf32>
    %495 = arith.divf %494, %491 : vector<1x1xf32>
    %496 = vector.broadcast %493 : vector<1x1xf32> to vector<16x128xf32>
    %497 = arith.subf %1, %496 : vector<16x128xf32>
    %498 = vector.broadcast %495 : vector<1x1xf32> to vector<16x128xf32>
    %499 = arith.subf %3, %498 : vector<16x128xf32>
    %500 = arith.mulf %477, %497 : vector<16x128xf32>
    %501 = arith.mulf %477, %499 : vector<16x128xf32>
    %502 = arith.mulf %500, %497 : vector<16x128xf32>
    %cst_139 = arith.constant dense<0.000000e+00> : vector<128xf32>
    %503 = vector.multi_reduction <add>, %502, %cst_139 [0] : vector<16x128xf32> to vector<128xf32>
    %504 = vector.shape_cast %503 : vector<128xf32> to vector<1x128xf32>
    %505 = arith.mulf %501, %499 : vector<16x128xf32>
    %cst_140 = arith.constant dense<0.000000e+00> : vector<128xf32>
    %506 = vector.multi_reduction <add>, %505, %cst_140 [0] : vector<16x128xf32> to vector<128xf32>
    %507 = vector.shape_cast %506 : vector<128xf32> to vector<1x128xf32>
    %508 = arith.mulf %500, %499 : vector<16x128xf32>
    %cst_141 = arith.constant dense<0.000000e+00> : vector<128xf32>
    %509 = vector.multi_reduction <add>, %508, %cst_141 [0] : vector<16x128xf32> to vector<128xf32>
    %510 = vector.shape_cast %509 : vector<128xf32> to vector<1x128xf32>
    %511 = tpu.concatenate %504, %507, %510 in 0 : vector<1x128xf32>, vector<1x128xf32>, vector<1x128xf32> -> vector<3x128xf32>
    %cst_142 = arith.constant dense<0.000000e+00> : vector<3xf32>
    %512 = vector.multi_reduction <add>, %511, %cst_142 [1] : vector<3x128xf32> to vector<3xf32>
    %513 = vector.shape_cast %512 : vector<3xf32> to vector<3x1xf32>
    %514 = vector.extract_strided_slice %513 {offsets = [0, 0], sizes = [1, 1], strides = [1, 1]} : vector<3x1xf32> to vector<1x1xf32>
    %515 = vector.extract_strided_slice %513 {offsets = [1, 0], sizes = [1, 1], strides = [1, 1]} : vector<3x1xf32> to vector<1x1xf32>
    %516 = arith.subf %514, %515 : vector<1x1xf32>
    %517 = vector.extract_strided_slice %513 {offsets = [2, 0], sizes = [1, 1], strides = [1, 1]} : vector<3x1xf32> to vector<1x1xf32>
    %cst_143 = arith.constant 2.000000e+00 : f32
    %518 = vector.broadcast %cst_143 : f32 to vector<1x1xf32>
    %519 = arith.mulf %518, %517 : vector<1x1xf32>
    %520 = arith.mulf %516, %516 : vector<1x1xf32>
    %521 = arith.mulf %519, %519 : vector<1x1xf32>
    %522 = arith.addf %520, %521 : vector<1x1xf32>
    %523 = math.sqrt %522 : vector<1x1xf32>
    %cst_144 = arith.constant 9.99999968E-21 : f32
    %524 = vector.broadcast %cst_144 : f32 to vector<1x1xf32>
    %525 = arith.maximumf %523, %524 : vector<1x1xf32>
    %526 = arith.divf %516, %525 : vector<1x1xf32>
    %cst_145 = arith.constant 1.000000e+00 : f32
    %527 = vector.broadcast %cst_145 : f32 to vector<1x1xf32>
    %528 = arith.addf %527, %526 : vector<1x1xf32>
    %cst_146 = arith.constant 5.000000e-01 : f32
    %529 = vector.broadcast %cst_146 : f32 to vector<1x1xf32>
    %530 = arith.mulf %529, %528 : vector<1x1xf32>
    %cst_147 = arith.constant 0.000000e+00 : f32
    %531 = vector.broadcast %cst_147 : f32 to vector<1x1xf32>
    %532 = arith.maximumf %530, %531 : vector<1x1xf32>
    %533 = math.sqrt %532 : vector<1x1xf32>
    %cst_148 = arith.constant 1.000000e+00 : f32
    %534 = vector.broadcast %cst_148 : f32 to vector<1x1xf32>
    %535 = arith.subf %534, %526 : vector<1x1xf32>
    %cst_149 = arith.constant 5.000000e-01 : f32
    %536 = vector.broadcast %cst_149 : f32 to vector<1x1xf32>
    %537 = arith.mulf %536, %535 : vector<1x1xf32>
    %cst_150 = arith.constant 0.000000e+00 : f32
    %538 = vector.broadcast %cst_150 : f32 to vector<1x1xf32>
    %539 = arith.maximumf %537, %538 : vector<1x1xf32>
    %540 = math.sqrt %539 : vector<1x1xf32>
    %cst_151 = arith.constant 0.000000e+00 : f32
    %541 = vector.broadcast %cst_151 : f32 to vector<1x1xf32>
    %542 = arith.cmpf oge, %519, %541 : vector<1x1xf32>
    %cst_152 = arith.constant 0.000000e+00 : f32
    %543 = vector.broadcast %cst_152 : f32 to vector<1x1xf32>
    %544 = arith.subf %543, %540 : vector<1x1xf32>
    %545 = arith.select %542, %540, %544 : vector<1x1xi1>, vector<1x1xf32>
    %cst_153 = arith.constant 9.99999996E-13 : f32
    %546 = vector.broadcast %cst_153 : f32 to vector<1x1xf32>
    %547 = arith.cmpf olt, %523, %546 : vector<1x1xf32>
    %cst_154 = arith.constant 1.000000e+00 : f32
    %548 = vector.broadcast %cst_154 : f32 to vector<1x1xf32>
    %549 = arith.select %547, %548, %533 : vector<1x1xi1>, vector<1x1xf32>
    %cst_155 = arith.constant 0.000000e+00 : f32
    %550 = vector.broadcast %cst_155 : f32 to vector<1x1xf32>
    %551 = arith.select %547, %550, %545 : vector<1x1xi1>, vector<1x1xf32>
    %552 = vector.broadcast %549 : vector<1x1xf32> to vector<16x128xf32>
    %553 = arith.mulf %552, %1 : vector<16x128xf32>
    %554 = vector.broadcast %551 : vector<1x1xf32> to vector<16x128xf32>
    %555 = arith.mulf %554, %3 : vector<16x128xf32>
    %556 = arith.addf %553, %555 : vector<16x128xf32>
    %557 = vector.broadcast %549 : vector<1x1xf32> to vector<16x128xf32>
    %558 = arith.mulf %557, %3 : vector<16x128xf32>
    %559 = vector.broadcast %551 : vector<1x1xf32> to vector<16x128xf32>
    %560 = arith.mulf %559, %1 : vector<16x128xf32>
    %561 = arith.subf %558, %560 : vector<16x128xf32>
    %cst_156 = arith.constant 1.000000e+30 : f32
    %562 = vector.broadcast %cst_156 : f32 to vector<16x128xf32>
    %563 = arith.select %475, %556, %562 : vector<16x128xi1>, vector<16x128xf32>
    %cst_157 = arith.constant dense<0x7F800000> : vector<128xf32>
    %564 = vector.multi_reduction <minimumf>, %563, %cst_157 [0] : vector<16x128xf32> to vector<128xf32>
    %565 = vector.shape_cast %564 : vector<128xf32> to vector<1x128xf32>
    %cst_158 = arith.constant 1.000000e+30 : f32
    %566 = vector.broadcast %cst_158 : f32 to vector<16x128xf32>
    %567 = arith.select %475, %561, %566 : vector<16x128xi1>, vector<16x128xf32>
    %cst_159 = arith.constant dense<0x7F800000> : vector<128xf32>
    %568 = vector.multi_reduction <minimumf>, %567, %cst_159 [0] : vector<16x128xf32> to vector<128xf32>
    %569 = vector.shape_cast %568 : vector<128xf32> to vector<1x128xf32>
    %cst_160 = arith.constant 1.000000e+30 : f32
    %570 = vector.broadcast %cst_160 : f32 to vector<16x128xf32>
    %571 = arith.select %475, %5, %570 : vector<16x128xi1>, vector<16x128xf32>
    %cst_161 = arith.constant dense<0x7F800000> : vector<128xf32>
    %572 = vector.multi_reduction <minimumf>, %571, %cst_161 [0] : vector<16x128xf32> to vector<128xf32>
    %573 = vector.shape_cast %572 : vector<128xf32> to vector<1x128xf32>
    %574 = tpu.concatenate %565, %569, %573 in 0 : vector<1x128xf32>, vector<1x128xf32>, vector<1x128xf32> -> vector<3x128xf32>
    %cst_162 = arith.constant 0.000000e+00 : f32
    %cst_163 = arith.constant 1.000000e+30 : f32
    %575 = arith.subf %cst_162, %cst_163 : f32
    %576 = vector.broadcast %575 : f32 to vector<16x128xf32>
    %577 = arith.select %475, %556, %576 : vector<16x128xi1>, vector<16x128xf32>
    %cst_164 = arith.constant dense<0xFF800000> : vector<128xf32>
    %578 = vector.multi_reduction <maximumf>, %577, %cst_164 [0] : vector<16x128xf32> to vector<128xf32>
    %579 = vector.shape_cast %578 : vector<128xf32> to vector<1x128xf32>
    %cst_165 = arith.constant 0.000000e+00 : f32
    %cst_166 = arith.constant 1.000000e+30 : f32
    %580 = arith.subf %cst_165, %cst_166 : f32
    %581 = vector.broadcast %580 : f32 to vector<16x128xf32>
    %582 = arith.select %475, %561, %581 : vector<16x128xi1>, vector<16x128xf32>
    %cst_167 = arith.constant dense<0xFF800000> : vector<128xf32>
    %583 = vector.multi_reduction <maximumf>, %582, %cst_167 [0] : vector<16x128xf32> to vector<128xf32>
    %584 = vector.shape_cast %583 : vector<128xf32> to vector<1x128xf32>
    %cst_168 = arith.constant 0.000000e+00 : f32
    %cst_169 = arith.constant 1.000000e+30 : f32
    %585 = arith.subf %cst_168, %cst_169 : f32
    %586 = vector.broadcast %585 : f32 to vector<16x128xf32>
    %587 = arith.select %475, %5, %586 : vector<16x128xi1>, vector<16x128xf32>
    %cst_170 = arith.constant dense<0xFF800000> : vector<128xf32>
    %588 = vector.multi_reduction <maximumf>, %587, %cst_170 [0] : vector<16x128xf32> to vector<128xf32>
    %589 = vector.shape_cast %588 : vector<128xf32> to vector<1x128xf32>
    %590 = tpu.concatenate %579, %584, %589 in 0 : vector<1x128xf32>, vector<1x128xf32>, vector<1x128xf32> -> vector<3x128xf32>
    %cst_171 = arith.constant dense<0x7F800000> : vector<3xf32>
    %591 = vector.multi_reduction <minimumf>, %574, %cst_171 [1] : vector<3x128xf32> to vector<3xf32>
    %592 = vector.shape_cast %591 : vector<3xf32> to vector<3x1xf32>
    %cst_172 = arith.constant dense<0xFF800000> : vector<3xf32>
    %593 = vector.multi_reduction <maximumf>, %590, %cst_172 [1] : vector<3x128xf32> to vector<3xf32>
    %594 = vector.shape_cast %593 : vector<3xf32> to vector<3x1xf32>
    %595 = vector.extract_strided_slice %592 {offsets = [0, 0], sizes = [1, 1], strides = [1, 1]} : vector<3x1xf32> to vector<1x1xf32>
    %596 = vector.extract_strided_slice %592 {offsets = [1, 0], sizes = [1, 1], strides = [1, 1]} : vector<3x1xf32> to vector<1x1xf32>
    %597 = vector.extract_strided_slice %592 {offsets = [2, 0], sizes = [1, 1], strides = [1, 1]} : vector<3x1xf32> to vector<1x1xf32>
    %598 = vector.extract_strided_slice %594 {offsets = [0, 0], sizes = [1, 1], strides = [1, 1]} : vector<3x1xf32> to vector<1x1xf32>
    %599 = vector.extract_strided_slice %594 {offsets = [1, 0], sizes = [1, 1], strides = [1, 1]} : vector<3x1xf32> to vector<1x1xf32>
    %600 = vector.extract_strided_slice %594 {offsets = [2, 0], sizes = [1, 1], strides = [1, 1]} : vector<3x1xf32> to vector<1x1xf32>
    %601 = arith.subf %598, %595 : vector<1x1xf32>
    %602 = arith.subf %599, %596 : vector<1x1xf32>
    %603 = arith.subf %600, %597 : vector<1x1xf32>
    %604 = arith.addf %595, %598 : vector<1x1xf32>
    %cst_173 = arith.constant 5.000000e-01 : f32
    %605 = vector.broadcast %cst_173 : f32 to vector<1x1xf32>
    %606 = arith.mulf %605, %604 : vector<1x1xf32>
    %607 = arith.addf %596, %599 : vector<1x1xf32>
    %cst_174 = arith.constant 5.000000e-01 : f32
    %608 = vector.broadcast %cst_174 : f32 to vector<1x1xf32>
    %609 = arith.mulf %608, %607 : vector<1x1xf32>
    %610 = arith.mulf %549, %606 : vector<1x1xf32>
    %611 = arith.mulf %551, %609 : vector<1x1xf32>
    %612 = arith.subf %610, %611 : vector<1x1xf32>
    %613 = arith.mulf %551, %606 : vector<1x1xf32>
    %614 = arith.mulf %549, %609 : vector<1x1xf32>
    %615 = arith.addf %613, %614 : vector<1x1xf32>
    %616 = arith.addf %597, %600 : vector<1x1xf32>
    %cst_175 = arith.constant 5.000000e-01 : f32
    %617 = vector.broadcast %cst_175 : f32 to vector<1x1xf32>
    %618 = arith.mulf %617, %616 : vector<1x1xf32>
    %cst_176 = arith.constant 0.000000e+00 : f32
    %619 = vector.broadcast %cst_176 : f32 to vector<1x128xf32>
    %c0_i32_177 = arith.constant 0 : i32
    %620 = vector.broadcast %c0_i32_177 : i32 to vector<1x128xi32>
    %621 = arith.cmpi eq, %10, %620 : vector<1x128xi32>
    %622 = vector.shape_cast %612 : vector<1x1xf32> to vector<1x1xf32>
    %623 = vector.broadcast %622 : vector<1x1xf32> to vector<1x128xf32>
    %624 = arith.select %621, %623, %619 : vector<1x128xi1>, vector<1x128xf32>
    %c1_i32_178 = arith.constant 1 : i32
    %625 = vector.broadcast %c1_i32_178 : i32 to vector<1x128xi32>
    %626 = arith.cmpi eq, %10, %625 : vector<1x128xi32>
    %627 = vector.shape_cast %615 : vector<1x1xf32> to vector<1x1xf32>
    %628 = vector.broadcast %627 : vector<1x1xf32> to vector<1x128xf32>
    %629 = arith.select %626, %628, %624 : vector<1x128xi1>, vector<1x128xf32>
    %c2_i32_179 = arith.constant 2 : i32
    %630 = vector.broadcast %c2_i32_179 : i32 to vector<1x128xi32>
    %631 = arith.cmpi eq, %10, %630 : vector<1x128xi32>
    %632 = vector.shape_cast %618 : vector<1x1xf32> to vector<1x1xf32>
    %633 = vector.broadcast %632 : vector<1x1xf32> to vector<1x128xf32>
    %634 = arith.select %631, %633, %629 : vector<1x128xi1>, vector<1x128xf32>
    %c3_i32_180 = arith.constant 3 : i32
    %635 = vector.broadcast %c3_i32_180 : i32 to vector<1x128xi32>
    %636 = arith.cmpi eq, %10, %635 : vector<1x128xi32>
    %637 = vector.shape_cast %601 : vector<1x1xf32> to vector<1x1xf32>
    %638 = vector.broadcast %637 : vector<1x1xf32> to vector<1x128xf32>
    %639 = arith.select %636, %638, %634 : vector<1x128xi1>, vector<1x128xf32>
    %c4_i32_181 = arith.constant 4 : i32
    %640 = vector.broadcast %c4_i32_181 : i32 to vector<1x128xi32>
    %641 = arith.cmpi eq, %10, %640 : vector<1x128xi32>
    %642 = vector.shape_cast %602 : vector<1x1xf32> to vector<1x1xf32>
    %643 = vector.broadcast %642 : vector<1x1xf32> to vector<1x128xf32>
    %644 = arith.select %641, %643, %639 : vector<1x128xi1>, vector<1x128xf32>
    %c5_i32_182 = arith.constant 5 : i32
    %645 = vector.broadcast %c5_i32_182 : i32 to vector<1x128xi32>
    %646 = arith.cmpi eq, %10, %645 : vector<1x128xi32>
    %647 = vector.shape_cast %603 : vector<1x1xf32> to vector<1x1xf32>
    %648 = vector.broadcast %647 : vector<1x1xf32> to vector<1x128xf32>
    %649 = arith.select %646, %648, %644 : vector<1x128xi1>, vector<1x128xf32>
    %c6_i32_183 = arith.constant 6 : i32
    %650 = vector.broadcast %c6_i32_183 : i32 to vector<1x128xi32>
    %651 = arith.cmpi eq, %10, %650 : vector<1x128xi32>
    %652 = vector.shape_cast %516 : vector<1x1xf32> to vector<1x1xf32>
    %653 = vector.broadcast %652 : vector<1x1xf32> to vector<1x128xf32>
    %654 = arith.select %651, %653, %649 : vector<1x128xi1>, vector<1x128xf32>
    %c7_i32_184 = arith.constant 7 : i32
    %655 = vector.broadcast %c7_i32_184 : i32 to vector<1x128xi32>
    %656 = arith.cmpi eq, %10, %655 : vector<1x128xi32>
    %657 = vector.shape_cast %519 : vector<1x1xf32> to vector<1x1xf32>
    %658 = vector.broadcast %657 : vector<1x1xf32> to vector<1x128xf32>
    %659 = arith.select %656, %658, %654 : vector<1x128xi1>, vector<1x128xf32>
    %c8_i32_185 = arith.constant 8 : i32
    %660 = vector.broadcast %c8_i32_185 : i32 to vector<1x128xi32>
    %661 = arith.cmpi eq, %10, %660 : vector<1x128xi32>
    %662 = vector.shape_cast %489 : vector<1x1xf32> to vector<1x1xf32>
    %663 = vector.broadcast %662 : vector<1x1xf32> to vector<1x128xf32>
    %664 = arith.select %661, %663, %659 : vector<1x128xi1>, vector<1x128xf32>
    %cst_186 = arith.constant 5.000000e-01 : f32
    %665 = vector.broadcast %cst_186 : f32 to vector<1x1xf32>
    %666 = arith.cmpf ogt, %489, %665 : vector<1x1xf32>
    %cst_187 = arith.constant 0.000000e+00 : f32
    %667 = vector.shape_cast %666 : vector<1x1xi1> to vector<1x1xi1>
    %668 = vector.broadcast %667 : vector<1x1xi1> to vector<1x128xi1>
    %669 = vector.broadcast %cst_187 : f32 to vector<1x128xf32>
    %670 = arith.select %668, %664, %669 : vector<1x128xi1>, vector<1x128xf32>
    %c2_188 = arith.constant 2 : index
    %c0_189 = arith.constant 0 : index
    %671 = vector.load %arg6[%c2_188, %c0_189] : memref<8x128xf32, #tpu.memory_space<vmem>>, vector<1x128xf32>
    tpu.vector_store %arg6[%c2_188, %c0_189], %670 {strides = array<i32>} : memref<8x128xf32, #tpu.memory_space<vmem>>, vector<1x128xf32>,
    %c12_i32 = arith.constant 12 : i32
    %672 = arith.addi %11, %c12_i32 : i32
    %c0_i32_190 = arith.constant 0 : i32
    %673 = arith.addi %672, %c0_i32_190 : i32
    %674 = arith.index_cast %673 : i32 to index
    %675 = memref.load %arg3[%674] : memref<512xf32, #tpu.memory_space<smem>>
    %c1_i32_191 = arith.constant 1 : i32
    %676 = arith.addi %672, %c1_i32_191 : i32
    %677 = arith.index_cast %676 : i32 to index
    %678 = memref.load %arg3[%677] : memref<512xf32, #tpu.memory_space<smem>>
    %c2_i32_192 = arith.constant 2 : i32
    %679 = arith.addi %672, %c2_i32_192 : i32
    %680 = arith.index_cast %679 : i32 to index
    %681 = memref.load %arg3[%680] : memref<512xf32, #tpu.memory_space<smem>>
    %c3_i32_193 = arith.constant 3 : i32
    %682 = arith.addi %672, %c3_i32_193 : i32
    %683 = arith.index_cast %682 : i32 to index
    %684 = memref.load %arg3[%683] : memref<512xf32, #tpu.memory_space<smem>>
    %685 = vector.broadcast %684 : f32 to vector<16x128xf32>
    %686 = arith.cmpf olt, %9, %685 : vector<16x128xf32>
    %687 = vector.broadcast %678 : f32 to vector<16x128xf32>
    %688 = arith.cmpf oge, %9, %687 : vector<16x128xf32>
    %689 = arith.andi %686, %688 : vector<16x128xi1>
    %690 = vector.broadcast %681 : f32 to vector<16x128xf32>
    %691 = arith.cmpf olt, %7, %690 : vector<16x128xf32>
    %692 = arith.andi %689, %691 : vector<16x128xi1>
    %693 = vector.broadcast %675 : f32 to vector<16x128xf32>
    %694 = arith.cmpf oge, %7, %693 : vector<16x128xf32>
    %695 = arith.andi %692, %694 : vector<16x128xi1>
    %696 = arith.extui %695 : vector<16x128xi1> to vector<16x128xi32>
    %697 = arith.sitofp %696 : vector<16x128xi32> to vector<16x128xf32>
    %698 = arith.mulf %697, %1 : vector<16x128xf32>
    %699 = arith.mulf %697, %3 : vector<16x128xf32>
    %cst_194 = arith.constant dense<0.000000e+00> : vector<128xf32>
    %700 = vector.multi_reduction <add>, %697, %cst_194 [0] : vector<16x128xf32> to vector<128xf32>
    %701 = vector.shape_cast %700 : vector<128xf32> to vector<1x128xf32>
    %cst_195 = arith.constant dense<0.000000e+00> : vector<128xf32>
    %702 = vector.multi_reduction <add>, %698, %cst_195 [0] : vector<16x128xf32> to vector<128xf32>
    %703 = vector.shape_cast %702 : vector<128xf32> to vector<1x128xf32>
    %cst_196 = arith.constant dense<0.000000e+00> : vector<128xf32>
    %704 = vector.multi_reduction <add>, %699, %cst_196 [0] : vector<16x128xf32> to vector<128xf32>
    %705 = vector.shape_cast %704 : vector<128xf32> to vector<1x128xf32>
    %706 = tpu.concatenate %701, %703, %705 in 0 : vector<1x128xf32>, vector<1x128xf32>, vector<1x128xf32> -> vector<3x128xf32>
    %cst_197 = arith.constant dense<0.000000e+00> : vector<3xf32>
    %707 = vector.multi_reduction <add>, %706, %cst_197 [1] : vector<3x128xf32> to vector<3xf32>
    %708 = vector.shape_cast %707 : vector<3xf32> to vector<3x1xf32>
    %709 = vector.extract_strided_slice %708 {offsets = [0, 0], sizes = [1, 1], strides = [1, 1]} : vector<3x1xf32> to vector<1x1xf32>
    %cst_198 = arith.constant 1.000000e+00 : f32
    %710 = vector.broadcast %cst_198 : f32 to vector<1x1xf32>
    %711 = arith.maximumf %709, %710 : vector<1x1xf32>
    %712 = vector.extract_strided_slice %708 {offsets = [1, 0], sizes = [1, 1], strides = [1, 1]} : vector<3x1xf32> to vector<1x1xf32>
    %713 = arith.divf %712, %711 : vector<1x1xf32>
    %714 = vector.extract_strided_slice %708 {offsets = [2, 0], sizes = [1, 1], strides = [1, 1]} : vector<3x1xf32> to vector<1x1xf32>
    %715 = arith.divf %714, %711 : vector<1x1xf32>
    %716 = vector.broadcast %713 : vector<1x1xf32> to vector<16x128xf32>
    %717 = arith.subf %1, %716 : vector<16x128xf32>
    %718 = vector.broadcast %715 : vector<1x1xf32> to vector<16x128xf32>
    %719 = arith.subf %3, %718 : vector<16x128xf32>
    %720 = arith.mulf %697, %717 : vector<16x128xf32>
    %721 = arith.mulf %697, %719 : vector<16x128xf32>
    %722 = arith.mulf %720, %717 : vector<16x128xf32>
    %cst_199 = arith.constant dense<0.000000e+00> : vector<128xf32>
    %723 = vector.multi_reduction <add>, %722, %cst_199 [0] : vector<16x128xf32> to vector<128xf32>
    %724 = vector.shape_cast %723 : vector<128xf32> to vector<1x128xf32>
    %725 = arith.mulf %721, %719 : vector<16x128xf32>
    %cst_200 = arith.constant dense<0.000000e+00> : vector<128xf32>
    %726 = vector.multi_reduction <add>, %725, %cst_200 [0] : vector<16x128xf32> to vector<128xf32>
    %727 = vector.shape_cast %726 : vector<128xf32> to vector<1x128xf32>
    %728 = arith.mulf %720, %719 : vector<16x128xf32>
    %cst_201 = arith.constant dense<0.000000e+00> : vector<128xf32>
    %729 = vector.multi_reduction <add>, %728, %cst_201 [0] : vector<16x128xf32> to vector<128xf32>
    %730 = vector.shape_cast %729 : vector<128xf32> to vector<1x128xf32>
    %731 = tpu.concatenate %724, %727, %730 in 0 : vector<1x128xf32>, vector<1x128xf32>, vector<1x128xf32> -> vector<3x128xf32>
    %cst_202 = arith.constant dense<0.000000e+00> : vector<3xf32>
    %732 = vector.multi_reduction <add>, %731, %cst_202 [1] : vector<3x128xf32> to vector<3xf32>
    %733 = vector.shape_cast %732 : vector<3xf32> to vector<3x1xf32>
    %734 = vector.extract_strided_slice %733 {offsets = [0, 0], sizes = [1, 1], strides = [1, 1]} : vector<3x1xf32> to vector<1x1xf32>
    %735 = vector.extract_strided_slice %733 {offsets = [1, 0], sizes = [1, 1], strides = [1, 1]} : vector<3x1xf32> to vector<1x1xf32>
    %736 = arith.subf %734, %735 : vector<1x1xf32>
    %737 = vector.extract_strided_slice %733 {offsets = [2, 0], sizes = [1, 1], strides = [1, 1]} : vector<3x1xf32> to vector<1x1xf32>
    %cst_203 = arith.constant 2.000000e+00 : f32
    %738 = vector.broadcast %cst_203 : f32 to vector<1x1xf32>
    %739 = arith.mulf %738, %737 : vector<1x1xf32>
    %740 = arith.mulf %736, %736 : vector<1x1xf32>
    %741 = arith.mulf %739, %739 : vector<1x1xf32>
    %742 = arith.addf %740, %741 : vector<1x1xf32>
    %743 = math.sqrt %742 : vector<1x1xf32>
    %cst_204 = arith.constant 9.99999968E-21 : f32
    %744 = vector.broadcast %cst_204 : f32 to vector<1x1xf32>
    %745 = arith.maximumf %743, %744 : vector<1x1xf32>
    %746 = arith.divf %736, %745 : vector<1x1xf32>
    %cst_205 = arith.constant 1.000000e+00 : f32
    %747 = vector.broadcast %cst_205 : f32 to vector<1x1xf32>
    %748 = arith.addf %747, %746 : vector<1x1xf32>
    %cst_206 = arith.constant 5.000000e-01 : f32
    %749 = vector.broadcast %cst_206 : f32 to vector<1x1xf32>
    %750 = arith.mulf %749, %748 : vector<1x1xf32>
    %cst_207 = arith.constant 0.000000e+00 : f32
    %751 = vector.broadcast %cst_207 : f32 to vector<1x1xf32>
    %752 = arith.maximumf %750, %751 : vector<1x1xf32>
    %753 = math.sqrt %752 : vector<1x1xf32>
    %cst_208 = arith.constant 1.000000e+00 : f32
    %754 = vector.broadcast %cst_208 : f32 to vector<1x1xf32>
    %755 = arith.subf %754, %746 : vector<1x1xf32>
    %cst_209 = arith.constant 5.000000e-01 : f32
    %756 = vector.broadcast %cst_209 : f32 to vector<1x1xf32>
    %757 = arith.mulf %756, %755 : vector<1x1xf32>
    %cst_210 = arith.constant 0.000000e+00 : f32
    %758 = vector.broadcast %cst_210 : f32 to vector<1x1xf32>
    %759 = arith.maximumf %757, %758 : vector<1x1xf32>
    %760 = math.sqrt %759 : vector<1x1xf32>
    %cst_211 = arith.constant 0.000000e+00 : f32
    %761 = vector.broadcast %cst_211 : f32 to vector<1x1xf32>
    %762 = arith.cmpf oge, %739, %761 : vector<1x1xf32>
    %cst_212 = arith.constant 0.000000e+00 : f32
    %763 = vector.broadcast %cst_212 : f32 to vector<1x1xf32>
    %764 = arith.subf %763, %760 : vector<1x1xf32>
    %765 = arith.select %762, %760, %764 : vector<1x1xi1>, vector<1x1xf32>
    %cst_213 = arith.constant 9.99999996E-13 : f32
    %766 = vector.broadcast %cst_213 : f32 to vector<1x1xf32>
    %767 = arith.cmpf olt, %743, %766 : vector<1x1xf32>
    %cst_214 = arith.constant 1.000000e+00 : f32
    %768 = vector.broadcast %cst_214 : f32 to vector<1x1xf32>
    %769 = arith.select %767, %768, %753 : vector<1x1xi1>, vector<1x1xf32>
    %cst_215 = arith.constant 0.000000e+00 : f32
    %770 = vector.broadcast %cst_215 : f32 to vector<1x1xf32>
    %771 = arith.select %767, %770, %765 : vector<1x1xi1>, vector<1x1xf32>
    %772 = vector.broadcast %769 : vector<1x1xf32> to vector<16x128xf32>
    %773 = arith.mulf %772, %1 : vector<16x128xf32>
    %774 = vector.broadcast %771 : vector<1x1xf32> to vector<16x128xf32>
    %775 = arith.mulf %774, %3 : vector<16x128xf32>
    %776 = arith.addf %773, %775 : vector<16x128xf32>
    %777 = vector.broadcast %769 : vector<1x1xf32> to vector<16x128xf32>
    %778 = arith.mulf %777, %3 : vector<16x128xf32>
    %779 = vector.broadcast %771 : vector<1x1xf32> to vector<16x128xf32>
    %780 = arith.mulf %779, %1 : vector<16x128xf32>
    %781 = arith.subf %778, %780 : vector<16x128xf32>
    %cst_216 = arith.constant 1.000000e+30 : f32
    %782 = vector.broadcast %cst_216 : f32 to vector<16x128xf32>
    %783 = arith.select %695, %776, %782 : vector<16x128xi1>, vector<16x128xf32>
    %cst_217 = arith.constant dense<0x7F800000> : vector<128xf32>
    %784 = vector.multi_reduction <minimumf>, %783, %cst_217 [0] : vector<16x128xf32> to vector<128xf32>
    %785 = vector.shape_cast %784 : vector<128xf32> to vector<1x128xf32>
    %cst_218 = arith.constant 1.000000e+30 : f32
    %786 = vector.broadcast %cst_218 : f32 to vector<16x128xf32>
    %787 = arith.select %695, %781, %786 : vector<16x128xi1>, vector<16x128xf32>
    %cst_219 = arith.constant dense<0x7F800000> : vector<128xf32>
    %788 = vector.multi_reduction <minimumf>, %787, %cst_219 [0] : vector<16x128xf32> to vector<128xf32>
    %789 = vector.shape_cast %788 : vector<128xf32> to vector<1x128xf32>
    %cst_220 = arith.constant 1.000000e+30 : f32
    %790 = vector.broadcast %cst_220 : f32 to vector<16x128xf32>
    %791 = arith.select %695, %5, %790 : vector<16x128xi1>, vector<16x128xf32>
    %cst_221 = arith.constant dense<0x7F800000> : vector<128xf32>
    %792 = vector.multi_reduction <minimumf>, %791, %cst_221 [0] : vector<16x128xf32> to vector<128xf32>
    %793 = vector.shape_cast %792 : vector<128xf32> to vector<1x128xf32>
    %794 = tpu.concatenate %785, %789, %793 in 0 : vector<1x128xf32>, vector<1x128xf32>, vector<1x128xf32> -> vector<3x128xf32>
    %cst_222 = arith.constant 0.000000e+00 : f32
    %cst_223 = arith.constant 1.000000e+30 : f32
    %795 = arith.subf %cst_222, %cst_223 : f32
    %796 = vector.broadcast %795 : f32 to vector<16x128xf32>
    %797 = arith.select %695, %776, %796 : vector<16x128xi1>, vector<16x128xf32>
    %cst_224 = arith.constant dense<0xFF800000> : vector<128xf32>
    %798 = vector.multi_reduction <maximumf>, %797, %cst_224 [0] : vector<16x128xf32> to vector<128xf32>
    %799 = vector.shape_cast %798 : vector<128xf32> to vector<1x128xf32>
    %cst_225 = arith.constant 0.000000e+00 : f32
    %cst_226 = arith.constant 1.000000e+30 : f32
    %800 = arith.subf %cst_225, %cst_226 : f32
    %801 = vector.broadcast %800 : f32 to vector<16x128xf32>
    %802 = arith.select %695, %781, %801 : vector<16x128xi1>, vector<16x128xf32>
    %cst_227 = arith.constant dense<0xFF800000> : vector<128xf32>
    %803 = vector.multi_reduction <maximumf>, %802, %cst_227 [0] : vector<16x128xf32> to vector<128xf32>
    %804 = vector.shape_cast %803 : vector<128xf32> to vector<1x128xf32>
    %cst_228 = arith.constant 0.000000e+00 : f32
    %cst_229 = arith.constant 1.000000e+30 : f32
    %805 = arith.subf %cst_228, %cst_229 : f32
    %806 = vector.broadcast %805 : f32 to vector<16x128xf32>
    %807 = arith.select %695, %5, %806 : vector<16x128xi1>, vector<16x128xf32>
    %cst_230 = arith.constant dense<0xFF800000> : vector<128xf32>
    %808 = vector.multi_reduction <maximumf>, %807, %cst_230 [0] : vector<16x128xf32> to vector<128xf32>
    %809 = vector.shape_cast %808 : vector<128xf32> to vector<1x128xf32>
    %810 = tpu.concatenate %799, %804, %809 in 0 : vector<1x128xf32>, vector<1x128xf32>, vector<1x128xf32> -> vector<3x128xf32>
    %cst_231 = arith.constant dense<0x7F800000> : vector<3xf32>
    %811 = vector.multi_reduction <minimumf>, %794, %cst_231 [1] : vector<3x128xf32> to vector<3xf32>
    %812 = vector.shape_cast %811 : vector<3xf32> to vector<3x1xf32>
    %cst_232 = arith.constant dense<0xFF800000> : vector<3xf32>
    %813 = vector.multi_reduction <maximumf>, %810, %cst_232 [1] : vector<3x128xf32> to vector<3xf32>
    %814 = vector.shape_cast %813 : vector<3xf32> to vector<3x1xf32>
    %815 = vector.extract_strided_slice %812 {offsets = [0, 0], sizes = [1, 1], strides = [1, 1]} : vector<3x1xf32> to vector<1x1xf32>
    %816 = vector.extract_strided_slice %812 {offsets = [1, 0], sizes = [1, 1], strides = [1, 1]} : vector<3x1xf32> to vector<1x1xf32>
    %817 = vector.extract_strided_slice %812 {offsets = [2, 0], sizes = [1, 1], strides = [1, 1]} : vector<3x1xf32> to vector<1x1xf32>
    %818 = vector.extract_strided_slice %814 {offsets = [0, 0], sizes = [1, 1], strides = [1, 1]} : vector<3x1xf32> to vector<1x1xf32>
    %819 = vector.extract_strided_slice %814 {offsets = [1, 0], sizes = [1, 1], strides = [1, 1]} : vector<3x1xf32> to vector<1x1xf32>
    %820 = vector.extract_strided_slice %814 {offsets = [2, 0], sizes = [1, 1], strides = [1, 1]} : vector<3x1xf32> to vector<1x1xf32>
    %821 = arith.subf %818, %815 : vector<1x1xf32>
    %822 = arith.subf %819, %816 : vector<1x1xf32>
    %823 = arith.subf %820, %817 : vector<1x1xf32>
    %824 = arith.addf %815, %818 : vector<1x1xf32>
    %cst_233 = arith.constant 5.000000e-01 : f32
    %825 = vector.broadcast %cst_233 : f32 to vector<1x1xf32>
    %826 = arith.mulf %825, %824 : vector<1x1xf32>
    %827 = arith.addf %816, %819 : vector<1x1xf32>
    %cst_234 = arith.constant 5.000000e-01 : f32
    %828 = vector.broadcast %cst_234 : f32 to vector<1x1xf32>
    %829 = arith.mulf %828, %827 : vector<1x1xf32>
    %830 = arith.mulf %769, %826 : vector<1x1xf32>
    %831 = arith.mulf %771, %829 : vector<1x1xf32>
    %832 = arith.subf %830, %831 : vector<1x1xf32>
    %833 = arith.mulf %771, %826 : vector<1x1xf32>
    %834 = arith.mulf %769, %829 : vector<1x1xf32>
    %835 = arith.addf %833, %834 : vector<1x1xf32>
    %836 = arith.addf %817, %820 : vector<1x1xf32>
    %cst_235 = arith.constant 5.000000e-01 : f32
    %837 = vector.broadcast %cst_235 : f32 to vector<1x1xf32>
    %838 = arith.mulf %837, %836 : vector<1x1xf32>
    %cst_236 = arith.constant 0.000000e+00 : f32
    %839 = vector.broadcast %cst_236 : f32 to vector<1x128xf32>
    %c0_i32_237 = arith.constant 0 : i32
    %840 = vector.broadcast %c0_i32_237 : i32 to vector<1x128xi32>
    %841 = arith.cmpi eq, %10, %840 : vector<1x128xi32>
    %842 = vector.shape_cast %832 : vector<1x1xf32> to vector<1x1xf32>
    %843 = vector.broadcast %842 : vector<1x1xf32> to vector<1x128xf32>
    %844 = arith.select %841, %843, %839 : vector<1x128xi1>, vector<1x128xf32>
    %c1_i32_238 = arith.constant 1 : i32
    %845 = vector.broadcast %c1_i32_238 : i32 to vector<1x128xi32>
    %846 = arith.cmpi eq, %10, %845 : vector<1x128xi32>
    %847 = vector.shape_cast %835 : vector<1x1xf32> to vector<1x1xf32>
    %848 = vector.broadcast %847 : vector<1x1xf32> to vector<1x128xf32>
    %849 = arith.select %846, %848, %844 : vector<1x128xi1>, vector<1x128xf32>
    %c2_i32_239 = arith.constant 2 : i32
    %850 = vector.broadcast %c2_i32_239 : i32 to vector<1x128xi32>
    %851 = arith.cmpi eq, %10, %850 : vector<1x128xi32>
    %852 = vector.shape_cast %838 : vector<1x1xf32> to vector<1x1xf32>
    %853 = vector.broadcast %852 : vector<1x1xf32> to vector<1x128xf32>
    %854 = arith.select %851, %853, %849 : vector<1x128xi1>, vector<1x128xf32>
    %c3_i32_240 = arith.constant 3 : i32
    %855 = vector.broadcast %c3_i32_240 : i32 to vector<1x128xi32>
    %856 = arith.cmpi eq, %10, %855 : vector<1x128xi32>
    %857 = vector.shape_cast %821 : vector<1x1xf32> to vector<1x1xf32>
    %858 = vector.broadcast %857 : vector<1x1xf32> to vector<1x128xf32>
    %859 = arith.select %856, %858, %854 : vector<1x128xi1>, vector<1x128xf32>
    %c4_i32_241 = arith.constant 4 : i32
    %860 = vector.broadcast %c4_i32_241 : i32 to vector<1x128xi32>
    %861 = arith.cmpi eq, %10, %860 : vector<1x128xi32>
    %862 = vector.shape_cast %822 : vector<1x1xf32> to vector<1x1xf32>
    %863 = vector.broadcast %862 : vector<1x1xf32> to vector<1x128xf32>
    %864 = arith.select %861, %863, %859 : vector<1x128xi1>, vector<1x128xf32>
    %c5_i32_242 = arith.constant 5 : i32
    %865 = vector.broadcast %c5_i32_242 : i32 to vector<1x128xi32>
    %866 = arith.cmpi eq, %10, %865 : vector<1x128xi32>
    %867 = vector.shape_cast %823 : vector<1x1xf32> to vector<1x1xf32>
    %868 = vector.broadcast %867 : vector<1x1xf32> to vector<1x128xf32>
    %869 = arith.select %866, %868, %864 : vector<1x128xi1>, vector<1x128xf32>
    %c6_i32_243 = arith.constant 6 : i32
    %870 = vector.broadcast %c6_i32_243 : i32 to vector<1x128xi32>
    %871 = arith.cmpi eq, %10, %870 : vector<1x128xi32>
    %872 = vector.shape_cast %736 : vector<1x1xf32> to vector<1x1xf32>
    %873 = vector.broadcast %872 : vector<1x1xf32> to vector<1x128xf32>
    %874 = arith.select %871, %873, %869 : vector<1x128xi1>, vector<1x128xf32>
    %c7_i32_244 = arith.constant 7 : i32
    %875 = vector.broadcast %c7_i32_244 : i32 to vector<1x128xi32>
    %876 = arith.cmpi eq, %10, %875 : vector<1x128xi32>
    %877 = vector.shape_cast %739 : vector<1x1xf32> to vector<1x1xf32>
    %878 = vector.broadcast %877 : vector<1x1xf32> to vector<1x128xf32>
    %879 = arith.select %876, %878, %874 : vector<1x128xi1>, vector<1x128xf32>
    %c8_i32_245 = arith.constant 8 : i32
    %880 = vector.broadcast %c8_i32_245 : i32 to vector<1x128xi32>
    %881 = arith.cmpi eq, %10, %880 : vector<1x128xi32>
    %882 = vector.shape_cast %709 : vector<1x1xf32> to vector<1x1xf32>
    %883 = vector.broadcast %882 : vector<1x1xf32> to vector<1x128xf32>
    %884 = arith.select %881, %883, %879 : vector<1x128xi1>, vector<1x128xf32>
    %cst_246 = arith.constant 5.000000e-01 : f32
    %885 = vector.broadcast %cst_246 : f32 to vector<1x1xf32>
    %886 = arith.cmpf ogt, %709, %885 : vector<1x1xf32>
    %cst_247 = arith.constant 0.000000e+00 : f32
    %887 = vector.shape_cast %886 : vector<1x1xi1> to vector<1x1xi1>
    %888 = vector.broadcast %887 : vector<1x1xi1> to vector<1x128xi1>
    %889 = vector.broadcast %cst_247 : f32 to vector<1x128xf32>
    %890 = arith.select %888, %884, %889 : vector<1x128xi1>, vector<1x128xf32>
    %c3 = arith.constant 3 : index
    %c0_248 = arith.constant 0 : index
    %891 = vector.load %arg6[%c3, %c0_248] : memref<8x128xf32, #tpu.memory_space<vmem>>, vector<1x128xf32>
    tpu.vector_store %arg6[%c3, %c0_248], %890 {strides = array<i32>} : memref<8x128xf32, #tpu.memory_space<vmem>>, vector<1x128xf32>,
    %c16_i32 = arith.constant 16 : i32
    %892 = arith.addi %11, %c16_i32 : i32
    %c0_i32_249 = arith.constant 0 : i32
    %893 = arith.addi %892, %c0_i32_249 : i32
    %894 = arith.index_cast %893 : i32 to index
    %895 = memref.load %arg3[%894] : memref<512xf32, #tpu.memory_space<smem>>
    %c1_i32_250 = arith.constant 1 : i32
    %896 = arith.addi %892, %c1_i32_250 : i32
    %897 = arith.index_cast %896 : i32 to index
    %898 = memref.load %arg3[%897] : memref<512xf32, #tpu.memory_space<smem>>
    %c2_i32_251 = arith.constant 2 : i32
    %899 = arith.addi %892, %c2_i32_251 : i32
    %900 = arith.index_cast %899 : i32 to index
    %901 = memref.load %arg3[%900] : memref<512xf32, #tpu.memory_space<smem>>
    %c3_i32_252 = arith.constant 3 : i32
    %902 = arith.addi %892, %c3_i32_252 : i32
    %903 = arith.index_cast %902 : i32 to index
    %904 = memref.load %arg3[%903] : memref<512xf32, #tpu.memory_space<smem>>
    %905 = vector.broadcast %904 : f32 to vector<16x128xf32>
    %906 = arith.cmpf olt, %9, %905 : vector<16x128xf32>
    %907 = vector.broadcast %898 : f32 to vector<16x128xf32>
    %908 = arith.cmpf oge, %9, %907 : vector<16x128xf32>
    %909 = arith.andi %906, %908 : vector<16x128xi1>
    %910 = vector.broadcast %901 : f32 to vector<16x128xf32>
    %911 = arith.cmpf olt, %7, %910 : vector<16x128xf32>
    %912 = arith.andi %909, %911 : vector<16x128xi1>
    %913 = vector.broadcast %895 : f32 to vector<16x128xf32>
    %914 = arith.cmpf oge, %7, %913 : vector<16x128xf32>
    %915 = arith.andi %912, %914 : vector<16x128xi1>
    %916 = arith.extui %915 : vector<16x128xi1> to vector<16x128xi32>
    %917 = arith.sitofp %916 : vector<16x128xi32> to vector<16x128xf32>
    %918 = arith.mulf %917, %1 : vector<16x128xf32>
    %919 = arith.mulf %917, %3 : vector<16x128xf32>
    %cst_253 = arith.constant dense<0.000000e+00> : vector<128xf32>
    %920 = vector.multi_reduction <add>, %917, %cst_253 [0] : vector<16x128xf32> to vector<128xf32>
    %921 = vector.shape_cast %920 : vector<128xf32> to vector<1x128xf32>
    %cst_254 = arith.constant dense<0.000000e+00> : vector<128xf32>
    %922 = vector.multi_reduction <add>, %918, %cst_254 [0] : vector<16x128xf32> to vector<128xf32>
    %923 = vector.shape_cast %922 : vector<128xf32> to vector<1x128xf32>
    %cst_255 = arith.constant dense<0.000000e+00> : vector<128xf32>
    %924 = vector.multi_reduction <add>, %919, %cst_255 [0] : vector<16x128xf32> to vector<128xf32>
    %925 = vector.shape_cast %924 : vector<128xf32> to vector<1x128xf32>
    %926 = tpu.concatenate %921, %923, %925 in 0 : vector<1x128xf32>, vector<1x128xf32>, vector<1x128xf32> -> vector<3x128xf32>
    %cst_256 = arith.constant dense<0.000000e+00> : vector<3xf32>
    %927 = vector.multi_reduction <add>, %926, %cst_256 [1] : vector<3x128xf32> to vector<3xf32>
    %928 = vector.shape_cast %927 : vector<3xf32> to vector<3x1xf32>
    %929 = vector.extract_strided_slice %928 {offsets = [0, 0], sizes = [1, 1], strides = [1, 1]} : vector<3x1xf32> to vector<1x1xf32>
    %cst_257 = arith.constant 1.000000e+00 : f32
    %930 = vector.broadcast %cst_257 : f32 to vector<1x1xf32>
    %931 = arith.maximumf %929, %930 : vector<1x1xf32>
    %932 = vector.extract_strided_slice %928 {offsets = [1, 0], sizes = [1, 1], strides = [1, 1]} : vector<3x1xf32> to vector<1x1xf32>
    %933 = arith.divf %932, %931 : vector<1x1xf32>
    %934 = vector.extract_strided_slice %928 {offsets = [2, 0], sizes = [1, 1], strides = [1, 1]} : vector<3x1xf32> to vector<1x1xf32>
    %935 = arith.divf %934, %931 : vector<1x1xf32>
    %936 = vector.broadcast %933 : vector<1x1xf32> to vector<16x128xf32>
    %937 = arith.subf %1, %936 : vector<16x128xf32>
    %938 = vector.broadcast %935 : vector<1x1xf32> to vector<16x128xf32>
    %939 = arith.subf %3, %938 : vector<16x128xf32>
    %940 = arith.mulf %917, %937 : vector<16x128xf32>
    %941 = arith.mulf %917, %939 : vector<16x128xf32>
    %942 = arith.mulf %940, %937 : vector<16x128xf32>
    %cst_258 = arith.constant dense<0.000000e+00> : vector<128xf32>
    %943 = vector.multi_reduction <add>, %942, %cst_258 [0] : vector<16x128xf32> to vector<128xf32>
    %944 = vector.shape_cast %943 : vector<128xf32> to vector<1x128xf32>
    %945 = arith.mulf %941, %939 : vector<16x128xf32>
    %cst_259 = arith.constant dense<0.000000e+00> : vector<128xf32>
    %946 = vector.multi_reduction <add>, %945, %cst_259 [0] : vector<16x128xf32> to vector<128xf32>
    %947 = vector.shape_cast %946 : vector<128xf32> to vector<1x128xf32>
    %948 = arith.mulf %940, %939 : vector<16x128xf32>
    %cst_260 = arith.constant dense<0.000000e+00> : vector<128xf32>
    %949 = vector.multi_reduction <add>, %948, %cst_260 [0] : vector<16x128xf32> to vector<128xf32>
    %950 = vector.shape_cast %949 : vector<128xf32> to vector<1x128xf32>
    %951 = tpu.concatenate %944, %947, %950 in 0 : vector<1x128xf32>, vector<1x128xf32>, vector<1x128xf32> -> vector<3x128xf32>
    %cst_261 = arith.constant dense<0.000000e+00> : vector<3xf32>
    %952 = vector.multi_reduction <add>, %951, %cst_261 [1] : vector<3x128xf32> to vector<3xf32>
    %953 = vector.shape_cast %952 : vector<3xf32> to vector<3x1xf32>
    %954 = vector.extract_strided_slice %953 {offsets = [0, 0], sizes = [1, 1], strides = [1, 1]} : vector<3x1xf32> to vector<1x1xf32>
    %955 = vector.extract_strided_slice %953 {offsets = [1, 0], sizes = [1, 1], strides = [1, 1]} : vector<3x1xf32> to vector<1x1xf32>
    %956 = arith.subf %954, %955 : vector<1x1xf32>
    %957 = vector.extract_strided_slice %953 {offsets = [2, 0], sizes = [1, 1], strides = [1, 1]} : vector<3x1xf32> to vector<1x1xf32>
    %cst_262 = arith.constant 2.000000e+00 : f32
    %958 = vector.broadcast %cst_262 : f32 to vector<1x1xf32>
    %959 = arith.mulf %958, %957 : vector<1x1xf32>
    %960 = arith.mulf %956, %956 : vector<1x1xf32>
    %961 = arith.mulf %959, %959 : vector<1x1xf32>
    %962 = arith.addf %960, %961 : vector<1x1xf32>
    %963 = math.sqrt %962 : vector<1x1xf32>
    %cst_263 = arith.constant 9.99999968E-21 : f32
    %964 = vector.broadcast %cst_263 : f32 to vector<1x1xf32>
    %965 = arith.maximumf %963, %964 : vector<1x1xf32>
    %966 = arith.divf %956, %965 : vector<1x1xf32>
    %cst_264 = arith.constant 1.000000e+00 : f32
    %967 = vector.broadcast %cst_264 : f32 to vector<1x1xf32>
    %968 = arith.addf %967, %966 : vector<1x1xf32>
    %cst_265 = arith.constant 5.000000e-01 : f32
    %969 = vector.broadcast %cst_265 : f32 to vector<1x1xf32>
    %970 = arith.mulf %969, %968 : vector<1x1xf32>
    %cst_266 = arith.constant 0.000000e+00 : f32
    %971 = vector.broadcast %cst_266 : f32 to vector<1x1xf32>
    %972 = arith.maximumf %970, %971 : vector<1x1xf32>
    %973 = math.sqrt %972 : vector<1x1xf32>
    %cst_267 = arith.constant 1.000000e+00 : f32
    %974 = vector.broadcast %cst_267 : f32 to vector<1x1xf32>
    %975 = arith.subf %974, %966 : vector<1x1xf32>
    %cst_268 = arith.constant 5.000000e-01 : f32
    %976 = vector.broadcast %cst_268 : f32 to vector<1x1xf32>
    %977 = arith.mulf %976, %975 : vector<1x1xf32>
    %cst_269 = arith.constant 0.000000e+00 : f32
    %978 = vector.broadcast %cst_269 : f32 to vector<1x1xf32>
    %979 = arith.maximumf %977, %978 : vector<1x1xf32>
    %980 = math.sqrt %979 : vector<1x1xf32>
    %cst_270 = arith.constant 0.000000e+00 : f32
    %981 = vector.broadcast %cst_270 : f32 to vector<1x1xf32>
    %982 = arith.cmpf oge, %959, %981 : vector<1x1xf32>
    %cst_271 = arith.constant 0.000000e+00 : f32
    %983 = vector.broadcast %cst_271 : f32 to vector<1x1xf32>
    %984 = arith.subf %983, %980 : vector<1x1xf32>
    %985 = arith.select %982, %980, %984 : vector<1x1xi1>, vector<1x1xf32>
    %cst_272 = arith.constant 9.99999996E-13 : f32
    %986 = vector.broadcast %cst_272 : f32 to vector<1x1xf32>
    %987 = arith.cmpf olt, %963, %986 : vector<1x1xf32>
    %cst_273 = arith.constant 1.000000e+00 : f32
    %988 = vector.broadcast %cst_273 : f32 to vector<1x1xf32>
    %989 = arith.select %987, %988, %973 : vector<1x1xi1>, vector<1x1xf32>
    %cst_274 = arith.constant 0.000000e+00 : f32
    %990 = vector.broadcast %cst_274 : f32 to vector<1x1xf32>
    %991 = arith.select %987, %990, %985 : vector<1x1xi1>, vector<1x1xf32>
    %992 = vector.broadcast %989 : vector<1x1xf32> to vector<16x128xf32>
    %993 = arith.mulf %992, %1 : vector<16x128xf32>
    %994 = vector.broadcast %991 : vector<1x1xf32> to vector<16x128xf32>
    %995 = arith.mulf %994, %3 : vector<16x128xf32>
    %996 = arith.addf %993, %995 : vector<16x128xf32>
    %997 = vector.broadcast %989 : vector<1x1xf32> to vector<16x128xf32>
    %998 = arith.mulf %997, %3 : vector<16x128xf32>
    %999 = vector.broadcast %991 : vector<1x1xf32> to vector<16x128xf32>
    %1000 = arith.mulf %999, %1 : vector<16x128xf32>
    %1001 = arith.subf %998, %1000 : vector<16x128xf32>
    %cst_275 = arith.constant 1.000000e+30 : f32
    %1002 = vector.broadcast %cst_275 : f32 to vector<16x128xf32>
    %1003 = arith.select %915, %996, %1002 : vector<16x128xi1>, vector<16x128xf32>
    %cst_276 = arith.constant dense<0x7F800000> : vector<128xf32>
    %1004 = vector.multi_reduction <minimumf>, %1003, %cst_276 [0] : vector<16x128xf32> to vector<128xf32>
    %1005 = vector.shape_cast %1004 : vector<128xf32> to vector<1x128xf32>
    %cst_277 = arith.constant 1.000000e+30 : f32
    %1006 = vector.broadcast %cst_277 : f32 to vector<16x128xf32>
    %1007 = arith.select %915, %1001, %1006 : vector<16x128xi1>, vector<16x128xf32>
    %cst_278 = arith.constant dense<0x7F800000> : vector<128xf32>
    %1008 = vector.multi_reduction <minimumf>, %1007, %cst_278 [0] : vector<16x128xf32> to vector<128xf32>
    %1009 = vector.shape_cast %1008 : vector<128xf32> to vector<1x128xf32>
    %cst_279 = arith.constant 1.000000e+30 : f32
    %1010 = vector.broadcast %cst_279 : f32 to vector<16x128xf32>
    %1011 = arith.select %915, %5, %1010 : vector<16x128xi1>, vector<16x128xf32>
    %cst_280 = arith.constant dense<0x7F800000> : vector<128xf32>
    %1012 = vector.multi_reduction <minimumf>, %1011, %cst_280 [0] : vector<16x128xf32> to vector<128xf32>
    %1013 = vector.shape_cast %1012 : vector<128xf32> to vector<1x128xf32>
    %1014 = tpu.concatenate %1005, %1009, %1013 in 0 : vector<1x128xf32>, vector<1x128xf32>, vector<1x128xf32> -> vector<3x128xf32>
    %cst_281 = arith.constant 0.000000e+00 : f32
    %cst_282 = arith.constant 1.000000e+30 : f32
    %1015 = arith.subf %cst_281, %cst_282 : f32
    %1016 = vector.broadcast %1015 : f32 to vector<16x128xf32>
    %1017 = arith.select %915, %996, %1016 : vector<16x128xi1>, vector<16x128xf32>
    %cst_283 = arith.constant dense<0xFF800000> : vector<128xf32>
    %1018 = vector.multi_reduction <maximumf>, %1017, %cst_283 [0] : vector<16x128xf32> to vector<128xf32>
    %1019 = vector.shape_cast %1018 : vector<128xf32> to vector<1x128xf32>
    %cst_284 = arith.constant 0.000000e+00 : f32
    %cst_285 = arith.constant 1.000000e+30 : f32
    %1020 = arith.subf %cst_284, %cst_285 : f32
    %1021 = vector.broadcast %1020 : f32 to vector<16x128xf32>
    %1022 = arith.select %915, %1001, %1021 : vector<16x128xi1>, vector<16x128xf32>
    %cst_286 = arith.constant dense<0xFF800000> : vector<128xf32>
    %1023 = vector.multi_reduction <maximumf>, %1022, %cst_286 [0] : vector<16x128xf32> to vector<128xf32>
    %1024 = vector.shape_cast %1023 : vector<128xf32> to vector<1x128xf32>
    %cst_287 = arith.constant 0.000000e+00 : f32
    %cst_288 = arith.constant 1.000000e+30 : f32
    %1025 = arith.subf %cst_287, %cst_288 : f32
    %1026 = vector.broadcast %1025 : f32 to vector<16x128xf32>
    %1027 = arith.select %915, %5, %1026 : vector<16x128xi1>, vector<16x128xf32>
    %cst_289 = arith.constant dense<0xFF800000> : vector<128xf32>
    %1028 = vector.multi_reduction <maximumf>, %1027, %cst_289 [0] : vector<16x128xf32> to vector<128xf32>
    %1029 = vector.shape_cast %1028 : vector<128xf32> to vector<1x128xf32>
    %1030 = tpu.concatenate %1019, %1024, %1029 in 0 : vector<1x128xf32>, vector<1x128xf32>, vector<1x128xf32> -> vector<3x128xf32>
    %cst_290 = arith.constant dense<0x7F800000> : vector<3xf32>
    %1031 = vector.multi_reduction <minimumf>, %1014, %cst_290 [1] : vector<3x128xf32> to vector<3xf32>
    %1032 = vector.shape_cast %1031 : vector<3xf32> to vector<3x1xf32>
    %cst_291 = arith.constant dense<0xFF800000> : vector<3xf32>
    %1033 = vector.multi_reduction <maximumf>, %1030, %cst_291 [1] : vector<3x128xf32> to vector<3xf32>
    %1034 = vector.shape_cast %1033 : vector<3xf32> to vector<3x1xf32>
    %1035 = vector.extract_strided_slice %1032 {offsets = [0, 0], sizes = [1, 1], strides = [1, 1]} : vector<3x1xf32> to vector<1x1xf32>
    %1036 = vector.extract_strided_slice %1032 {offsets = [1, 0], sizes = [1, 1], strides = [1, 1]} : vector<3x1xf32> to vector<1x1xf32>
    %1037 = vector.extract_strided_slice %1032 {offsets = [2, 0], sizes = [1, 1], strides = [1, 1]} : vector<3x1xf32> to vector<1x1xf32>
    %1038 = vector.extract_strided_slice %1034 {offsets = [0, 0], sizes = [1, 1], strides = [1, 1]} : vector<3x1xf32> to vector<1x1xf32>
    %1039 = vector.extract_strided_slice %1034 {offsets = [1, 0], sizes = [1, 1], strides = [1, 1]} : vector<3x1xf32> to vector<1x1xf32>
    %1040 = vector.extract_strided_slice %1034 {offsets = [2, 0], sizes = [1, 1], strides = [1, 1]} : vector<3x1xf32> to vector<1x1xf32>
    %1041 = arith.subf %1038, %1035 : vector<1x1xf32>
    %1042 = arith.subf %1039, %1036 : vector<1x1xf32>
    %1043 = arith.subf %1040, %1037 : vector<1x1xf32>
    %1044 = arith.addf %1035, %1038 : vector<1x1xf32>
    %cst_292 = arith.constant 5.000000e-01 : f32
    %1045 = vector.broadcast %cst_292 : f32 to vector<1x1xf32>
    %1046 = arith.mulf %1045, %1044 : vector<1x1xf32>
    %1047 = arith.addf %1036, %1039 : vector<1x1xf32>
    %cst_293 = arith.constant 5.000000e-01 : f32
    %1048 = vector.broadcast %cst_293 : f32 to vector<1x1xf32>
    %1049 = arith.mulf %1048, %1047 : vector<1x1xf32>
    %1050 = arith.mulf %989, %1046 : vector<1x1xf32>
    %1051 = arith.mulf %991, %1049 : vector<1x1xf32>
    %1052 = arith.subf %1050, %1051 : vector<1x1xf32>
    %1053 = arith.mulf %991, %1046 : vector<1x1xf32>
    %1054 = arith.mulf %989, %1049 : vector<1x1xf32>
    %1055 = arith.addf %1053, %1054 : vector<1x1xf32>
    %1056 = arith.addf %1037, %1040 : vector<1x1xf32>
    %cst_294 = arith.constant 5.000000e-01 : f32
    %1057 = vector.broadcast %cst_294 : f32 to vector<1x1xf32>
    %1058 = arith.mulf %1057, %1056 : vector<1x1xf32>
    %cst_295 = arith.constant 0.000000e+00 : f32
    %1059 = vector.broadcast %cst_295 : f32 to vector<1x128xf32>
    %c0_i32_296 = arith.constant 0 : i32
    %1060 = vector.broadcast %c0_i32_296 : i32 to vector<1x128xi32>
    %1061 = arith.cmpi eq, %10, %1060 : vector<1x128xi32>
    %1062 = vector.shape_cast %1052 : vector<1x1xf32> to vector<1x1xf32>
    %1063 = vector.broadcast %1062 : vector<1x1xf32> to vector<1x128xf32>
    %1064 = arith.select %1061, %1063, %1059 : vector<1x128xi1>, vector<1x128xf32>
    %c1_i32_297 = arith.constant 1 : i32
    %1065 = vector.broadcast %c1_i32_297 : i32 to vector<1x128xi32>
    %1066 = arith.cmpi eq, %10, %1065 : vector<1x128xi32>
    %1067 = vector.shape_cast %1055 : vector<1x1xf32> to vector<1x1xf32>
    %1068 = vector.broadcast %1067 : vector<1x1xf32> to vector<1x128xf32>
    %1069 = arith.select %1066, %1068, %1064 : vector<1x128xi1>, vector<1x128xf32>
    %c2_i32_298 = arith.constant 2 : i32
    %1070 = vector.broadcast %c2_i32_298 : i32 to vector<1x128xi32>
    %1071 = arith.cmpi eq, %10, %1070 : vector<1x128xi32>
    %1072 = vector.shape_cast %1058 : vector<1x1xf32> to vector<1x1xf32>
    %1073 = vector.broadcast %1072 : vector<1x1xf32> to vector<1x128xf32>
    %1074 = arith.select %1071, %1073, %1069 : vector<1x128xi1>, vector<1x128xf32>
    %c3_i32_299 = arith.constant 3 : i32
    %1075 = vector.broadcast %c3_i32_299 : i32 to vector<1x128xi32>
    %1076 = arith.cmpi eq, %10, %1075 : vector<1x128xi32>
    %1077 = vector.shape_cast %1041 : vector<1x1xf32> to vector<1x1xf32>
    %1078 = vector.broadcast %1077 : vector<1x1xf32> to vector<1x128xf32>
    %1079 = arith.select %1076, %1078, %1074 : vector<1x128xi1>, vector<1x128xf32>
    %c4_i32_300 = arith.constant 4 : i32
    %1080 = vector.broadcast %c4_i32_300 : i32 to vector<1x128xi32>
    %1081 = arith.cmpi eq, %10, %1080 : vector<1x128xi32>
    %1082 = vector.shape_cast %1042 : vector<1x1xf32> to vector<1x1xf32>
    %1083 = vector.broadcast %1082 : vector<1x1xf32> to vector<1x128xf32>
    %1084 = arith.select %1081, %1083, %1079 : vector<1x128xi1>, vector<1x128xf32>
    %c5_i32_301 = arith.constant 5 : i32
    %1085 = vector.broadcast %c5_i32_301 : i32 to vector<1x128xi32>
    %1086 = arith.cmpi eq, %10, %1085 : vector<1x128xi32>
    %1087 = vector.shape_cast %1043 : vector<1x1xf32> to vector<1x1xf32>
    %1088 = vector.broadcast %1087 : vector<1x1xf32> to vector<1x128xf32>
    %1089 = arith.select %1086, %1088, %1084 : vector<1x128xi1>, vector<1x128xf32>
    %c6_i32_302 = arith.constant 6 : i32
    %1090 = vector.broadcast %c6_i32_302 : i32 to vector<1x128xi32>
    %1091 = arith.cmpi eq, %10, %1090 : vector<1x128xi32>
    %1092 = vector.shape_cast %956 : vector<1x1xf32> to vector<1x1xf32>
    %1093 = vector.broadcast %1092 : vector<1x1xf32> to vector<1x128xf32>
    %1094 = arith.select %1091, %1093, %1089 : vector<1x128xi1>, vector<1x128xf32>
    %c7_i32_303 = arith.constant 7 : i32
    %1095 = vector.broadcast %c7_i32_303 : i32 to vector<1x128xi32>
    %1096 = arith.cmpi eq, %10, %1095 : vector<1x128xi32>
    %1097 = vector.shape_cast %959 : vector<1x1xf32> to vector<1x1xf32>
    %1098 = vector.broadcast %1097 : vector<1x1xf32> to vector<1x128xf32>
    %1099 = arith.select %1096, %1098, %1094 : vector<1x128xi1>, vector<1x128xf32>
    %c8_i32_304 = arith.constant 8 : i32
    %1100 = vector.broadcast %c8_i32_304 : i32 to vector<1x128xi32>
    %1101 = arith.cmpi eq, %10, %1100 : vector<1x128xi32>
    %1102 = vector.shape_cast %929 : vector<1x1xf32> to vector<1x1xf32>
    %1103 = vector.broadcast %1102 : vector<1x1xf32> to vector<1x128xf32>
    %1104 = arith.select %1101, %1103, %1099 : vector<1x128xi1>, vector<1x128xf32>
    %cst_305 = arith.constant 5.000000e-01 : f32
    %1105 = vector.broadcast %cst_305 : f32 to vector<1x1xf32>
    %1106 = arith.cmpf ogt, %929, %1105 : vector<1x1xf32>
    %cst_306 = arith.constant 0.000000e+00 : f32
    %1107 = vector.shape_cast %1106 : vector<1x1xi1> to vector<1x1xi1>
    %1108 = vector.broadcast %1107 : vector<1x1xi1> to vector<1x128xi1>
    %1109 = vector.broadcast %cst_306 : f32 to vector<1x128xf32>
    %1110 = arith.select %1108, %1104, %1109 : vector<1x128xi1>, vector<1x128xf32>
    %c4 = arith.constant 4 : index
    %c0_307 = arith.constant 0 : index
    %1111 = vector.load %arg6[%c4, %c0_307] : memref<8x128xf32, #tpu.memory_space<vmem>>, vector<1x128xf32>
    tpu.vector_store %arg6[%c4, %c0_307], %1110 {strides = array<i32>} : memref<8x128xf32, #tpu.memory_space<vmem>>, vector<1x128xf32>,
    %c20_i32 = arith.constant 20 : i32
    %1112 = arith.addi %11, %c20_i32 : i32
    %c0_i32_308 = arith.constant 0 : i32
    %1113 = arith.addi %1112, %c0_i32_308 : i32
    %1114 = arith.index_cast %1113 : i32 to index
    %1115 = memref.load %arg3[%1114] : memref<512xf32, #tpu.memory_space<smem>>
    %c1_i32_309 = arith.constant 1 : i32
    %1116 = arith.addi %1112, %c1_i32_309 : i32
    %1117 = arith.index_cast %1116 : i32 to index
    %1118 = memref.load %arg3[%1117] : memref<512xf32, #tpu.memory_space<smem>>
    %c2_i32_310 = arith.constant 2 : i32
    %1119 = arith.addi %1112, %c2_i32_310 : i32
    %1120 = arith.index_cast %1119 : i32 to index
    %1121 = memref.load %arg3[%1120] : memref<512xf32, #tpu.memory_space<smem>>
    %c3_i32_311 = arith.constant 3 : i32
    %1122 = arith.addi %1112, %c3_i32_311 : i32
    %1123 = arith.index_cast %1122 : i32 to index
    %1124 = memref.load %arg3[%1123] : memref<512xf32, #tpu.memory_space<smem>>
    %1125 = vector.broadcast %1124 : f32 to vector<16x128xf32>
    %1126 = arith.cmpf olt, %9, %1125 : vector<16x128xf32>
    %1127 = vector.broadcast %1118 : f32 to vector<16x128xf32>
    %1128 = arith.cmpf oge, %9, %1127 : vector<16x128xf32>
    %1129 = arith.andi %1126, %1128 : vector<16x128xi1>
    %1130 = vector.broadcast %1121 : f32 to vector<16x128xf32>
    %1131 = arith.cmpf olt, %7, %1130 : vector<16x128xf32>
    %1132 = arith.andi %1129, %1131 : vector<16x128xi1>
    %1133 = vector.broadcast %1115 : f32 to vector<16x128xf32>
    %1134 = arith.cmpf oge, %7, %1133 : vector<16x128xf32>
    %1135 = arith.andi %1132, %1134 : vector<16x128xi1>
    %1136 = arith.extui %1135 : vector<16x128xi1> to vector<16x128xi32>
    %1137 = arith.sitofp %1136 : vector<16x128xi32> to vector<16x128xf32>
    %1138 = arith.mulf %1137, %1 : vector<16x128xf32>
    %1139 = arith.mulf %1137, %3 : vector<16x128xf32>
    %cst_312 = arith.constant dense<0.000000e+00> : vector<128xf32>
    %1140 = vector.multi_reduction <add>, %1137, %cst_312 [0] : vector<16x128xf32> to vector<128xf32>
    %1141 = vector.shape_cast %1140 : vector<128xf32> to vector<1x128xf32>
    %cst_313 = arith.constant dense<0.000000e+00> : vector<128xf32>
    %1142 = vector.multi_reduction <add>, %1138, %cst_313 [0] : vector<16x128xf32> to vector<128xf32>
    %1143 = vector.shape_cast %1142 : vector<128xf32> to vector<1x128xf32>
    %cst_314 = arith.constant dense<0.000000e+00> : vector<128xf32>
    %1144 = vector.multi_reduction <add>, %1139, %cst_314 [0] : vector<16x128xf32> to vector<128xf32>
    %1145 = vector.shape_cast %1144 : vector<128xf32> to vector<1x128xf32>
    %1146 = tpu.concatenate %1141, %1143, %1145 in 0 : vector<1x128xf32>, vector<1x128xf32>, vector<1x128xf32> -> vector<3x128xf32>
    %cst_315 = arith.constant dense<0.000000e+00> : vector<3xf32>
    %1147 = vector.multi_reduction <add>, %1146, %cst_315 [1] : vector<3x128xf32> to vector<3xf32>
    %1148 = vector.shape_cast %1147 : vector<3xf32> to vector<3x1xf32>
    %1149 = vector.extract_strided_slice %1148 {offsets = [0, 0], sizes = [1, 1], strides = [1, 1]} : vector<3x1xf32> to vector<1x1xf32>
    %cst_316 = arith.constant 1.000000e+00 : f32
    %1150 = vector.broadcast %cst_316 : f32 to vector<1x1xf32>
    %1151 = arith.maximumf %1149, %1150 : vector<1x1xf32>
    %1152 = vector.extract_strided_slice %1148 {offsets = [1, 0], sizes = [1, 1], strides = [1, 1]} : vector<3x1xf32> to vector<1x1xf32>
    %1153 = arith.divf %1152, %1151 : vector<1x1xf32>
    %1154 = vector.extract_strided_slice %1148 {offsets = [2, 0], sizes = [1, 1], strides = [1, 1]} : vector<3x1xf32> to vector<1x1xf32>
    %1155 = arith.divf %1154, %1151 : vector<1x1xf32>
    %1156 = vector.broadcast %1153 : vector<1x1xf32> to vector<16x128xf32>
    %1157 = arith.subf %1, %1156 : vector<16x128xf32>
    %1158 = vector.broadcast %1155 : vector<1x1xf32> to vector<16x128xf32>
    %1159 = arith.subf %3, %1158 : vector<16x128xf32>
    %1160 = arith.mulf %1137, %1157 : vector<16x128xf32>
    %1161 = arith.mulf %1137, %1159 : vector<16x128xf32>
    %1162 = arith.mulf %1160, %1157 : vector<16x128xf32>
    %cst_317 = arith.constant dense<0.000000e+00> : vector<128xf32>
    %1163 = vector.multi_reduction <add>, %1162, %cst_317 [0] : vector<16x128xf32> to vector<128xf32>
    %1164 = vector.shape_cast %1163 : vector<128xf32> to vector<1x128xf32>
    %1165 = arith.mulf %1161, %1159 : vector<16x128xf32>
    %cst_318 = arith.constant dense<0.000000e+00> : vector<128xf32>
    %1166 = vector.multi_reduction <add>, %1165, %cst_318 [0] : vector<16x128xf32> to vector<128xf32>
    %1167 = vector.shape_cast %1166 : vector<128xf32> to vector<1x128xf32>
    %1168 = arith.mulf %1160, %1159 : vector<16x128xf32>
    %cst_319 = arith.constant dense<0.000000e+00> : vector<128xf32>
    %1169 = vector.multi_reduction <add>, %1168, %cst_319 [0] : vector<16x128xf32> to vector<128xf32>
    %1170 = vector.shape_cast %1169 : vector<128xf32> to vector<1x128xf32>
    %1171 = tpu.concatenate %1164, %1167, %1170 in 0 : vector<1x128xf32>, vector<1x128xf32>, vector<1x128xf32> -> vector<3x128xf32>
    %cst_320 = arith.constant dense<0.000000e+00> : vector<3xf32>
    %1172 = vector.multi_reduction <add>, %1171, %cst_320 [1] : vector<3x128xf32> to vector<3xf32>
    %1173 = vector.shape_cast %1172 : vector<3xf32> to vector<3x1xf32>
    %1174 = vector.extract_strided_slice %1173 {offsets = [0, 0], sizes = [1, 1], strides = [1, 1]} : vector<3x1xf32> to vector<1x1xf32>
    %1175 = vector.extract_strided_slice %1173 {offsets = [1, 0], sizes = [1, 1], strides = [1, 1]} : vector<3x1xf32> to vector<1x1xf32>
    %1176 = arith.subf %1174, %1175 : vector<1x1xf32>
    %1177 = vector.extract_strided_slice %1173 {offsets = [2, 0], sizes = [1, 1], strides = [1, 1]} : vector<3x1xf32> to vector<1x1xf32>
    %cst_321 = arith.constant 2.000000e+00 : f32
    %1178 = vector.broadcast %cst_321 : f32 to vector<1x1xf32>
    %1179 = arith.mulf %1178, %1177 : vector<1x1xf32>
    %1180 = arith.mulf %1176, %1176 : vector<1x1xf32>
    %1181 = arith.mulf %1179, %1179 : vector<1x1xf32>
    %1182 = arith.addf %1180, %1181 : vector<1x1xf32>
    %1183 = math.sqrt %1182 : vector<1x1xf32>
    %cst_322 = arith.constant 9.99999968E-21 : f32
    %1184 = vector.broadcast %cst_322 : f32 to vector<1x1xf32>
    %1185 = arith.maximumf %1183, %1184 : vector<1x1xf32>
    %1186 = arith.divf %1176, %1185 : vector<1x1xf32>
    %cst_323 = arith.constant 1.000000e+00 : f32
    %1187 = vector.broadcast %cst_323 : f32 to vector<1x1xf32>
    %1188 = arith.addf %1187, %1186 : vector<1x1xf32>
    %cst_324 = arith.constant 5.000000e-01 : f32
    %1189 = vector.broadcast %cst_324 : f32 to vector<1x1xf32>
    %1190 = arith.mulf %1189, %1188 : vector<1x1xf32>
    %cst_325 = arith.constant 0.000000e+00 : f32
    %1191 = vector.broadcast %cst_325 : f32 to vector<1x1xf32>
    %1192 = arith.maximumf %1190, %1191 : vector<1x1xf32>
    %1193 = math.sqrt %1192 : vector<1x1xf32>
    %cst_326 = arith.constant 1.000000e+00 : f32
    %1194 = vector.broadcast %cst_326 : f32 to vector<1x1xf32>
    %1195 = arith.subf %1194, %1186 : vector<1x1xf32>
    %cst_327 = arith.constant 5.000000e-01 : f32
    %1196 = vector.broadcast %cst_327 : f32 to vector<1x1xf32>
    %1197 = arith.mulf %1196, %1195 : vector<1x1xf32>
    %cst_328 = arith.constant 0.000000e+00 : f32
    %1198 = vector.broadcast %cst_328 : f32 to vector<1x1xf32>
    %1199 = arith.maximumf %1197, %1198 : vector<1x1xf32>
    %1200 = math.sqrt %1199 : vector<1x1xf32>
    %cst_329 = arith.constant 0.000000e+00 : f32
    %1201 = vector.broadcast %cst_329 : f32 to vector<1x1xf32>
    %1202 = arith.cmpf oge, %1179, %1201 : vector<1x1xf32>
    %cst_330 = arith.constant 0.000000e+00 : f32
    %1203 = vector.broadcast %cst_330 : f32 to vector<1x1xf32>
    %1204 = arith.subf %1203, %1200 : vector<1x1xf32>
    %1205 = arith.select %1202, %1200, %1204 : vector<1x1xi1>, vector<1x1xf32>
    %cst_331 = arith.constant 9.99999996E-13 : f32
    %1206 = vector.broadcast %cst_331 : f32 to vector<1x1xf32>
    %1207 = arith.cmpf olt, %1183, %1206 : vector<1x1xf32>
    %cst_332 = arith.constant 1.000000e+00 : f32
    %1208 = vector.broadcast %cst_332 : f32 to vector<1x1xf32>
    %1209 = arith.select %1207, %1208, %1193 : vector<1x1xi1>, vector<1x1xf32>
    %cst_333 = arith.constant 0.000000e+00 : f32
    %1210 = vector.broadcast %cst_333 : f32 to vector<1x1xf32>
    %1211 = arith.select %1207, %1210, %1205 : vector<1x1xi1>, vector<1x1xf32>
    %1212 = vector.broadcast %1209 : vector<1x1xf32> to vector<16x128xf32>
    %1213 = arith.mulf %1212, %1 : vector<16x128xf32>
    %1214 = vector.broadcast %1211 : vector<1x1xf32> to vector<16x128xf32>
    %1215 = arith.mulf %1214, %3 : vector<16x128xf32>
    %1216 = arith.addf %1213, %1215 : vector<16x128xf32>
    %1217 = vector.broadcast %1209 : vector<1x1xf32> to vector<16x128xf32>
    %1218 = arith.mulf %1217, %3 : vector<16x128xf32>
    %1219 = vector.broadcast %1211 : vector<1x1xf32> to vector<16x128xf32>
    %1220 = arith.mulf %1219, %1 : vector<16x128xf32>
    %1221 = arith.subf %1218, %1220 : vector<16x128xf32>
    %cst_334 = arith.constant 1.000000e+30 : f32
    %1222 = vector.broadcast %cst_334 : f32 to vector<16x128xf32>
    %1223 = arith.select %1135, %1216, %1222 : vector<16x128xi1>, vector<16x128xf32>
    %cst_335 = arith.constant dense<0x7F800000> : vector<128xf32>
    %1224 = vector.multi_reduction <minimumf>, %1223, %cst_335 [0] : vector<16x128xf32> to vector<128xf32>
    %1225 = vector.shape_cast %1224 : vector<128xf32> to vector<1x128xf32>
    %cst_336 = arith.constant 1.000000e+30 : f32
    %1226 = vector.broadcast %cst_336 : f32 to vector<16x128xf32>
    %1227 = arith.select %1135, %1221, %1226 : vector<16x128xi1>, vector<16x128xf32>
    %cst_337 = arith.constant dense<0x7F800000> : vector<128xf32>
    %1228 = vector.multi_reduction <minimumf>, %1227, %cst_337 [0] : vector<16x128xf32> to vector<128xf32>
    %1229 = vector.shape_cast %1228 : vector<128xf32> to vector<1x128xf32>
    %cst_338 = arith.constant 1.000000e+30 : f32
    %1230 = vector.broadcast %cst_338 : f32 to vector<16x128xf32>
    %1231 = arith.select %1135, %5, %1230 : vector<16x128xi1>, vector<16x128xf32>
    %cst_339 = arith.constant dense<0x7F800000> : vector<128xf32>
    %1232 = vector.multi_reduction <minimumf>, %1231, %cst_339 [0] : vector<16x128xf32> to vector<128xf32>
    %1233 = vector.shape_cast %1232 : vector<128xf32> to vector<1x128xf32>
    %1234 = tpu.concatenate %1225, %1229, %1233 in 0 : vector<1x128xf32>, vector<1x128xf32>, vector<1x128xf32> -> vector<3x128xf32>
    %cst_340 = arith.constant 0.000000e+00 : f32
    %cst_341 = arith.constant 1.000000e+30 : f32
    %1235 = arith.subf %cst_340, %cst_341 : f32
    %1236 = vector.broadcast %1235 : f32 to vector<16x128xf32>
    %1237 = arith.select %1135, %1216, %1236 : vector<16x128xi1>, vector<16x128xf32>
    %cst_342 = arith.constant dense<0xFF800000> : vector<128xf32>
    %1238 = vector.multi_reduction <maximumf>, %1237, %cst_342 [0] : vector<16x128xf32> to vector<128xf32>
    %1239 = vector.shape_cast %1238 : vector<128xf32> to vector<1x128xf32>
    %cst_343 = arith.constant 0.000000e+00 : f32
    %cst_344 = arith.constant 1.000000e+30 : f32
    %1240 = arith.subf %cst_343, %cst_344 : f32
    %1241 = vector.broadcast %1240 : f32 to vector<16x128xf32>
    %1242 = arith.select %1135, %1221, %1241 : vector<16x128xi1>, vector<16x128xf32>
    %cst_345 = arith.constant dense<0xFF800000> : vector<128xf32>
    %1243 = vector.multi_reduction <maximumf>, %1242, %cst_345 [0] : vector<16x128xf32> to vector<128xf32>
    %1244 = vector.shape_cast %1243 : vector<128xf32> to vector<1x128xf32>
    %cst_346 = arith.constant 0.000000e+00 : f32
    %cst_347 = arith.constant 1.000000e+30 : f32
    %1245 = arith.subf %cst_346, %cst_347 : f32
    %1246 = vector.broadcast %1245 : f32 to vector<16x128xf32>
    %1247 = arith.select %1135, %5, %1246 : vector<16x128xi1>, vector<16x128xf32>
    %cst_348 = arith.constant dense<0xFF800000> : vector<128xf32>
    %1248 = vector.multi_reduction <maximumf>, %1247, %cst_348 [0] : vector<16x128xf32> to vector<128xf32>
    %1249 = vector.shape_cast %1248 : vector<128xf32> to vector<1x128xf32>
    %1250 = tpu.concatenate %1239, %1244, %1249 in 0 : vector<1x128xf32>, vector<1x128xf32>, vector<1x128xf32> -> vector<3x128xf32>
    %cst_349 = arith.constant dense<0x7F800000> : vector<3xf32>
    %1251 = vector.multi_reduction <minimumf>, %1234, %cst_349 [1] : vector<3x128xf32> to vector<3xf32>
    %1252 = vector.shape_cast %1251 : vector<3xf32> to vector<3x1xf32>
    %cst_350 = arith.constant dense<0xFF800000> : vector<3xf32>
    %1253 = vector.multi_reduction <maximumf>, %1250, %cst_350 [1] : vector<3x128xf32> to vector<3xf32>
    %1254 = vector.shape_cast %1253 : vector<3xf32> to vector<3x1xf32>
    %1255 = vector.extract_strided_slice %1252 {offsets = [0, 0], sizes = [1, 1], strides = [1, 1]} : vector<3x1xf32> to vector<1x1xf32>
    %1256 = vector.extract_strided_slice %1252 {offsets = [1, 0], sizes = [1, 1], strides = [1, 1]} : vector<3x1xf32> to vector<1x1xf32>
    %1257 = vector.extract_strided_slice %1252 {offsets = [2, 0], sizes = [1, 1], strides = [1, 1]} : vector<3x1xf32> to vector<1x1xf32>
    %1258 = vector.extract_strided_slice %1254 {offsets = [0, 0], sizes = [1, 1], strides = [1, 1]} : vector<3x1xf32> to vector<1x1xf32>
    %1259 = vector.extract_strided_slice %1254 {offsets = [1, 0], sizes = [1, 1], strides = [1, 1]} : vector<3x1xf32> to vector<1x1xf32>
    %1260 = vector.extract_strided_slice %1254 {offsets = [2, 0], sizes = [1, 1], strides = [1, 1]} : vector<3x1xf32> to vector<1x1xf32>
    %1261 = arith.subf %1258, %1255 : vector<1x1xf32>
    %1262 = arith.subf %1259, %1256 : vector<1x1xf32>
    %1263 = arith.subf %1260, %1257 : vector<1x1xf32>
    %1264 = arith.addf %1255, %1258 : vector<1x1xf32>
    %cst_351 = arith.constant 5.000000e-01 : f32
    %1265 = vector.broadcast %cst_351 : f32 to vector<1x1xf32>
    %1266 = arith.mulf %1265, %1264 : vector<1x1xf32>
    %1267 = arith.addf %1256, %1259 : vector<1x1xf32>
    %cst_352 = arith.constant 5.000000e-01 : f32
    %1268 = vector.broadcast %cst_352 : f32 to vector<1x1xf32>
    %1269 = arith.mulf %1268, %1267 : vector<1x1xf32>
    %1270 = arith.mulf %1209, %1266 : vector<1x1xf32>
    %1271 = arith.mulf %1211, %1269 : vector<1x1xf32>
    %1272 = arith.subf %1270, %1271 : vector<1x1xf32>
    %1273 = arith.mulf %1211, %1266 : vector<1x1xf32>
    %1274 = arith.mulf %1209, %1269 : vector<1x1xf32>
    %1275 = arith.addf %1273, %1274 : vector<1x1xf32>
    %1276 = arith.addf %1257, %1260 : vector<1x1xf32>
    %cst_353 = arith.constant 5.000000e-01 : f32
    %1277 = vector.broadcast %cst_353 : f32 to vector<1x1xf32>
    %1278 = arith.mulf %1277, %1276 : vector<1x1xf32>
    %cst_354 = arith.constant 0.000000e+00 : f32
    %1279 = vector.broadcast %cst_354 : f32 to vector<1x128xf32>
    %c0_i32_355 = arith.constant 0 : i32
    %1280 = vector.broadcast %c0_i32_355 : i32 to vector<1x128xi32>
    %1281 = arith.cmpi eq, %10, %1280 : vector<1x128xi32>
    %1282 = vector.shape_cast %1272 : vector<1x1xf32> to vector<1x1xf32>
    %1283 = vector.broadcast %1282 : vector<1x1xf32> to vector<1x128xf32>
    %1284 = arith.select %1281, %1283, %1279 : vector<1x128xi1>, vector<1x128xf32>
    %c1_i32_356 = arith.constant 1 : i32
    %1285 = vector.broadcast %c1_i32_356 : i32 to vector<1x128xi32>
    %1286 = arith.cmpi eq, %10, %1285 : vector<1x128xi32>
    %1287 = vector.shape_cast %1275 : vector<1x1xf32> to vector<1x1xf32>
    %1288 = vector.broadcast %1287 : vector<1x1xf32> to vector<1x128xf32>
    %1289 = arith.select %1286, %1288, %1284 : vector<1x128xi1>, vector<1x128xf32>
    %c2_i32_357 = arith.constant 2 : i32
    %1290 = vector.broadcast %c2_i32_357 : i32 to vector<1x128xi32>
    %1291 = arith.cmpi eq, %10, %1290 : vector<1x128xi32>
    %1292 = vector.shape_cast %1278 : vector<1x1xf32> to vector<1x1xf32>
    %1293 = vector.broadcast %1292 : vector<1x1xf32> to vector<1x128xf32>
    %1294 = arith.select %1291, %1293, %1289 : vector<1x128xi1>, vector<1x128xf32>
    %c3_i32_358 = arith.constant 3 : i32
    %1295 = vector.broadcast %c3_i32_358 : i32 to vector<1x128xi32>
    %1296 = arith.cmpi eq, %10, %1295 : vector<1x128xi32>
    %1297 = vector.shape_cast %1261 : vector<1x1xf32> to vector<1x1xf32>
    %1298 = vector.broadcast %1297 : vector<1x1xf32> to vector<1x128xf32>
    %1299 = arith.select %1296, %1298, %1294 : vector<1x128xi1>, vector<1x128xf32>
    %c4_i32_359 = arith.constant 4 : i32
    %1300 = vector.broadcast %c4_i32_359 : i32 to vector<1x128xi32>
    %1301 = arith.cmpi eq, %10, %1300 : vector<1x128xi32>
    %1302 = vector.shape_cast %1262 : vector<1x1xf32> to vector<1x1xf32>
    %1303 = vector.broadcast %1302 : vector<1x1xf32> to vector<1x128xf32>
    %1304 = arith.select %1301, %1303, %1299 : vector<1x128xi1>, vector<1x128xf32>
    %c5_i32_360 = arith.constant 5 : i32
    %1305 = vector.broadcast %c5_i32_360 : i32 to vector<1x128xi32>
    %1306 = arith.cmpi eq, %10, %1305 : vector<1x128xi32>
    %1307 = vector.shape_cast %1263 : vector<1x1xf32> to vector<1x1xf32>
    %1308 = vector.broadcast %1307 : vector<1x1xf32> to vector<1x128xf32>
    %1309 = arith.select %1306, %1308, %1304 : vector<1x128xi1>, vector<1x128xf32>
    %c6_i32_361 = arith.constant 6 : i32
    %1310 = vector.broadcast %c6_i32_361 : i32 to vector<1x128xi32>
    %1311 = arith.cmpi eq, %10, %1310 : vector<1x128xi32>
    %1312 = vector.shape_cast %1176 : vector<1x1xf32> to vector<1x1xf32>
    %1313 = vector.broadcast %1312 : vector<1x1xf32> to vector<1x128xf32>
    %1314 = arith.select %1311, %1313, %1309 : vector<1x128xi1>, vector<1x128xf32>
    %c7_i32_362 = arith.constant 7 : i32
    %1315 = vector.broadcast %c7_i32_362 : i32 to vector<1x128xi32>
    %1316 = arith.cmpi eq, %10, %1315 : vector<1x128xi32>
    %1317 = vector.shape_cast %1179 : vector<1x1xf32> to vector<1x1xf32>
    %1318 = vector.broadcast %1317 : vector<1x1xf32> to vector<1x128xf32>
    %1319 = arith.select %1316, %1318, %1314 : vector<1x128xi1>, vector<1x128xf32>
    %c8_i32_363 = arith.constant 8 : i32
    %1320 = vector.broadcast %c8_i32_363 : i32 to vector<1x128xi32>
    %1321 = arith.cmpi eq, %10, %1320 : vector<1x128xi32>
    %1322 = vector.shape_cast %1149 : vector<1x1xf32> to vector<1x1xf32>
    %1323 = vector.broadcast %1322 : vector<1x1xf32> to vector<1x128xf32>
    %1324 = arith.select %1321, %1323, %1319 : vector<1x128xi1>, vector<1x128xf32>
    %cst_364 = arith.constant 5.000000e-01 : f32
    %1325 = vector.broadcast %cst_364 : f32 to vector<1x1xf32>
    %1326 = arith.cmpf ogt, %1149, %1325 : vector<1x1xf32>
    %cst_365 = arith.constant 0.000000e+00 : f32
    %1327 = vector.shape_cast %1326 : vector<1x1xi1> to vector<1x1xi1>
    %1328 = vector.broadcast %1327 : vector<1x1xi1> to vector<1x128xi1>
    %1329 = vector.broadcast %cst_365 : f32 to vector<1x128xf32>
    %1330 = arith.select %1328, %1324, %1329 : vector<1x128xi1>, vector<1x128xf32>
    %c5 = arith.constant 5 : index
    %c0_366 = arith.constant 0 : index
    %1331 = vector.load %arg6[%c5, %c0_366] : memref<8x128xf32, #tpu.memory_space<vmem>>, vector<1x128xf32>
    tpu.vector_store %arg6[%c5, %c0_366], %1330 {strides = array<i32>} : memref<8x128xf32, #tpu.memory_space<vmem>>, vector<1x128xf32>,
    %c24_i32 = arith.constant 24 : i32
    %1332 = arith.addi %11, %c24_i32 : i32
    %c0_i32_367 = arith.constant 0 : i32
    %1333 = arith.addi %1332, %c0_i32_367 : i32
    %1334 = arith.index_cast %1333 : i32 to index
    %1335 = memref.load %arg3[%1334] : memref<512xf32, #tpu.memory_space<smem>>
    %c1_i32_368 = arith.constant 1 : i32
    %1336 = arith.addi %1332, %c1_i32_368 : i32
    %1337 = arith.index_cast %1336 : i32 to index
    %1338 = memref.load %arg3[%1337] : memref<512xf32, #tpu.memory_space<smem>>
    %c2_i32_369 = arith.constant 2 : i32
    %1339 = arith.addi %1332, %c2_i32_369 : i32
    %1340 = arith.index_cast %1339 : i32 to index
    %1341 = memref.load %arg3[%1340] : memref<512xf32, #tpu.memory_space<smem>>
    %c3_i32_370 = arith.constant 3 : i32
    %1342 = arith.addi %1332, %c3_i32_370 : i32
    %1343 = arith.index_cast %1342 : i32 to index
    %1344 = memref.load %arg3[%1343] : memref<512xf32, #tpu.memory_space<smem>>
    %1345 = vector.broadcast %1344 : f32 to vector<16x128xf32>
    %1346 = arith.cmpf olt, %9, %1345 : vector<16x128xf32>
    %1347 = vector.broadcast %1338 : f32 to vector<16x128xf32>
    %1348 = arith.cmpf oge, %9, %1347 : vector<16x128xf32>
    %1349 = arith.andi %1346, %1348 : vector<16x128xi1>
    %1350 = vector.broadcast %1341 : f32 to vector<16x128xf32>
    %1351 = arith.cmpf olt, %7, %1350 : vector<16x128xf32>
    %1352 = arith.andi %1349, %1351 : vector<16x128xi1>
    %1353 = vector.broadcast %1335 : f32 to vector<16x128xf32>
    %1354 = arith.cmpf oge, %7, %1353 : vector<16x128xf32>
    %1355 = arith.andi %1352, %1354 : vector<16x128xi1>
    %1356 = arith.extui %1355 : vector<16x128xi1> to vector<16x128xi32>
    %1357 = arith.sitofp %1356 : vector<16x128xi32> to vector<16x128xf32>
    %1358 = arith.mulf %1357, %1 : vector<16x128xf32>
    %1359 = arith.mulf %1357, %3 : vector<16x128xf32>
    %cst_371 = arith.constant dense<0.000000e+00> : vector<128xf32>
    %1360 = vector.multi_reduction <add>, %1357, %cst_371 [0] : vector<16x128xf32> to vector<128xf32>
    %1361 = vector.shape_cast %1360 : vector<128xf32> to vector<1x128xf32>
    %cst_372 = arith.constant dense<0.000000e+00> : vector<128xf32>
    %1362 = vector.multi_reduction <add>, %1358, %cst_372 [0] : vector<16x128xf32> to vector<128xf32>
    %1363 = vector.shape_cast %1362 : vector<128xf32> to vector<1x128xf32>
    %cst_373 = arith.constant dense<0.000000e+00> : vector<128xf32>
    %1364 = vector.multi_reduction <add>, %1359, %cst_373 [0] : vector<16x128xf32> to vector<128xf32>
    %1365 = vector.shape_cast %1364 : vector<128xf32> to vector<1x128xf32>
    %1366 = tpu.concatenate %1361, %1363, %1365 in 0 : vector<1x128xf32>, vector<1x128xf32>, vector<1x128xf32> -> vector<3x128xf32>
    %cst_374 = arith.constant dense<0.000000e+00> : vector<3xf32>
    %1367 = vector.multi_reduction <add>, %1366, %cst_374 [1] : vector<3x128xf32> to vector<3xf32>
    %1368 = vector.shape_cast %1367 : vector<3xf32> to vector<3x1xf32>
    %1369 = vector.extract_strided_slice %1368 {offsets = [0, 0], sizes = [1, 1], strides = [1, 1]} : vector<3x1xf32> to vector<1x1xf32>
    %cst_375 = arith.constant 1.000000e+00 : f32
    %1370 = vector.broadcast %cst_375 : f32 to vector<1x1xf32>
    %1371 = arith.maximumf %1369, %1370 : vector<1x1xf32>
    %1372 = vector.extract_strided_slice %1368 {offsets = [1, 0], sizes = [1, 1], strides = [1, 1]} : vector<3x1xf32> to vector<1x1xf32>
    %1373 = arith.divf %1372, %1371 : vector<1x1xf32>
    %1374 = vector.extract_strided_slice %1368 {offsets = [2, 0], sizes = [1, 1], strides = [1, 1]} : vector<3x1xf32> to vector<1x1xf32>
    %1375 = arith.divf %1374, %1371 : vector<1x1xf32>
    %1376 = vector.broadcast %1373 : vector<1x1xf32> to vector<16x128xf32>
    %1377 = arith.subf %1, %1376 : vector<16x128xf32>
    %1378 = vector.broadcast %1375 : vector<1x1xf32> to vector<16x128xf32>
    %1379 = arith.subf %3, %1378 : vector<16x128xf32>
    %1380 = arith.mulf %1357, %1377 : vector<16x128xf32>
    %1381 = arith.mulf %1357, %1379 : vector<16x128xf32>
    %1382 = arith.mulf %1380, %1377 : vector<16x128xf32>
    %cst_376 = arith.constant dense<0.000000e+00> : vector<128xf32>
    %1383 = vector.multi_reduction <add>, %1382, %cst_376 [0] : vector<16x128xf32> to vector<128xf32>
    %1384 = vector.shape_cast %1383 : vector<128xf32> to vector<1x128xf32>
    %1385 = arith.mulf %1381, %1379 : vector<16x128xf32>
    %cst_377 = arith.constant dense<0.000000e+00> : vector<128xf32>
    %1386 = vector.multi_reduction <add>, %1385, %cst_377 [0] : vector<16x128xf32> to vector<128xf32>
    %1387 = vector.shape_cast %1386 : vector<128xf32> to vector<1x128xf32>
    %1388 = arith.mulf %1380, %1379 : vector<16x128xf32>
    %cst_378 = arith.constant dense<0.000000e+00> : vector<128xf32>
    %1389 = vector.multi_reduction <add>, %1388, %cst_378 [0] : vector<16x128xf32> to vector<128xf32>
    %1390 = vector.shape_cast %1389 : vector<128xf32> to vector<1x128xf32>
    %1391 = tpu.concatenate %1384, %1387, %1390 in 0 : vector<1x128xf32>, vector<1x128xf32>, vector<1x128xf32> -> vector<3x128xf32>
    %cst_379 = arith.constant dense<0.000000e+00> : vector<3xf32>
    %1392 = vector.multi_reduction <add>, %1391, %cst_379 [1] : vector<3x128xf32> to vector<3xf32>
    %1393 = vector.shape_cast %1392 : vector<3xf32> to vector<3x1xf32>
    %1394 = vector.extract_strided_slice %1393 {offsets = [0, 0], sizes = [1, 1], strides = [1, 1]} : vector<3x1xf32> to vector<1x1xf32>
    %1395 = vector.extract_strided_slice %1393 {offsets = [1, 0], sizes = [1, 1], strides = [1, 1]} : vector<3x1xf32> to vector<1x1xf32>
    %1396 = arith.subf %1394, %1395 : vector<1x1xf32>
    %1397 = vector.extract_strided_slice %1393 {offsets = [2, 0], sizes = [1, 1], strides = [1, 1]} : vector<3x1xf32> to vector<1x1xf32>
    %cst_380 = arith.constant 2.000000e+00 : f32
    %1398 = vector.broadcast %cst_380 : f32 to vector<1x1xf32>
    %1399 = arith.mulf %1398, %1397 : vector<1x1xf32>
    %1400 = arith.mulf %1396, %1396 : vector<1x1xf32>
    %1401 = arith.mulf %1399, %1399 : vector<1x1xf32>
    %1402 = arith.addf %1400, %1401 : vector<1x1xf32>
    %1403 = math.sqrt %1402 : vector<1x1xf32>
    %cst_381 = arith.constant 9.99999968E-21 : f32
    %1404 = vector.broadcast %cst_381 : f32 to vector<1x1xf32>
    %1405 = arith.maximumf %1403, %1404 : vector<1x1xf32>
    %1406 = arith.divf %1396, %1405 : vector<1x1xf32>
    %cst_382 = arith.constant 1.000000e+00 : f32
    %1407 = vector.broadcast %cst_382 : f32 to vector<1x1xf32>
    %1408 = arith.addf %1407, %1406 : vector<1x1xf32>
    %cst_383 = arith.constant 5.000000e-01 : f32
    %1409 = vector.broadcast %cst_383 : f32 to vector<1x1xf32>
    %1410 = arith.mulf %1409, %1408 : vector<1x1xf32>
    %cst_384 = arith.constant 0.000000e+00 : f32
    %1411 = vector.broadcast %cst_384 : f32 to vector<1x1xf32>
    %1412 = arith.maximumf %1410, %1411 : vector<1x1xf32>
    %1413 = math.sqrt %1412 : vector<1x1xf32>
    %cst_385 = arith.constant 1.000000e+00 : f32
    %1414 = vector.broadcast %cst_385 : f32 to vector<1x1xf32>
    %1415 = arith.subf %1414, %1406 : vector<1x1xf32>
    %cst_386 = arith.constant 5.000000e-01 : f32
    %1416 = vector.broadcast %cst_386 : f32 to vector<1x1xf32>
    %1417 = arith.mulf %1416, %1415 : vector<1x1xf32>
    %cst_387 = arith.constant 0.000000e+00 : f32
    %1418 = vector.broadcast %cst_387 : f32 to vector<1x1xf32>
    %1419 = arith.maximumf %1417, %1418 : vector<1x1xf32>
    %1420 = math.sqrt %1419 : vector<1x1xf32>
    %cst_388 = arith.constant 0.000000e+00 : f32
    %1421 = vector.broadcast %cst_388 : f32 to vector<1x1xf32>
    %1422 = arith.cmpf oge, %1399, %1421 : vector<1x1xf32>
    %cst_389 = arith.constant 0.000000e+00 : f32
    %1423 = vector.broadcast %cst_389 : f32 to vector<1x1xf32>
    %1424 = arith.subf %1423, %1420 : vector<1x1xf32>
    %1425 = arith.select %1422, %1420, %1424 : vector<1x1xi1>, vector<1x1xf32>
    %cst_390 = arith.constant 9.99999996E-13 : f32
    %1426 = vector.broadcast %cst_390 : f32 to vector<1x1xf32>
    %1427 = arith.cmpf olt, %1403, %1426 : vector<1x1xf32>
    %cst_391 = arith.constant 1.000000e+00 : f32
    %1428 = vector.broadcast %cst_391 : f32 to vector<1x1xf32>
    %1429 = arith.select %1427, %1428, %1413 : vector<1x1xi1>, vector<1x1xf32>
    %cst_392 = arith.constant 0.000000e+00 : f32
    %1430 = vector.broadcast %cst_392 : f32 to vector<1x1xf32>
    %1431 = arith.select %1427, %1430, %1425 : vector<1x1xi1>, vector<1x1xf32>
    %1432 = vector.broadcast %1429 : vector<1x1xf32> to vector<16x128xf32>
    %1433 = arith.mulf %1432, %1 : vector<16x128xf32>
    %1434 = vector.broadcast %1431 : vector<1x1xf32> to vector<16x128xf32>
    %1435 = arith.mulf %1434, %3 : vector<16x128xf32>
    %1436 = arith.addf %1433, %1435 : vector<16x128xf32>
    %1437 = vector.broadcast %1429 : vector<1x1xf32> to vector<16x128xf32>
    %1438 = arith.mulf %1437, %3 : vector<16x128xf32>
    %1439 = vector.broadcast %1431 : vector<1x1xf32> to vector<16x128xf32>
    %1440 = arith.mulf %1439, %1 : vector<16x128xf32>
    %1441 = arith.subf %1438, %1440 : vector<16x128xf32>
    %cst_393 = arith.constant 1.000000e+30 : f32
    %1442 = vector.broadcast %cst_393 : f32 to vector<16x128xf32>
    %1443 = arith.select %1355, %1436, %1442 : vector<16x128xi1>, vector<16x128xf32>
    %cst_394 = arith.constant dense<0x7F800000> : vector<128xf32>
    %1444 = vector.multi_reduction <minimumf>, %1443, %cst_394 [0] : vector<16x128xf32> to vector<128xf32>
    %1445 = vector.shape_cast %1444 : vector<128xf32> to vector<1x128xf32>
    %cst_395 = arith.constant 1.000000e+30 : f32
    %1446 = vector.broadcast %cst_395 : f32 to vector<16x128xf32>
    %1447 = arith.select %1355, %1441, %1446 : vector<16x128xi1>, vector<16x128xf32>
    %cst_396 = arith.constant dense<0x7F800000> : vector<128xf32>
    %1448 = vector.multi_reduction <minimumf>, %1447, %cst_396 [0] : vector<16x128xf32> to vector<128xf32>
    %1449 = vector.shape_cast %1448 : vector<128xf32> to vector<1x128xf32>
    %cst_397 = arith.constant 1.000000e+30 : f32
    %1450 = vector.broadcast %cst_397 : f32 to vector<16x128xf32>
    %1451 = arith.select %1355, %5, %1450 : vector<16x128xi1>, vector<16x128xf32>
    %cst_398 = arith.constant dense<0x7F800000> : vector<128xf32>
    %1452 = vector.multi_reduction <minimumf>, %1451, %cst_398 [0] : vector<16x128xf32> to vector<128xf32>
    %1453 = vector.shape_cast %1452 : vector<128xf32> to vector<1x128xf32>
    %1454 = tpu.concatenate %1445, %1449, %1453 in 0 : vector<1x128xf32>, vector<1x128xf32>, vector<1x128xf32> -> vector<3x128xf32>
    %cst_399 = arith.constant 0.000000e+00 : f32
    %cst_400 = arith.constant 1.000000e+30 : f32
    %1455 = arith.subf %cst_399, %cst_400 : f32
    %1456 = vector.broadcast %1455 : f32 to vector<16x128xf32>
    %1457 = arith.select %1355, %1436, %1456 : vector<16x128xi1>, vector<16x128xf32>
    %cst_401 = arith.constant dense<0xFF800000> : vector<128xf32>
    %1458 = vector.multi_reduction <maximumf>, %1457, %cst_401 [0] : vector<16x128xf32> to vector<128xf32>
    %1459 = vector.shape_cast %1458 : vector<128xf32> to vector<1x128xf32>
    %cst_402 = arith.constant 0.000000e+00 : f32
    %cst_403 = arith.constant 1.000000e+30 : f32
    %1460 = arith.subf %cst_402, %cst_403 : f32
    %1461 = vector.broadcast %1460 : f32 to vector<16x128xf32>
    %1462 = arith.select %1355, %1441, %1461 : vector<16x128xi1>, vector<16x128xf32>
    %cst_404 = arith.constant dense<0xFF800000> : vector<128xf32>
    %1463 = vector.multi_reduction <maximumf>, %1462, %cst_404 [0] : vector<16x128xf32> to vector<128xf32>
    %1464 = vector.shape_cast %1463 : vector<128xf32> to vector<1x128xf32>
    %cst_405 = arith.constant 0.000000e+00 : f32
    %cst_406 = arith.constant 1.000000e+30 : f32
    %1465 = arith.subf %cst_405, %cst_406 : f32
    %1466 = vector.broadcast %1465 : f32 to vector<16x128xf32>
    %1467 = arith.select %1355, %5, %1466 : vector<16x128xi1>, vector<16x128xf32>
    %cst_407 = arith.constant dense<0xFF800000> : vector<128xf32>
    %1468 = vector.multi_reduction <maximumf>, %1467, %cst_407 [0] : vector<16x128xf32> to vector<128xf32>
    %1469 = vector.shape_cast %1468 : vector<128xf32> to vector<1x128xf32>
    %1470 = tpu.concatenate %1459, %1464, %1469 in 0 : vector<1x128xf32>, vector<1x128xf32>, vector<1x128xf32> -> vector<3x128xf32>
    %cst_408 = arith.constant dense<0x7F800000> : vector<3xf32>
    %1471 = vector.multi_reduction <minimumf>, %1454, %cst_408 [1] : vector<3x128xf32> to vector<3xf32>
    %1472 = vector.shape_cast %1471 : vector<3xf32> to vector<3x1xf32>
    %cst_409 = arith.constant dense<0xFF800000> : vector<3xf32>
    %1473 = vector.multi_reduction <maximumf>, %1470, %cst_409 [1] : vector<3x128xf32> to vector<3xf32>
    %1474 = vector.shape_cast %1473 : vector<3xf32> to vector<3x1xf32>
    %1475 = vector.extract_strided_slice %1472 {offsets = [0, 0], sizes = [1, 1], strides = [1, 1]} : vector<3x1xf32> to vector<1x1xf32>
    %1476 = vector.extract_strided_slice %1472 {offsets = [1, 0], sizes = [1, 1], strides = [1, 1]} : vector<3x1xf32> to vector<1x1xf32>
    %1477 = vector.extract_strided_slice %1472 {offsets = [2, 0], sizes = [1, 1], strides = [1, 1]} : vector<3x1xf32> to vector<1x1xf32>
    %1478 = vector.extract_strided_slice %1474 {offsets = [0, 0], sizes = [1, 1], strides = [1, 1]} : vector<3x1xf32> to vector<1x1xf32>
    %1479 = vector.extract_strided_slice %1474 {offsets = [1, 0], sizes = [1, 1], strides = [1, 1]} : vector<3x1xf32> to vector<1x1xf32>
    %1480 = vector.extract_strided_slice %1474 {offsets = [2, 0], sizes = [1, 1], strides = [1, 1]} : vector<3x1xf32> to vector<1x1xf32>
    %1481 = arith.subf %1478, %1475 : vector<1x1xf32>
    %1482 = arith.subf %1479, %1476 : vector<1x1xf32>
    %1483 = arith.subf %1480, %1477 : vector<1x1xf32>
    %1484 = arith.addf %1475, %1478 : vector<1x1xf32>
    %cst_410 = arith.constant 5.000000e-01 : f32
    %1485 = vector.broadcast %cst_410 : f32 to vector<1x1xf32>
    %1486 = arith.mulf %1485, %1484 : vector<1x1xf32>
    %1487 = arith.addf %1476, %1479 : vector<1x1xf32>
    %cst_411 = arith.constant 5.000000e-01 : f32
    %1488 = vector.broadcast %cst_411 : f32 to vector<1x1xf32>
    %1489 = arith.mulf %1488, %1487 : vector<1x1xf32>
    %1490 = arith.mulf %1429, %1486 : vector<1x1xf32>
    %1491 = arith.mulf %1431, %1489 : vector<1x1xf32>
    %1492 = arith.subf %1490, %1491 : vector<1x1xf32>
    %1493 = arith.mulf %1431, %1486 : vector<1x1xf32>
    %1494 = arith.mulf %1429, %1489 : vector<1x1xf32>
    %1495 = arith.addf %1493, %1494 : vector<1x1xf32>
    %1496 = arith.addf %1477, %1480 : vector<1x1xf32>
    %cst_412 = arith.constant 5.000000e-01 : f32
    %1497 = vector.broadcast %cst_412 : f32 to vector<1x1xf32>
    %1498 = arith.mulf %1497, %1496 : vector<1x1xf32>
    %cst_413 = arith.constant 0.000000e+00 : f32
    %1499 = vector.broadcast %cst_413 : f32 to vector<1x128xf32>
    %c0_i32_414 = arith.constant 0 : i32
    %1500 = vector.broadcast %c0_i32_414 : i32 to vector<1x128xi32>
    %1501 = arith.cmpi eq, %10, %1500 : vector<1x128xi32>
    %1502 = vector.shape_cast %1492 : vector<1x1xf32> to vector<1x1xf32>
    %1503 = vector.broadcast %1502 : vector<1x1xf32> to vector<1x128xf32>
    %1504 = arith.select %1501, %1503, %1499 : vector<1x128xi1>, vector<1x128xf32>
    %c1_i32_415 = arith.constant 1 : i32
    %1505 = vector.broadcast %c1_i32_415 : i32 to vector<1x128xi32>
    %1506 = arith.cmpi eq, %10, %1505 : vector<1x128xi32>
    %1507 = vector.shape_cast %1495 : vector<1x1xf32> to vector<1x1xf32>
    %1508 = vector.broadcast %1507 : vector<1x1xf32> to vector<1x128xf32>
    %1509 = arith.select %1506, %1508, %1504 : vector<1x128xi1>, vector<1x128xf32>
    %c2_i32_416 = arith.constant 2 : i32
    %1510 = vector.broadcast %c2_i32_416 : i32 to vector<1x128xi32>
    %1511 = arith.cmpi eq, %10, %1510 : vector<1x128xi32>
    %1512 = vector.shape_cast %1498 : vector<1x1xf32> to vector<1x1xf32>
    %1513 = vector.broadcast %1512 : vector<1x1xf32> to vector<1x128xf32>
    %1514 = arith.select %1511, %1513, %1509 : vector<1x128xi1>, vector<1x128xf32>
    %c3_i32_417 = arith.constant 3 : i32
    %1515 = vector.broadcast %c3_i32_417 : i32 to vector<1x128xi32>
    %1516 = arith.cmpi eq, %10, %1515 : vector<1x128xi32>
    %1517 = vector.shape_cast %1481 : vector<1x1xf32> to vector<1x1xf32>
    %1518 = vector.broadcast %1517 : vector<1x1xf32> to vector<1x128xf32>
    %1519 = arith.select %1516, %1518, %1514 : vector<1x128xi1>, vector<1x128xf32>
    %c4_i32_418 = arith.constant 4 : i32
    %1520 = vector.broadcast %c4_i32_418 : i32 to vector<1x128xi32>
    %1521 = arith.cmpi eq, %10, %1520 : vector<1x128xi32>
    %1522 = vector.shape_cast %1482 : vector<1x1xf32> to vector<1x1xf32>
    %1523 = vector.broadcast %1522 : vector<1x1xf32> to vector<1x128xf32>
    %1524 = arith.select %1521, %1523, %1519 : vector<1x128xi1>, vector<1x128xf32>
    %c5_i32_419 = arith.constant 5 : i32
    %1525 = vector.broadcast %c5_i32_419 : i32 to vector<1x128xi32>
    %1526 = arith.cmpi eq, %10, %1525 : vector<1x128xi32>
    %1527 = vector.shape_cast %1483 : vector<1x1xf32> to vector<1x1xf32>
    %1528 = vector.broadcast %1527 : vector<1x1xf32> to vector<1x128xf32>
    %1529 = arith.select %1526, %1528, %1524 : vector<1x128xi1>, vector<1x128xf32>
    %c6_i32_420 = arith.constant 6 : i32
    %1530 = vector.broadcast %c6_i32_420 : i32 to vector<1x128xi32>
    %1531 = arith.cmpi eq, %10, %1530 : vector<1x128xi32>
    %1532 = vector.shape_cast %1396 : vector<1x1xf32> to vector<1x1xf32>
    %1533 = vector.broadcast %1532 : vector<1x1xf32> to vector<1x128xf32>
    %1534 = arith.select %1531, %1533, %1529 : vector<1x128xi1>, vector<1x128xf32>
    %c7_i32_421 = arith.constant 7 : i32
    %1535 = vector.broadcast %c7_i32_421 : i32 to vector<1x128xi32>
    %1536 = arith.cmpi eq, %10, %1535 : vector<1x128xi32>
    %1537 = vector.shape_cast %1399 : vector<1x1xf32> to vector<1x1xf32>
    %1538 = vector.broadcast %1537 : vector<1x1xf32> to vector<1x128xf32>
    %1539 = arith.select %1536, %1538, %1534 : vector<1x128xi1>, vector<1x128xf32>
    %c8_i32_422 = arith.constant 8 : i32
    %1540 = vector.broadcast %c8_i32_422 : i32 to vector<1x128xi32>
    %1541 = arith.cmpi eq, %10, %1540 : vector<1x128xi32>
    %1542 = vector.shape_cast %1369 : vector<1x1xf32> to vector<1x1xf32>
    %1543 = vector.broadcast %1542 : vector<1x1xf32> to vector<1x128xf32>
    %1544 = arith.select %1541, %1543, %1539 : vector<1x128xi1>, vector<1x128xf32>
    %cst_423 = arith.constant 5.000000e-01 : f32
    %1545 = vector.broadcast %cst_423 : f32 to vector<1x1xf32>
    %1546 = arith.cmpf ogt, %1369, %1545 : vector<1x1xf32>
    %cst_424 = arith.constant 0.000000e+00 : f32
    %1547 = vector.shape_cast %1546 : vector<1x1xi1> to vector<1x1xi1>
    %1548 = vector.broadcast %1547 : vector<1x1xi1> to vector<1x128xi1>
    %1549 = vector.broadcast %cst_424 : f32 to vector<1x128xf32>
    %1550 = arith.select %1548, %1544, %1549 : vector<1x128xi1>, vector<1x128xf32>
    %c6 = arith.constant 6 : index
    %c0_425 = arith.constant 0 : index
    %1551 = vector.load %arg6[%c6, %c0_425] : memref<8x128xf32, #tpu.memory_space<vmem>>, vector<1x128xf32>
    tpu.vector_store %arg6[%c6, %c0_425], %1550 {strides = array<i32>} : memref<8x128xf32, #tpu.memory_space<vmem>>, vector<1x128xf32>,
    %c28_i32 = arith.constant 28 : i32
    %1552 = arith.addi %11, %c28_i32 : i32
    %c0_i32_426 = arith.constant 0 : i32
    %1553 = arith.addi %1552, %c0_i32_426 : i32
    %1554 = arith.index_cast %1553 : i32 to index
    %1555 = memref.load %arg3[%1554] : memref<512xf32, #tpu.memory_space<smem>>
    %c1_i32_427 = arith.constant 1 : i32
    %1556 = arith.addi %1552, %c1_i32_427 : i32
    %1557 = arith.index_cast %1556 : i32 to index
    %1558 = memref.load %arg3[%1557] : memref<512xf32, #tpu.memory_space<smem>>
    %c2_i32_428 = arith.constant 2 : i32
    %1559 = arith.addi %1552, %c2_i32_428 : i32
    %1560 = arith.index_cast %1559 : i32 to index
    %1561 = memref.load %arg3[%1560] : memref<512xf32, #tpu.memory_space<smem>>
    %c3_i32_429 = arith.constant 3 : i32
    %1562 = arith.addi %1552, %c3_i32_429 : i32
    %1563 = arith.index_cast %1562 : i32 to index
    %1564 = memref.load %arg3[%1563] : memref<512xf32, #tpu.memory_space<smem>>
    %1565 = vector.broadcast %1564 : f32 to vector<16x128xf32>
    %1566 = arith.cmpf olt, %9, %1565 : vector<16x128xf32>
    %1567 = vector.broadcast %1558 : f32 to vector<16x128xf32>
    %1568 = arith.cmpf oge, %9, %1567 : vector<16x128xf32>
    %1569 = arith.andi %1566, %1568 : vector<16x128xi1>
    %1570 = vector.broadcast %1561 : f32 to vector<16x128xf32>
    %1571 = arith.cmpf olt, %7, %1570 : vector<16x128xf32>
    %1572 = arith.andi %1569, %1571 : vector<16x128xi1>
    %1573 = vector.broadcast %1555 : f32 to vector<16x128xf32>
    %1574 = arith.cmpf oge, %7, %1573 : vector<16x128xf32>
    %1575 = arith.andi %1572, %1574 : vector<16x128xi1>
    %1576 = arith.extui %1575 : vector<16x128xi1> to vector<16x128xi32>
    %1577 = arith.sitofp %1576 : vector<16x128xi32> to vector<16x128xf32>
    %1578 = arith.mulf %1577, %1 : vector<16x128xf32>
    %1579 = arith.mulf %1577, %3 : vector<16x128xf32>
    %cst_430 = arith.constant dense<0.000000e+00> : vector<128xf32>
    %1580 = vector.multi_reduction <add>, %1577, %cst_430 [0] : vector<16x128xf32> to vector<128xf32>
    %1581 = vector.shape_cast %1580 : vector<128xf32> to vector<1x128xf32>
    %cst_431 = arith.constant dense<0.000000e+00> : vector<128xf32>
    %1582 = vector.multi_reduction <add>, %1578, %cst_431 [0] : vector<16x128xf32> to vector<128xf32>
    %1583 = vector.shape_cast %1582 : vector<128xf32> to vector<1x128xf32>
    %cst_432 = arith.constant dense<0.000000e+00> : vector<128xf32>
    %1584 = vector.multi_reduction <add>, %1579, %cst_432 [0] : vector<16x128xf32> to vector<128xf32>
    %1585 = vector.shape_cast %1584 : vector<128xf32> to vector<1x128xf32>
    %1586 = tpu.concatenate %1581, %1583, %1585 in 0 : vector<1x128xf32>, vector<1x128xf32>, vector<1x128xf32> -> vector<3x128xf32>
    %cst_433 = arith.constant dense<0.000000e+00> : vector<3xf32>
    %1587 = vector.multi_reduction <add>, %1586, %cst_433 [1] : vector<3x128xf32> to vector<3xf32>
    %1588 = vector.shape_cast %1587 : vector<3xf32> to vector<3x1xf32>
    %1589 = vector.extract_strided_slice %1588 {offsets = [0, 0], sizes = [1, 1], strides = [1, 1]} : vector<3x1xf32> to vector<1x1xf32>
    %cst_434 = arith.constant 1.000000e+00 : f32
    %1590 = vector.broadcast %cst_434 : f32 to vector<1x1xf32>
    %1591 = arith.maximumf %1589, %1590 : vector<1x1xf32>
    %1592 = vector.extract_strided_slice %1588 {offsets = [1, 0], sizes = [1, 1], strides = [1, 1]} : vector<3x1xf32> to vector<1x1xf32>
    %1593 = arith.divf %1592, %1591 : vector<1x1xf32>
    %1594 = vector.extract_strided_slice %1588 {offsets = [2, 0], sizes = [1, 1], strides = [1, 1]} : vector<3x1xf32> to vector<1x1xf32>
    %1595 = arith.divf %1594, %1591 : vector<1x1xf32>
    %1596 = vector.broadcast %1593 : vector<1x1xf32> to vector<16x128xf32>
    %1597 = arith.subf %1, %1596 : vector<16x128xf32>
    %1598 = vector.broadcast %1595 : vector<1x1xf32> to vector<16x128xf32>
    %1599 = arith.subf %3, %1598 : vector<16x128xf32>
    %1600 = arith.mulf %1577, %1597 : vector<16x128xf32>
    %1601 = arith.mulf %1577, %1599 : vector<16x128xf32>
    %1602 = arith.mulf %1600, %1597 : vector<16x128xf32>
    %cst_435 = arith.constant dense<0.000000e+00> : vector<128xf32>
    %1603 = vector.multi_reduction <add>, %1602, %cst_435 [0] : vector<16x128xf32> to vector<128xf32>
    %1604 = vector.shape_cast %1603 : vector<128xf32> to vector<1x128xf32>
    %1605 = arith.mulf %1601, %1599 : vector<16x128xf32>
    %cst_436 = arith.constant dense<0.000000e+00> : vector<128xf32>
    %1606 = vector.multi_reduction <add>, %1605, %cst_436 [0] : vector<16x128xf32> to vector<128xf32>
    %1607 = vector.shape_cast %1606 : vector<128xf32> to vector<1x128xf32>
    %1608 = arith.mulf %1600, %1599 : vector<16x128xf32>
    %cst_437 = arith.constant dense<0.000000e+00> : vector<128xf32>
    %1609 = vector.multi_reduction <add>, %1608, %cst_437 [0] : vector<16x128xf32> to vector<128xf32>
    %1610 = vector.shape_cast %1609 : vector<128xf32> to vector<1x128xf32>
    %1611 = tpu.concatenate %1604, %1607, %1610 in 0 : vector<1x128xf32>, vector<1x128xf32>, vector<1x128xf32> -> vector<3x128xf32>
    %cst_438 = arith.constant dense<0.000000e+00> : vector<3xf32>
    %1612 = vector.multi_reduction <add>, %1611, %cst_438 [1] : vector<3x128xf32> to vector<3xf32>
    %1613 = vector.shape_cast %1612 : vector<3xf32> to vector<3x1xf32>
    %1614 = vector.extract_strided_slice %1613 {offsets = [0, 0], sizes = [1, 1], strides = [1, 1]} : vector<3x1xf32> to vector<1x1xf32>
    %1615 = vector.extract_strided_slice %1613 {offsets = [1, 0], sizes = [1, 1], strides = [1, 1]} : vector<3x1xf32> to vector<1x1xf32>
    %1616 = arith.subf %1614, %1615 : vector<1x1xf32>
    %1617 = vector.extract_strided_slice %1613 {offsets = [2, 0], sizes = [1, 1], strides = [1, 1]} : vector<3x1xf32> to vector<1x1xf32>
    %cst_439 = arith.constant 2.000000e+00 : f32
    %1618 = vector.broadcast %cst_439 : f32 to vector<1x1xf32>
    %1619 = arith.mulf %1618, %1617 : vector<1x1xf32>
    %1620 = arith.mulf %1616, %1616 : vector<1x1xf32>
    %1621 = arith.mulf %1619, %1619 : vector<1x1xf32>
    %1622 = arith.addf %1620, %1621 : vector<1x1xf32>
    %1623 = math.sqrt %1622 : vector<1x1xf32>
    %cst_440 = arith.constant 9.99999968E-21 : f32
    %1624 = vector.broadcast %cst_440 : f32 to vector<1x1xf32>
    %1625 = arith.maximumf %1623, %1624 : vector<1x1xf32>
    %1626 = arith.divf %1616, %1625 : vector<1x1xf32>
    %cst_441 = arith.constant 1.000000e+00 : f32
    %1627 = vector.broadcast %cst_441 : f32 to vector<1x1xf32>
    %1628 = arith.addf %1627, %1626 : vector<1x1xf32>
    %cst_442 = arith.constant 5.000000e-01 : f32
    %1629 = vector.broadcast %cst_442 : f32 to vector<1x1xf32>
    %1630 = arith.mulf %1629, %1628 : vector<1x1xf32>
    %cst_443 = arith.constant 0.000000e+00 : f32
    %1631 = vector.broadcast %cst_443 : f32 to vector<1x1xf32>
    %1632 = arith.maximumf %1630, %1631 : vector<1x1xf32>
    %1633 = math.sqrt %1632 : vector<1x1xf32>
    %cst_444 = arith.constant 1.000000e+00 : f32
    %1634 = vector.broadcast %cst_444 : f32 to vector<1x1xf32>
    %1635 = arith.subf %1634, %1626 : vector<1x1xf32>
    %cst_445 = arith.constant 5.000000e-01 : f32
    %1636 = vector.broadcast %cst_445 : f32 to vector<1x1xf32>
    %1637 = arith.mulf %1636, %1635 : vector<1x1xf32>
    %cst_446 = arith.constant 0.000000e+00 : f32
    %1638 = vector.broadcast %cst_446 : f32 to vector<1x1xf32>
    %1639 = arith.maximumf %1637, %1638 : vector<1x1xf32>
    %1640 = math.sqrt %1639 : vector<1x1xf32>
    %cst_447 = arith.constant 0.000000e+00 : f32
    %1641 = vector.broadcast %cst_447 : f32 to vector<1x1xf32>
    %1642 = arith.cmpf oge, %1619, %1641 : vector<1x1xf32>
    %cst_448 = arith.constant 0.000000e+00 : f32
    %1643 = vector.broadcast %cst_448 : f32 to vector<1x1xf32>
    %1644 = arith.subf %1643, %1640 : vector<1x1xf32>
    %1645 = arith.select %1642, %1640, %1644 : vector<1x1xi1>, vector<1x1xf32>
    %cst_449 = arith.constant 9.99999996E-13 : f32
    %1646 = vector.broadcast %cst_449 : f32 to vector<1x1xf32>
    %1647 = arith.cmpf olt, %1623, %1646 : vector<1x1xf32>
    %cst_450 = arith.constant 1.000000e+00 : f32
    %1648 = vector.broadcast %cst_450 : f32 to vector<1x1xf32>
    %1649 = arith.select %1647, %1648, %1633 : vector<1x1xi1>, vector<1x1xf32>
    %cst_451 = arith.constant 0.000000e+00 : f32
    %1650 = vector.broadcast %cst_451 : f32 to vector<1x1xf32>
    %1651 = arith.select %1647, %1650, %1645 : vector<1x1xi1>, vector<1x1xf32>
    %1652 = vector.broadcast %1649 : vector<1x1xf32> to vector<16x128xf32>
    %1653 = arith.mulf %1652, %1 : vector<16x128xf32>
    %1654 = vector.broadcast %1651 : vector<1x1xf32> to vector<16x128xf32>
    %1655 = arith.mulf %1654, %3 : vector<16x128xf32>
    %1656 = arith.addf %1653, %1655 : vector<16x128xf32>
    %1657 = vector.broadcast %1649 : vector<1x1xf32> to vector<16x128xf32>
    %1658 = arith.mulf %1657, %3 : vector<16x128xf32>
    %1659 = vector.broadcast %1651 : vector<1x1xf32> to vector<16x128xf32>
    %1660 = arith.mulf %1659, %1 : vector<16x128xf32>
    %1661 = arith.subf %1658, %1660 : vector<16x128xf32>
    %cst_452 = arith.constant 1.000000e+30 : f32
    %1662 = vector.broadcast %cst_452 : f32 to vector<16x128xf32>
    %1663 = arith.select %1575, %1656, %1662 : vector<16x128xi1>, vector<16x128xf32>
    %cst_453 = arith.constant dense<0x7F800000> : vector<128xf32>
    %1664 = vector.multi_reduction <minimumf>, %1663, %cst_453 [0] : vector<16x128xf32> to vector<128xf32>
    %1665 = vector.shape_cast %1664 : vector<128xf32> to vector<1x128xf32>
    %cst_454 = arith.constant 1.000000e+30 : f32
    %1666 = vector.broadcast %cst_454 : f32 to vector<16x128xf32>
    %1667 = arith.select %1575, %1661, %1666 : vector<16x128xi1>, vector<16x128xf32>
    %cst_455 = arith.constant dense<0x7F800000> : vector<128xf32>
    %1668 = vector.multi_reduction <minimumf>, %1667, %cst_455 [0] : vector<16x128xf32> to vector<128xf32>
    %1669 = vector.shape_cast %1668 : vector<128xf32> to vector<1x128xf32>
    %cst_456 = arith.constant 1.000000e+30 : f32
    %1670 = vector.broadcast %cst_456 : f32 to vector<16x128xf32>
    %1671 = arith.select %1575, %5, %1670 : vector<16x128xi1>, vector<16x128xf32>
    %cst_457 = arith.constant dense<0x7F800000> : vector<128xf32>
    %1672 = vector.multi_reduction <minimumf>, %1671, %cst_457 [0] : vector<16x128xf32> to vector<128xf32>
    %1673 = vector.shape_cast %1672 : vector<128xf32> to vector<1x128xf32>
    %1674 = tpu.concatenate %1665, %1669, %1673 in 0 : vector<1x128xf32>, vector<1x128xf32>, vector<1x128xf32> -> vector<3x128xf32>
    %cst_458 = arith.constant 0.000000e+00 : f32
    %cst_459 = arith.constant 1.000000e+30 : f32
    %1675 = arith.subf %cst_458, %cst_459 : f32
    %1676 = vector.broadcast %1675 : f32 to vector<16x128xf32>
    %1677 = arith.select %1575, %1656, %1676 : vector<16x128xi1>, vector<16x128xf32>
    %cst_460 = arith.constant dense<0xFF800000> : vector<128xf32>
    %1678 = vector.multi_reduction <maximumf>, %1677, %cst_460 [0] : vector<16x128xf32> to vector<128xf32>
    %1679 = vector.shape_cast %1678 : vector<128xf32> to vector<1x128xf32>
    %cst_461 = arith.constant 0.000000e+00 : f32
    %cst_462 = arith.constant 1.000000e+30 : f32
    %1680 = arith.subf %cst_461, %cst_462 : f32
    %1681 = vector.broadcast %1680 : f32 to vector<16x128xf32>
    %1682 = arith.select %1575, %1661, %1681 : vector<16x128xi1>, vector<16x128xf32>
    %cst_463 = arith.constant dense<0xFF800000> : vector<128xf32>
    %1683 = vector.multi_reduction <maximumf>, %1682, %cst_463 [0] : vector<16x128xf32> to vector<128xf32>
    %1684 = vector.shape_cast %1683 : vector<128xf32> to vector<1x128xf32>
    %cst_464 = arith.constant 0.000000e+00 : f32
    %cst_465 = arith.constant 1.000000e+30 : f32
    %1685 = arith.subf %cst_464, %cst_465 : f32
    %1686 = vector.broadcast %1685 : f32 to vector<16x128xf32>
    %1687 = arith.select %1575, %5, %1686 : vector<16x128xi1>, vector<16x128xf32>
    %cst_466 = arith.constant dense<0xFF800000> : vector<128xf32>
    %1688 = vector.multi_reduction <maximumf>, %1687, %cst_466 [0] : vector<16x128xf32> to vector<128xf32>
    %1689 = vector.shape_cast %1688 : vector<128xf32> to vector<1x128xf32>
    %1690 = tpu.concatenate %1679, %1684, %1689 in 0 : vector<1x128xf32>, vector<1x128xf32>, vector<1x128xf32> -> vector<3x128xf32>
    %cst_467 = arith.constant dense<0x7F800000> : vector<3xf32>
    %1691 = vector.multi_reduction <minimumf>, %1674, %cst_467 [1] : vector<3x128xf32> to vector<3xf32>
    %1692 = vector.shape_cast %1691 : vector<3xf32> to vector<3x1xf32>
    %cst_468 = arith.constant dense<0xFF800000> : vector<3xf32>
    %1693 = vector.multi_reduction <maximumf>, %1690, %cst_468 [1] : vector<3x128xf32> to vector<3xf32>
    %1694 = vector.shape_cast %1693 : vector<3xf32> to vector<3x1xf32>
    %1695 = vector.extract_strided_slice %1692 {offsets = [0, 0], sizes = [1, 1], strides = [1, 1]} : vector<3x1xf32> to vector<1x1xf32>
    %1696 = vector.extract_strided_slice %1692 {offsets = [1, 0], sizes = [1, 1], strides = [1, 1]} : vector<3x1xf32> to vector<1x1xf32>
    %1697 = vector.extract_strided_slice %1692 {offsets = [2, 0], sizes = [1, 1], strides = [1, 1]} : vector<3x1xf32> to vector<1x1xf32>
    %1698 = vector.extract_strided_slice %1694 {offsets = [0, 0], sizes = [1, 1], strides = [1, 1]} : vector<3x1xf32> to vector<1x1xf32>
    %1699 = vector.extract_strided_slice %1694 {offsets = [1, 0], sizes = [1, 1], strides = [1, 1]} : vector<3x1xf32> to vector<1x1xf32>
    %1700 = vector.extract_strided_slice %1694 {offsets = [2, 0], sizes = [1, 1], strides = [1, 1]} : vector<3x1xf32> to vector<1x1xf32>
    %1701 = arith.subf %1698, %1695 : vector<1x1xf32>
    %1702 = arith.subf %1699, %1696 : vector<1x1xf32>
    %1703 = arith.subf %1700, %1697 : vector<1x1xf32>
    %1704 = arith.addf %1695, %1698 : vector<1x1xf32>
    %cst_469 = arith.constant 5.000000e-01 : f32
    %1705 = vector.broadcast %cst_469 : f32 to vector<1x1xf32>
    %1706 = arith.mulf %1705, %1704 : vector<1x1xf32>
    %1707 = arith.addf %1696, %1699 : vector<1x1xf32>
    %cst_470 = arith.constant 5.000000e-01 : f32
    %1708 = vector.broadcast %cst_470 : f32 to vector<1x1xf32>
    %1709 = arith.mulf %1708, %1707 : vector<1x1xf32>
    %1710 = arith.mulf %1649, %1706 : vector<1x1xf32>
    %1711 = arith.mulf %1651, %1709 : vector<1x1xf32>
    %1712 = arith.subf %1710, %1711 : vector<1x1xf32>
    %1713 = arith.mulf %1651, %1706 : vector<1x1xf32>
    %1714 = arith.mulf %1649, %1709 : vector<1x1xf32>
    %1715 = arith.addf %1713, %1714 : vector<1x1xf32>
    %1716 = arith.addf %1697, %1700 : vector<1x1xf32>
    %cst_471 = arith.constant 5.000000e-01 : f32
    %1717 = vector.broadcast %cst_471 : f32 to vector<1x1xf32>
    %1718 = arith.mulf %1717, %1716 : vector<1x1xf32>
    %cst_472 = arith.constant 0.000000e+00 : f32
    %1719 = vector.broadcast %cst_472 : f32 to vector<1x128xf32>
    %c0_i32_473 = arith.constant 0 : i32
    %1720 = vector.broadcast %c0_i32_473 : i32 to vector<1x128xi32>
    %1721 = arith.cmpi eq, %10, %1720 : vector<1x128xi32>
    %1722 = vector.shape_cast %1712 : vector<1x1xf32> to vector<1x1xf32>
    %1723 = vector.broadcast %1722 : vector<1x1xf32> to vector<1x128xf32>
    %1724 = arith.select %1721, %1723, %1719 : vector<1x128xi1>, vector<1x128xf32>
    %c1_i32_474 = arith.constant 1 : i32
    %1725 = vector.broadcast %c1_i32_474 : i32 to vector<1x128xi32>
    %1726 = arith.cmpi eq, %10, %1725 : vector<1x128xi32>
    %1727 = vector.shape_cast %1715 : vector<1x1xf32> to vector<1x1xf32>
    %1728 = vector.broadcast %1727 : vector<1x1xf32> to vector<1x128xf32>
    %1729 = arith.select %1726, %1728, %1724 : vector<1x128xi1>, vector<1x128xf32>
    %c2_i32_475 = arith.constant 2 : i32
    %1730 = vector.broadcast %c2_i32_475 : i32 to vector<1x128xi32>
    %1731 = arith.cmpi eq, %10, %1730 : vector<1x128xi32>
    %1732 = vector.shape_cast %1718 : vector<1x1xf32> to vector<1x1xf32>
    %1733 = vector.broadcast %1732 : vector<1x1xf32> to vector<1x128xf32>
    %1734 = arith.select %1731, %1733, %1729 : vector<1x128xi1>, vector<1x128xf32>
    %c3_i32_476 = arith.constant 3 : i32
    %1735 = vector.broadcast %c3_i32_476 : i32 to vector<1x128xi32>
    %1736 = arith.cmpi eq, %10, %1735 : vector<1x128xi32>
    %1737 = vector.shape_cast %1701 : vector<1x1xf32> to vector<1x1xf32>
    %1738 = vector.broadcast %1737 : vector<1x1xf32> to vector<1x128xf32>
    %1739 = arith.select %1736, %1738, %1734 : vector<1x128xi1>, vector<1x128xf32>
    %c4_i32_477 = arith.constant 4 : i32
    %1740 = vector.broadcast %c4_i32_477 : i32 to vector<1x128xi32>
    %1741 = arith.cmpi eq, %10, %1740 : vector<1x128xi32>
    %1742 = vector.shape_cast %1702 : vector<1x1xf32> to vector<1x1xf32>
    %1743 = vector.broadcast %1742 : vector<1x1xf32> to vector<1x128xf32>
    %1744 = arith.select %1741, %1743, %1739 : vector<1x128xi1>, vector<1x128xf32>
    %c5_i32_478 = arith.constant 5 : i32
    %1745 = vector.broadcast %c5_i32_478 : i32 to vector<1x128xi32>
    %1746 = arith.cmpi eq, %10, %1745 : vector<1x128xi32>
    %1747 = vector.shape_cast %1703 : vector<1x1xf32> to vector<1x1xf32>
    %1748 = vector.broadcast %1747 : vector<1x1xf32> to vector<1x128xf32>
    %1749 = arith.select %1746, %1748, %1744 : vector<1x128xi1>, vector<1x128xf32>
    %c6_i32_479 = arith.constant 6 : i32
    %1750 = vector.broadcast %c6_i32_479 : i32 to vector<1x128xi32>
    %1751 = arith.cmpi eq, %10, %1750 : vector<1x128xi32>
    %1752 = vector.shape_cast %1616 : vector<1x1xf32> to vector<1x1xf32>
    %1753 = vector.broadcast %1752 : vector<1x1xf32> to vector<1x128xf32>
    %1754 = arith.select %1751, %1753, %1749 : vector<1x128xi1>, vector<1x128xf32>
    %c7_i32_480 = arith.constant 7 : i32
    %1755 = vector.broadcast %c7_i32_480 : i32 to vector<1x128xi32>
    %1756 = arith.cmpi eq, %10, %1755 : vector<1x128xi32>
    %1757 = vector.shape_cast %1619 : vector<1x1xf32> to vector<1x1xf32>
    %1758 = vector.broadcast %1757 : vector<1x1xf32> to vector<1x128xf32>
    %1759 = arith.select %1756, %1758, %1754 : vector<1x128xi1>, vector<1x128xf32>
    %c8_i32_481 = arith.constant 8 : i32
    %1760 = vector.broadcast %c8_i32_481 : i32 to vector<1x128xi32>
    %1761 = arith.cmpi eq, %10, %1760 : vector<1x128xi32>
    %1762 = vector.shape_cast %1589 : vector<1x1xf32> to vector<1x1xf32>
    %1763 = vector.broadcast %1762 : vector<1x1xf32> to vector<1x128xf32>
    %1764 = arith.select %1761, %1763, %1759 : vector<1x128xi1>, vector<1x128xf32>
    %cst_482 = arith.constant 5.000000e-01 : f32
    %1765 = vector.broadcast %cst_482 : f32 to vector<1x1xf32>
    %1766 = arith.cmpf ogt, %1589, %1765 : vector<1x1xf32>
    %cst_483 = arith.constant 0.000000e+00 : f32
    %1767 = vector.shape_cast %1766 : vector<1x1xi1> to vector<1x1xi1>
    %1768 = vector.broadcast %1767 : vector<1x1xi1> to vector<1x128xi1>
    %1769 = vector.broadcast %cst_483 : f32 to vector<1x128xf32>
    %1770 = arith.select %1768, %1764, %1769 : vector<1x128xi1>, vector<1x128xf32>
    %c7 = arith.constant 7 : index
    %c0_484 = arith.constant 0 : index
    %1771 = vector.load %arg6[%c7, %c0_484] : memref<8x128xf32, #tpu.memory_space<vmem>>, vector<1x128xf32>
    tpu.vector_store %arg6[%c7, %c0_484], %1770 {strides = array<i32>} : memref<8x128xf32, #tpu.memory_space<vmem>>, vector<1x128xf32>,
    return
  }
  func.func @transform_0(%arg0: i32, %arg1: memref<16xi32, #tpu.memory_space<smem>>, %arg2: memref<16xi32, #tpu.memory_space<smem>>) -> i32 {
    %c0_i32 = arith.constant 0 : i32
    %c0_i32_0 = arith.constant 0 : i32
    return %c0_i32 : i32
  }
  func.func @transform_1(%arg0: i32, %arg1: memref<16xi32, #tpu.memory_space<smem>>, %arg2: memref<16xi32, #tpu.memory_space<smem>>) -> (i32, i32, i32, i32) {
    %0 = arith.index_cast %arg0 : i32 to index
    %1 = memref.load %arg2[%0] : memref<16xi32, #tpu.memory_space<smem>>
    %c0_i32 = arith.constant 0 : i32
    %c0_i32_0 = arith.constant 0 : i32
    %c0_i32_1 = arith.constant 0 : i32
    %c0_i32_2 = arith.constant 0 : i32
    return %1, %c0_i32, %c0_i32_0, %c0_i32_1 : i32, i32, i32, i32
  }
  func.func @transform_2(%arg0: i32, %arg1: memref<16xi32, #tpu.memory_space<smem>>, %arg2: memref<16xi32, #tpu.memory_space<smem>>) -> (i32, i32, i32, i32) {
    %0 = arith.index_cast %arg0 : i32 to index
    %1 = memref.load %arg1[%0] : memref<16xi32, #tpu.memory_space<smem>>
    %c0_i32 = arith.constant 0 : i32
    %c0_i32_0 = arith.constant 0 : i32
    %c0_i32_1 = arith.constant 0 : i32
    %c0_i32_2 = arith.constant 0 : i32
    return %1, %c0_i32, %c0_i32_0, %c0_i32_1 : i32, i32, i32, i32
  }
  func.func @transform_3(%arg0: i32, %arg1: memref<16xi32, #tpu.memory_space<smem>>, %arg2: memref<16xi32, #tpu.memory_space<smem>>) -> (i32, i32) {
    %c0_i32 = arith.constant 0 : i32
    %c0_i32_0 = arith.constant 0 : i32
    return %arg0, %c0_i32 : i32, i32
  }
}

</mosaic_0001>

<llo_original>
// kernel: _frustum_device.1
$region0: #{_frustum_device.1}
  #allocation0 [shape = 'u32[]', space=smem, size = 0x4, offset = 0x4, fixed_abs, tag = 'smem constant byte address 0x4 - core index']
  #allocation1 [shape = 'u32[72,128]{1,0:T(1,128)}', space=vmem, size = 0x9000, scoped, tag = 'internal scratch']
  #allocation2 [shape = 's32[1]{0}', space=sflag, size = 0x4, scoped, tag = 'scoped memory for _frustum_device.1']
  #allocation3 [shape = 'u8[512]{0}', space=smem, size = 0x200, scoped, tag = 'prefetched SMEM operand 0']
  #allocation4 [shape = 'u8[512]{0}', space=smem, size = 0x200, scoped, tag = 'prefetched SMEM operand 1']
  %s0 = inlined_call_operand.vmem [shape: s32[16], index: 0, kind: input, shape index: {}]
  %s1 = inlined_call_operand.vmem [shape: s32[16], index: 1, kind: input, shape index: {}]
  %s2 = inlined_call_operand.vmem [shape: f32[512], index: 2, kind: input, shape index: {}]
  %s3 = inlined_call_operand.vmem [shape: f32[2,3,16,128], index: 3, kind: input, shape index: {}]
  %s4 = inlined_call_operand.vmem [shape: f32[12,2,16,128], index: 4, kind: input, shape index: {}]
  %s5 = inlined_call_operand.hbm [shape: f32[128,128], index: 5, kind: output, shape index: {}]
  %s6 = sld [smem:[#allocation0]]
  $region49: #{_frustum_device.1} parent=0
    _
  %s8 = ssub.s32 1, %s6
  %s9 = scalar_select 0, %s8, %s6
  %s11 = sshll.u32 %s0, 4
  %s12 = int_to_ptr.vmem [resolvable:$true] %s11
  %14 = dma.vmem_to_smem %s12, 16, [#allocation3], [#allocation2]
  %s16 = sshll.u32 %s1, 4
  %s17 = int_to_ptr.vmem [resolvable:$true] %s16
  %19 = dma.vmem_to_smem %s17, 16, [#allocation4], [#allocation2]
  %21 = dma.done [#allocation2], 32
  %22 = sfence
  $region1: #{_frustum_device.1} parent=0
    #allocation5 [shape = 'u8[2048]{0}', space=smem, size = 0x800, scoped, tag = 'input window, operand 2, single buffered']
    #allocation6 [shape = 's32[2]{0}', space=sflag, size = 0x8, scoped, tag = 'scoped memory for _frustum_device.1']
    #allocation7 [shape = 's32[2]{0}', space=sflag, size = 0x8, scoped, tag = 'scoped memory for _frustum_device.1']
    #allocation8 [shape = 'u8[8192]{0}', space=vmem, size = 0x2000, scoped, tag = 'output window, operand 0']
    %23 = vsyncpa [#allocation7], 0
    %24 = vsyncpa [#allocation6], 0
    %s25 = scalar_lea.sflag [#allocation6], 1
    %26 = vsyncpa %s25, 0
    loop: start=0, step=1, limit=18
    $region2: #{_frustum_device.1} parent=1 // loop_pre_header
      _
    $region3: #{_frustum_device.1} parent=1 // loop_header
      %s28 = sphi 0, %s32
      %p29 = scmp.ge.s32.totalorder %s28, 18
      %s36 = sphi 0, %s36
      %s38 = sphi 0, %s36
      %s39 = sphi 0, %s38
      %s53 = sphi 0, %s39
      %s61 = sphi 0, %s63
      %s64 = sphi 0, %s61
      %s65 = sphi 0, %s64
      %s81 = sphi 0, %s65
      %s89 = sphi 0, %s91
      %s92 = sphi 0, %s89
      %s93 = sphi 0, %s92
      %s109 = sphi 0, %s93
      %s115 = sphi 0, %s117
      %s118 = sphi 0, %s115
      %s119 = sphi 0, %s118
      %s135 = sphi 0, %s119
    $region4: #{_frustum_device.1} parent=1 // loop_header_branch
      %31 = sbr.rel (%p29) target = $region8
    $region5: #{_frustum_device.1} parent=1 // loop_body
      %s33 = ssub.s32 %s28, 1
      %s34 = ssub.s32 %s28, 2
      %s35 = sadd.s32 %s28, 1
      %s37 = sadd.s32 %s36, 1
      %p40 = scmp.eq.s32.totalorder %s28, 15
      %p41 = scmp.ne.s32.totalorder %s36, %s38
      %p42 = scmp.eq.s32.totalorder %s28, 0
      %p43 = por %p41, %p42
      %p44 = scmp.ne.s32.totalorder %s36, %s38
      %p45 = scmp.eq.s32.totalorder %s33, 15
      %p46 = por %p44, %p45
      %p47 = scmp.ne.s32.totalorder %s38, %s39
      %p48 = scmp.eq.s32.totalorder %s33, 0
      %p49 = por %p47, %p48
      %p50 = scmp.ne.s32.totalorder %s38, %s39
      %p51 = scmp.eq.s32.totalorder %s34, 15
      %p52 = por %p50, %p51
      %p54 = scmp.ne.s32.totalorder %s39, %s53
      %p55 = scmp.eq.s32.totalorder %s34, 0
      %p56 = por %p54, %p55
      %s57 = sld [smem:[#allocation4 + %s28]]
      %s58 = sld [smem:[#allocation4 + %s35]]
      %s59 = ssub.s32 %s57, %s58
      %p60 = scmp.eq.s32.totalorder %s59, 0
      %s62 = sadd.s32 %s61, 1
      %s63 = scalar_select %p60, %s61, %s62
      %p66 = pneg %p60
      %p67 = scmp.eq.s32.totalorder %s28, 15
      %p68 = por %p66, %p67
      %p69 = scmp.ne.s32.totalorder %s61, %s64
      %p70 = scmp.eq.s32.totalorder %s28, 0
      %p71 = por %p69, %p70
      %p72 = scmp.ne.s32.totalorder %s61, %s64
      %p73 = scmp.eq.s32.totalorder %s33, 15
      %p74 = por %p72, %p73
      %p75 = scmp.ne.s32.totalorder %s64, %s65
      %p76 = scmp.eq.s32.totalorder %s33, 0
      %p77 = por %p75, %p76
      %p78 = scmp.ne.s32.totalorder %s64, %s65
      %p79 = scmp.eq.s32.totalorder %s34, 15
      %p80 = por %p78, %p79
      %p82 = scmp.ne.s32.totalorder %s65, %s81
      %p83 = scmp.eq.s32.totalorder %s34, 0
      %p84 = por %p82, %p83
      %s85 = sld [smem:[#allocation3 + %s28]]
      %s86 = sld [smem:[#allocation3 + %s35]]
      %s87 = ssub.s32 %s85, %s86
      %p88 = scmp.eq.s32.totalorder %s87, 0
      %s90 = sadd.s32 %s89, 1
      %s91 = scalar_select %p88, %s89, %s90
      %p94 = pneg %p88
      %p95 = scmp.eq.s32.totalorder %s28, 15
      %p96 = por %p94, %p95
      %p97 = scmp.ne.s32.totalorder %s89, %s92
      %p98 = scmp.eq.s32.totalorder %s28, 0
      %p99 = por %p97, %p98
      %p100 = scmp.ne.s32.totalorder %s89, %s92
      %p101 = scmp.eq.s32.totalorder %s33, 15
      %p102 = por %p100, %p101
      %p103 = scmp.ne.s32.totalorder %s92, %s93
      %p104 = scmp.eq.s32.totalorder %s33, 0
      %p105 = por %p103, %p104
      %p106 = scmp.ne.s32.totalorder %s92, %s93
      %p107 = scmp.eq.s32.totalorder %s34, 15
      %p108 = por %p106, %p107
      %p110 = scmp.ne.s32.totalorder %s93, %s109
      %p111 = scmp.eq.s32.totalorder %s34, 0
      %p112 = por %p110, %p111
      %s113 = ssub.s32 %s28, %s35
      %p114 = scmp.eq.s32.totalorder %s113, 0
      %s116 = sadd.s32 %s115, 1
      %s117 = scalar_select %p114, %s115, %s116
      %p120 = pneg %p114
      %p121 = scmp.eq.s32.totalorder %s28, 15
      %p122 = por %p120, %p121
      %p123 = scmp.ne.s32.totalorder %s115, %s118
      %p124 = scmp.eq.s32.totalorder %s28, 0
      %p125 = por %p123, %p124
      %p126 = scmp.ne.s32.totalorder %s115, %s118
      %p127 = scmp.eq.s32.totalorder %s33, 15
      %p128 = por %p126, %p127
      %p129 = scmp.ne.s32.totalorder %s118, %s119
      %p130 = scmp.eq.s32.totalorder %s33, 0
      %p131 = por %p129, %p130
      %p132 = scmp.ne.s32.totalorder %s118, %s119
      %p133 = scmp.eq.s32.totalorder %s34, 15
      %p134 = por %p132, %p133
      %p136 = scmp.ne.s32.totalorder %s119, %s135
      %p137 = scmp.eq.s32.totalorder %s34, 0
      %p138 = por %p136, %p137
      %p139 = scmp.le.s32.totalorder 1, %s28
      %p140 = scmp.lt.s32.totalorder %s28, 17
      %p141 = pnand %p139, %p140
      %p142 = pneg %p141
      // Predicated region
      $region9: #{_frustum_device.1} parent=5 // pred_check
        _
      $region10: #{_frustum_device.1} parent=5 // pred_check_branch
        %144 = sbr.rel (%p141) target = $region12
      $region11: #{_frustum_device.1} parent=5 // pred_region
        %s145 = ssub.s32 %s28, 1
        // Predicated region
        $region13: #{_frustum_device.1} parent=11 // pred_check
          %p146 = pneg %p49
        $region14: #{_frustum_device.1} parent=11 // pred_check_branch
          %148 = sbr.rel (%p146) target = $region16
        $region15: #{_frustum_device.1} parent=11 // pred_region
          %150 = vsyncadd [#allocation7], 0
          %s152 = sshll.u32 %s2, 4
          %s153 = int_to_ptr.vmem [resolvable:$true] %s152
          %155 = dma.vmem_to_smem %s153, 64, [#allocation5], [#allocation7]
        $region16: #{_frustum_device.1} parent=11 // pred_fallthru
          _
      $region12: #{_frustum_device.1} parent=5 // pred_fallthru
        _
      %p156 = scmp.lt.s32.totalorder %s28, 16
      // Predicated region
      $region17: #{_frustum_device.1} parent=5 // pred_check
        %p157 = pneg %p156
      $region18: #{_frustum_device.1} parent=5 // pred_check_branch
        %159 = sbr.rel (%p157) target = $region20
      $region19: #{_frustum_device.1} parent=5 // pred_region
        // Predicated region
        $region21: #{_frustum_device.1} parent=19 // pred_check
          %p160 = pneg %p71
        $region22: #{_frustum_device.1} parent=19 // pred_check_branch
          %162 = sbr.rel (%p160) target = $region24
        $region23: #{_frustum_device.1} parent=19 // pred_region
          %s163 = sld [smem:[#allocation4 + %s28]]
          %p164 = scmp.lt.s32.totalorder %s163, 1
          %s165 = scalar_select %p164, %s163, 1
          %s166 = smul.addr %s165, 6
          %s167 = smul.addr %s166, 8
          %s168 = scalar_lea.vmem %s3, %s167
          %s169 = sld [smem:[#allocation4 + %s28]]
        $region24: #{_frustum_device.1} parent=19 // pred_fallthru
          _
        // Predicated region
        $region25: #{_frustum_device.1} parent=19 // pred_check
          %p170 = pneg %p99
        $region26: #{_frustum_device.1} parent=19 // pred_check_branch
          %172 = sbr.rel (%p170) target = $region28
        $region27: #{_frustum_device.1} parent=19 // pred_region
          %s173 = sld [smem:[#allocation3 + %s28]]
          %p174 = scmp.lt.s32.totalorder %s173, 11
          %s175 = scalar_select %p174, %s173, 11
          %s176 = smul.addr %s175, 4
          %s177 = smul.addr %s176, 8
          %s178 = scalar_lea.vmem %s4, %s177
          %s179 = sld [smem:[#allocation3 + %s28]]
        $region28: #{_frustum_device.1} parent=19 // pred_fallthru
          _
      $region20: #{_frustum_device.1} parent=5 // pred_fallthru
        _
      %p180 = scmp.le.s32.totalorder 1, %s28
      %p181 = scmp.lt.s32.totalorder %s28, 17
      %p182 = pnand %p180, %p181
      %p183 = pneg %p182
      // Predicated region
      $region29: #{_frustum_device.1} parent=5 // pred_check
        _
      $region30: #{_frustum_device.1} parent=5 // pred_check_branch
        %185 = sbr.rel (%p182) target = $region32
      $region31: #{_frustum_device.1} parent=5 // pred_region
        %s186 = ssub.s32 %s28, 1
        // Predicated region
        $region33: #{_frustum_device.1} parent=31 // pred_check
          %p187 = pneg %p49
        $region34: #{_frustum_device.1} parent=31 // pred_check_branch
          %189 = sbr.rel (%p187) target = $region36
        $region35: #{_frustum_device.1} parent=31 // pred_region
          %191 = dma.done [#allocation7], 64
        $region36: #{_frustum_device.1} parent=31 // pred_fallthru
          _
        %192 = sfence
        %p193 = pneg %p49
        %p194 = pneg %p46
        %s195 = sld [smem:[#allocation4 + %s33]]
        %p196 = scmp.lt.s32.totalorder %s195, 1
        %s197 = scalar_select %p196, %s195, 1
        %s198 = smul.addr %s197, 6
        %s199 = smul.addr %s198, 8
        %s200 = scalar_lea.vmem %s3, %s199
        %p201 = pneg %p77
        %p202 = pneg %p74
        %s203 = sld [smem:[#allocation3 + %s33]]
        %p204 = scmp.lt.s32.totalorder %s203, 11
        %s205 = scalar_select %p204, %s203, 11
        %s206 = smul.addr %s205, 4
        %s207 = smul.addr %s206, 8
        %s208 = scalar_lea.vmem %s4, %s207
        %p209 = pneg %p105
        %p210 = pneg %p102
        %p211 = pneg %p131
        %p212 = pneg %p128
        %s213 = sand.u32 %s118, 1
        %s214 = scalar_lea.sflag [#allocation6], %s213
        %s215 = sand.u32 %s118, 1
        %s216 = smul.addr %s215, 8
        %s217 = scalar_lea.vmem [#allocation8], %s216
        %s218 = sld [smem:[#allocation4 + %s33]]
        %p219 = scmp.lt.s32.totalorder %s218, 1
        %s220 = scalar_select %p219, %s218, 1
        %s221 = smul.addr %s220, 6
        %s222 = smul.addr %s221, 8
        %s223 = scalar_lea.vmem %s3, %s222
        %s224 = sld [smem:[#allocation4 + %s33]]
        %s225 = sld [smem:[#allocation3 + %s33]]
        %p226 = scmp.lt.s32.totalorder %s225, 11
        %s227 = scalar_select %p226, %s225, 11
        %s228 = smul.addr %s227, 4
        %s229 = smul.addr %s228, 8
        %s230 = scalar_lea.vmem %s4, %s229
        %s231 = sld [smem:[#allocation3 + %s33]]
        %v232 = vld [vmem:[%s223] sm:$0xff]
        %v233 = vld [vmem:[%s223 + $0x8] sm:$0xff]
        %s234 = scalar_lea.vmem %s223, 16
        %v235 = vld [vmem:[%s234] sm:$0xff]
        %v236 = vld [vmem:[%s234 + $0x8] sm:$0xff]
        %s237 = scalar_lea.vmem %s223, 32
        %v238 = vld [vmem:[%s237] sm:$0xff]
        %v239 = vld [vmem:[%s237 + $0x8] sm:$0xff]
        %v240 = vld [vmem:[%s230] sm:$0xff]
        %v241 = vld [vmem:[%s230 + $0x8] sm:$0xff]
        %s242 = scalar_lea.vmem %s230, 16
        %v243 = vld [vmem:[%s242] sm:$0xff]
        %v244 = vld [vmem:[%s242 + $0x8] sm:$0xff]
        %v245 = vlaneseq
        %v246 = vand.u32 %v245, 127
        %s247 = smul.u32 %s33, 32
        %s248 = sld [smem:[#allocation5 + %s247]]
        %s249 = sadd.s32 %s247, 1
        %s250 = sld [smem:[#allocation5 + %s249]]
        %s251 = sadd.s32 %s247, 2
        %s252 = sld [smem:[#allocation5 + %s251]]
        %s253 = sadd.s32 %s247, 3
        %s254 = sld [smem:[#allocation5 + %s253]]
        %v255 = vstv %s254
        %vm256 = vcmp.lt.f32.partialorder %v243, %v255
        %vm257 = vcmp.lt.f32.partialorder %v244, %v255
        %v258 = vstv %s250
        %vm259 = vcmp.ge.f32.partialorder %v243, %v258
        %vm260 = vcmp.ge.f32.partialorder %v244, %v258
        %vm261 = vmand %vm256, %vm259
        %vm262 = vmand %vm257, %vm260
        %v263 = vstv %s252
        %vm264 = vcmp.lt.f32.partialorder %v240, %v263
        %vm265 = vcmp.lt.f32.partialorder %v241, %v263
        %vm266 = vmand %vm261, %vm264
        %vm267 = vmand %vm262, %vm265
        %v268 = vstv %s248
        %vm269 = vcmp.ge.f32.partialorder %v240, %v268
        %vm270 = vcmp.ge.f32.partialorder %v241, %v268
        %vm271 = vmand %vm266, %vm269
        %vm272 = vmand %vm267, %vm270
        %v273 = vsel %vm271, 1, 0
        %v274 = vsel %vm272, 1, 0
        %v275 = vcvt.s32.f32 %v273
        %v276 = vcvt.s32.f32 %v274
        %v277 = vmul.f32 %v275, %v232
        %v278 = vmul.f32 %v276, %v233
        %v279 = vmul.f32 %v275, %v235
        %v280 = vmul.f32 %v276, %v236
        %v281 = vadd.f32 %v275, %v276
        %v282 = vrot.slane %v281, 4
        %v283 = vadd.f32 %v281, %v282
        %v284 = vrot.slane %v283, 2
        %v285 = vadd.f32 %v283, %v284
        %v286 = vrot.slane %v285, 1
        %v287 = vadd.f32 %v285, %v286
        %v288 = vadd.f32 %v277, %v278
        %v289 = vrot.slane %v288, 4
        %v290 = vadd.f32 %v288, %v289
        %v291 = vrot.slane %v290, 2
        %v292 = vadd.f32 %v290, %v291
        %v293 = vrot.slane %v292, 1
        %v294 = vadd.f32 %v292, %v293
        %v295 = vadd.f32 %v279, %v280
        %v296 = vrot.slane %v295, 4
        %v297 = vadd.f32 %v295, %v296
        %v298 = vrot.slane %v297, 2
        %v299 = vadd.f32 %v297, %v298
        %v300 = vrot.slane %v299, 1
        %v301 = vadd.f32 %v299, %v300
        %vm302 = vcmask 1040384
        %v303 = vsel %vm302, %v287, %v294
        %vm304 = vcmask 1041408
        %v305 = vsel %vm304, %v303, %v301
        %vm306 = vcmask 1042432
        %v307 = vsel %vm306, %v305, 0.0
        %308 = vadd.xlane.f32.xlu0 %v307
        %v309 = vpop.xlane.xlu0 %308
        %v310 = vmax.f32 %v309, 1.0
        %v312 = vrot.slane %v310, 7
        %v314 = vrcp.pop %v312
        %v315 = vmul.f32 %v312, %v314
        %v316 = vsub.f32 1.0, %v315
        %v317 = vmul.f32 %v314, %v316
        %v318 = vadd.f32 %v314, %v317
        %vm319 = vweird.f32 %v312
        %vm320 = vweird.f32 %v314
        %vm321 = vmor %vm319, %vm320
        %v322 = vsel %vm321, %v314, %v318
        %v323 = vand.u32 2147483647, %v312
        %vm324 = vcmp.eq.f32.partialorder %v323, 8.507059e+37
        %v325 = vand.u32 %v312, 2147483648
        %v326 = vor.u32 1.1754944e-38, %v325
        %v327 = vsel %vm324, %v326, %v322
        %v328 = vmul.f32 %v309, %v327
        %v329 = vrot.slane %v310, 6
        %v331 = vrcp.pop %v329
        %v332 = vmul.f32 %v329, %v331
        %v333 = vsub.f32 1.0, %v332
        %v334 = vmul.f32 %v331, %v333
        %v335 = vadd.f32 %v331, %v334
        %vm336 = vweird.f32 %v329
        %vm337 = vweird.f32 %v331
        %vm338 = vmor %vm336, %vm337
        %v339 = vsel %vm338, %v331, %v335
        %v340 = vand.u32 2147483647, %v329
        %vm341 = vcmp.eq.f32.partialorder %v340, 8.507059e+37
        %v342 = vand.u32 %v329, 2147483648
        %v343 = vor.u32 1.1754944e-38, %v342
        %v344 = vsel %vm341, %v343, %v339
        %v345 = vmul.f32 %v309, %v344
        %v347 = vrot.slane %v328, 1
        %s348 = vtos %v347
        %v349 = vstv %s348
        %v351 = vsub.f32 %v232, %v349
        %v352 = vsub.f32 %v233, %v349
        %v354 = vrot.slane %v345, 2
        %s355 = vtos %v354
        %v356 = vstv %s355
        %v358 = vsub.f32 %v235, %v356
        %v359 = vsub.f32 %v236, %v356
        %v360 = vmul.f32 %v275, %v351
        %v361 = vmul.f32 %v276, %v352
        %v362 = vmul.f32 %v275, %v358
        %v363 = vmul.f32 %v276, %v359
        %v364 = vmul.f32 %v360, %v351
        %v365 = vmul.f32 %v361, %v352
        %v366 = vadd.f32 %v364, %v365
        %v367 = vrot.slane %v366, 4
        %v368 = vadd.f32 %v366, %v367
        %v369 = vrot.slane %v368, 2
        %v370 = vadd.f32 %v368, %v369
        %v371 = vrot.slane %v370, 1
        %v372 = vadd.f32 %v370, %v371
        %v373 = vmul.f32 %v362, %v358
        %v374 = vmul.f32 %v363, %v359
        %v375 = vadd.f32 %v373, %v374
        %v376 = vrot.slane %v375, 4
        %v377 = vadd.f32 %v375, %v376
        %v378 = vrot.slane %v377, 2
        %v379 = vadd.f32 %v377, %v378
        %v380 = vrot.slane %v379, 1
        %v381 = vadd.f32 %v379, %v380
        %v382 = vmul.f32 %v360, %v358
        %v383 = vmul.f32 %v361, %v359
        %v384 = vadd.f32 %v382, %v383
        %v385 = vrot.slane %v384, 4
        %v386 = vadd.f32 %v384, %v385
        %v387 = vrot.slane %v386, 2
        %v388 = vadd.f32 %v386, %v387
        %v389 = vrot.slane %v388, 1
        %v390 = vadd.f32 %v388, %v389
        %v391 = vsel %vm302, %v372, %v381
        %v392 = vsel %vm304, %v391, %v390
        %v393 = vsel %vm306, %v392, 0.0
        %394 = vadd.xlane.f32.xlu0 %v393
        %v395 = vpop.xlane.xlu0 %394
        %v397 = vrot.slane %v395, 1
        %v399 = vsub.f32 %v395, %v397
        %v400 = vmul.f32 %v395, 2.0
        %v401 = vmul.f32 %v399, %v399
        %v402 = vmul.f32 %v400, %v400
        %v404 = vrot.slane %v402, 2
        %v406 = vadd.f32 %v401, %v404
        %v407 = vrsqrt.pop %v406
        %v408 = vmul.f32 %v407, %v406
        %v409 = vmul.f32 %v408, %v407
        %v410 = vmul.f32 0.5, %v409
        %v411 = vsub.f32 1.5, %v410
        %v412 = vmul.f32 %v407, %v411
        %v413 = vmul.f32 %v406, %v412
        %vm414 = vcmp.eq.f32.partialorder %v406, inf
        %v415 = vsel %vm414, %v406, %v413
        %vm416 = vcmp.eq.f32.partialorder %v406, 0.0
        %v417 = vand.u32 %v406, 2147483648
        %v418 = vsel %vm416, %v417, %v415
        %v419 = vmax.f32 %v418, 1e-20
        %v420 = vrcp.pop %v419
        %v421 = vmul.f32 %v419, %v420
        %v422 = vsub.f32 1.0, %v421
        %v423 = vmul.f32 %v420, %v422
        %v424 = vadd.f32 %v420, %v423
        %vm425 = vweird.f32 %v419
        %vm426 = vweird.f32 %v420
        %vm427 = vmor %vm425, %vm426
        %v428 = vsel %vm427, %v420, %v424
        %v429 = vand.u32 2147483647, %v419
        %vm430 = vcmp.eq.f32.partialorder %v429, 8.507059e+37
        %v431 = vand.u32 %v419, 2147483648
        %v432 = vor.u32 1.1754944e-38, %v431
        %v433 = vsel %vm430, %v432, %v428
        %v434 = vmul.f32 %v399, %v433
        %v435 = vadd.f32 %v434, 1.0
        %v436 = vmul.f32 %v435, 0.5
        %v437 = vmax.f32 %v436, 0.0
        %v438 = vrsqrt.pop %v437
        %v439 = vmul.f32 %v438, %v437
        %v440 = vmul.f32 %v439, %v438
        %v441 = vmul.f32 0.5, %v440
        %v442 = vsub.f32 1.5, %v441
        %v443 = vmul.f32 %v438, %v442
        %v444 = vmul.f32 %v437, %v443
        %vm445 = vcmp.eq.f32.partialorder %v437, inf
        %v446 = vsel %vm445, %v437, %v444
        %vm447 = vcmp.eq.f32.partialorder %v437, 0.0
        %v448 = vand.u32 %v437, 2147483648
        %v449 = vsel %vm447, %v448, %v446
        %v450 = vsub.f32 1.0, %v434
        %v451 = vmul.f32 %v450, 0.5
        %v452 = vmax.f32 %v451, 0.0
        %v453 = vrsqrt.pop %v452
        %v454 = vmul.f32 %v453, %v452
        %v455 = vmul.f32 %v454, %v453
        %v456 = vmul.f32 0.5, %v455
        %v457 = vsub.f32 1.5, %v456
        %v458 = vmul.f32 %v453, %v457
        %v459 = vmul.f32 %v452, %v458
        %vm460 = vcmp.eq.f32.partialorder %v452, inf
        %v461 = vsel %vm460, %v452, %v459
        %vm462 = vcmp.eq.f32.partialorder %v452, 0.0
        %v463 = vand.u32 %v452, 2147483648
        %v464 = vsel %vm462, %v463, %v461
        %vm465 = vcmp.ge.f32.partialorder %v400, 0.0
        %v466 = vsub.f32 0.0, %v464
        %v468 = vrot.slane %v464, 6
        %v471 = vrot.slane %v466, 6
        %v473 = vsel %vm465, %v468, %v471
        %vm474 = vcmp.lt.f32.partialorder %v418, 1e-12
        %v475 = vsel %vm474, 1.0, %v449
        %v477 = vrot.slane %v473, 2
        %v479 = vsel %vm474, 0.0, %v477
        %s481 = vtos %v475
        %v482 = vstv %s481
        %v484 = vmul.f32 %v482, %v232
        %v485 = vmul.f32 %v482, %v233
        %s487 = vtos %v479
        %v488 = vstv %s487
        %v490 = vmul.f32 %v488, %v235
        %v491 = vmul.f32 %v488, %v236
        %v492 = vadd.f32 %v484, %v490
        %v493 = vadd.f32 %v485, %v491
        %v494 = vmul.f32 %v482, %v235
        %v495 = vmul.f32 %v482, %v236
        %v496 = vmul.f32 %v488, %v232
        %v497 = vmul.f32 %v488, %v233
        %v498 = vsub.f32 %v494, %v496
        %v499 = vsub.f32 %v495, %v497
        %v500 = vsel %vm271, %v492, 1e+30
        %v501 = vsel %vm272, %v493, 1e+30
        %v502 = vmin.f32 %v500, %v501
        %v503 = vrot.slane %v502, 4
        %v504 = vmin.f32 %v502, %v503
        %v505 = vrot.slane %v504, 2
        %v506 = vmin.f32 %v504, %v505
        %v507 = vrot.slane %v506, 1
        %v508 = vmin.f32 %v506, %v507
        %v509 = vsel %vm271, %v498, 1e+30
        %v510 = vsel %vm272, %v499, 1e+30
        %v511 = vmin.f32 %v509, %v510
        %v512 = vrot.slane %v511, 4
        %v513 = vmin.f32 %v511, %v512
        %v514 = vrot.slane %v513, 2
        %v515 = vmin.f32 %v513, %v514
        %v516 = vrot.slane %v515, 1
        %v517 = vmin.f32 %v515, %v516
        %v518 = vsel %vm271, %v238, 1e+30
        %v519 = vsel %vm272, %v239, 1e+30
        %v520 = vmin.f32 %v518, %v519
        %v521 = vrot.slane %v520, 4
        %v522 = vmin.f32 %v520, %v521
        %v523 = vrot.slane %v522, 2
        %v524 = vmin.f32 %v522, %v523
        %v525 = vrot.slane %v524, 1
        %v526 = vmin.f32 %v524, %v525
        %v527 = vsel %vm302, %v508, %v517
        %v528 = vsel %vm304, %v527, %v526
        %v529 = vsel %vm271, %v492, -1e+30
        %v530 = vsel %vm272, %v493, -1e+30
        %v531 = vmax.f32 %v529, %v530
        %v532 = vrot.slane %v531, 4
        %v533 = vmax.f32 %v531, %v532
        %v534 = vrot.slane %v533, 2
        %v535 = vmax.f32 %v533, %v534
        %v536 = vrot.slane %v535, 1
        %v537 = vmax.f32 %v535, %v536
        %v538 = vsel %vm271, %v498, -1e+30
        %v539 = vsel %vm272, %v499, -1e+30
        %v540 = vmax.f32 %v538, %v539
        %v541 = vrot.slane %v540, 4
        %v542 = vmax.f32 %v540, %v541
        %v543 = vrot.slane %v542, 2
        %v544 = vmax.f32 %v542, %v543
        %v545 = vrot.slane %v544, 1
        %v546 = vmax.f32 %v544, %v545
        %v547 = vsel %vm271, %v238, -1e+30
        %v548 = vsel %vm272, %v239, -1e+30
        %v549 = vmax.f32 %v547, %v548
        %v550 = vrot.slane %v549, 4
        %v551 = vmax.f32 %v549, %v550
        %v552 = vrot.slane %v551, 2
        %v553 = vmax.f32 %v551, %v552
        %v554 = vrot.slane %v553, 1
        %v555 = vmax.f32 %v553, %v554
        %v556 = vsel %vm302, %v537, %v546
        %v557 = vsel %vm304, %v556, %v555
        %v558 = vsel %vm306, %v528, inf
        %559 = vmin.xlane.f32.xlu0 %v558
        %v560 = vpop.xlane.xlu0 %559
        %v561 = vsel %vm306, %v557, -inf
        %562 = vmax.xlane.f32.xlu0 %v561
        %v563 = vpop.xlane.xlu0 %562
        %v564 = vsub.f32 %v563, %v560
        %v565 = vadd.f32 %v560, %v563
        %v566 = vmul.f32 %v565, 0.5
        %v567 = vmul.f32 %v475, %v566
        %v569 = vrot.slane %v566, 1
        %v571 = vmul.f32 %v479, %v569
        %v572 = vsub.f32 %v567, %v571
        %v573 = vmul.f32 %v479, %v566
        %v574 = vmul.f32 %v475, %v569
        %v575 = vadd.f32 %v573, %v574
        %vm576 = vcmp.eq.s32.totalorder %v246, 0
        %578 = vset.pattern.permute.xlu0 0
        %579 = vperm.xlu0 %578, %v572
        %v580 = vpop.permute.xlu0 %579
        %v582 = vsel %vm576, %v580, 0.0
        %vm583 = vcmp.eq.s32.totalorder %v246, 1
        %585 = vset.pattern.permute.xlu0 0
        %586 = vperm.xlu0 %585, %v575
        %v587 = vpop.permute.xlu0 %586
        %v589 = vsel %vm583, %v587, %v582
        %vm590 = vcmp.eq.s32.totalorder %v246, 2
        %v592 = vrot.slane %v589, 6
        %v594 = vsel %vm590, %v566, %v592
        %vm595 = vcmp.eq.s32.totalorder %v246, 3
        %v597 = vrot.slane %v594, 2
        %v599 = vsel %vm595, %v564, %v597
        %vm600 = vcmp.eq.s32.totalorder %v246, 4
        %v602 = vrot.slane %v599, 7
        %v604 = vsel %vm600, %v564, %v602
        %vm605 = vcmp.eq.s32.totalorder %v246, 5
        %v607 = vrot.slane %v604, 7
        %v609 = vsel %vm605, %v564, %v607
        %vm610 = vcmp.eq.s32.totalorder %v246, 6
        %612 = vset.pattern.permute.xlu0 0
        %613 = vperm.xlu0 %612, %v399
        %v614 = vpop.permute.xlu0 %613
        %v617 = vrot.slane %v609, 2
        %v619 = vsel %vm610, %v614, %v617
        %vm620 = vcmp.eq.s32.totalorder %v246, 7
        %v622 = vrot.slane %v619, 6
        %v624 = vsel %vm620, %v400, %v622
        %vm625 = vcmp.eq.s32.totalorder %v246, 8
        %v627 = vrot.slane %v624, 2
        %v629 = vsel %vm625, %v309, %v627
        %vm630 = vcmp.gt.f32.partialorder %v309, 0.5
        %v631 = vsel %vm630, 1, 0
        %vm632 = vcmp.eq.s32.totalorder %v631, 1
        %v633 = vsel %vm632, %v629, 0.0
        %634 = vst [vmem:[%s217] sm:$0x1] %v633
        %s635 = sadd.s32 %s247, 4
        %s636 = sld [smem:[#allocation5 + %s635]]
        %s637 = sadd.s32 %s247, 5
        %s638 = sld [smem:[#allocation5 + %s637]]
        %s639 = sadd.s32 %s247, 6
        %s640 = sld [smem:[#allocation5 + %s639]]
        %s641 = sadd.s32 %s247, 7
        %s642 = sld [smem:[#allocation5 + %s641]]
        %v643 = vstv %s642
        %vm644 = vcmp.lt.f32.partialorder %v243, %v643
        %vm645 = vcmp.lt.f32.partialorder %v244, %v643
        %v646 = vstv %s638
        %vm647 = vcmp.ge.f32.partialorder %v243, %v646
        %vm648 = vcmp.ge.f32.partialorder %v244, %v646
        %vm649 = vmand %vm644, %vm647
        %vm650 = vmand %vm645, %vm648
        %v651 = vstv %s640
        %vm652 = vcmp.lt.f32.partialorder %v240, %v651
        %vm653 = vcmp.lt.f32.partialorder %v241, %v651
        %vm654 = vmand %vm649, %vm652
        %vm655 = vmand %vm650, %vm653
        %v656 = vstv %s636
        %vm657 = vcmp.ge.f32.partialorder %v240, %v656
        %vm658 = vcmp.ge.f32.partialorder %v241, %v656
        %vm659 = vmand %vm654, %vm657
        %vm660 = vmand %vm655, %vm658
        %v661 = vsel %vm659, 1, 0
        %v662 = vsel %vm660, 1, 0
        %v663 = vcvt.s32.f32 %v661
        %v664 = vcvt.s32.f32 %v662
        %v665 = vmul.f32 %v663, %v232
        %v666 = vmul.f32 %v664, %v233
        %v667 = vmul.f32 %v663, %v235
        %v668 = vmul.f32 %v664, %v236
        %v669 = vadd.f32 %v663, %v664
        %v670 = vrot.slane %v669, 4
        %v671 = vadd.f32 %v669, %v670
        %v672 = vrot.slane %v671, 2
        %v673 = vadd.f32 %v671, %v672
        %v674 = vrot.slane %v673, 1
        %v675 = vadd.f32 %v673, %v674
        %v676 = vadd.f32 %v665, %v666
        %v677 = vrot.slane %v676, 4
        %v678 = vadd.f32 %v676, %v677
        %v679 = vrot.slane %v678, 2
        %v680 = vadd.f32 %v678, %v679
        %v681 = vrot.slane %v680, 1
        %v682 = vadd.f32 %v680, %v681
        %v683 = vadd.f32 %v667, %v668
        %v684 = vrot.slane %v683, 4
        %v685 = vadd.f32 %v683, %v684
        %v686 = vrot.slane %v685, 2
        %v687 = vadd.f32 %v685, %v686
        %v688 = vrot.slane %v687, 1
        %v689 = vadd.f32 %v687, %v688
        %v690 = vsel %vm302, %v675, %v682
        %v691 = vsel %vm304, %v690, %v689
        %v692 = vsel %vm306, %v691, 0.0
        %693 = vadd.xlane.f32.xlu0 %v692
        %v694 = vpop.xlane.xlu0 %693
        %v695 = vmax.f32 %v694, 1.0
        %v697 = vrot.slane %v695, 7
        %v699 = vrcp.pop %v697
        %v700 = vmul.f32 %v697, %v699
        %v701 = vsub.f32 1.0, %v700
        %v702 = vmul.f32 %v699, %v701
        %v703 = vadd.f32 %v699, %v702
        %vm704 = vweird.f32 %v697
        %vm705 = vweird.f32 %v699
        %vm706 = vmor %vm704, %vm705
        %v707 = vsel %vm706, %v699, %v703
        %v708 = vand.u32 2147483647, %v697
        %vm709 = vcmp.eq.f32.partialorder %v708, 8.507059e+37
        %v710 = vand.u32 %v697, 2147483648
        %v711 = vor.u32 1.1754944e-38, %v710
        %v712 = vsel %vm709, %v711, %v707
        %v713 = vmul.f32 %v694, %v712
        %v714 = vrot.slane %v695, 6
        %v716 = vrcp.pop %v714
        %v717 = vmul.f32 %v714, %v716
        %v718 = vsub.f32 1.0, %v717
        %v719 = vmul.f32 %v716, %v718
        %v720 = vadd.f32 %v716, %v719
        %vm721 = vweird.f32 %v714
        %vm722 = vweird.f32 %v716
        %vm723 = vmor %vm721, %vm722
        %v724 = vsel %vm723, %v716, %v720
        %v725 = vand.u32 2147483647, %v714
        %vm726 = vcmp.eq.f32.partialorder %v725, 8.507059e+37
        %v727 = vand.u32 %v714, 2147483648
        %v728 = vor.u32 1.1754944e-38, %v727
        %v729 = vsel %vm726, %v728, %v724
        %v730 = vmul.f32 %v694, %v729
        %v732 = vrot.slane %v713, 1
        %s733 = vtos %v732
        %v734 = vstv %s733
        %v736 = vsub.f32 %v232, %v734
        %v737 = vsub.f32 %v233, %v734
        %v739 = vrot.slane %v730, 2
        %s740 = vtos %v739
        %v741 = vstv %s740
        %v743 = vsub.f32 %v235, %v741
        %v744 = vsub.f32 %v236, %v741
        %v745 = vmul.f32 %v663, %v736
        %v746 = vmul.f32 %v664, %v737
        %v747 = vmul.f32 %v663, %v743
        %v748 = vmul.f32 %v664, %v744
        %v749 = vmul.f32 %v745, %v736
        %v750 = vmul.f32 %v746, %v737
        %v751 = vadd.f32 %v749, %v750
        %v752 = vrot.slane %v751, 4
        %v753 = vadd.f32 %v751, %v752
        %v754 = vrot.slane %v753, 2
        %v755 = vadd.f32 %v753, %v754
        %v756 = vrot.slane %v755, 1
        %v757 = vadd.f32 %v755, %v756
        %v758 = vmul.f32 %v747, %v743
        %v759 = vmul.f32 %v748, %v744
        %v760 = vadd.f32 %v758, %v759
        %v761 = vrot.slane %v760, 4
        %v762 = vadd.f32 %v760, %v761
        %v763 = vrot.slane %v762, 2
        %v764 = vadd.f32 %v762, %v763
        %v765 = vrot.slane %v764, 1
        %v766 = vadd.f32 %v764, %v765
        %v767 = vmul.f32 %v745, %v743
        %v768 = vmul.f32 %v746, %v744
        %v769 = vadd.f32 %v767, %v768
        %v770 = vrot.slane %v769, 4
        %v771 = vadd.f32 %v769, %v770
        %v772 = vrot.slane %v771, 2
        %v773 = vadd.f32 %v771, %v772
        %v774 = vrot.slane %v773, 1
        %v775 = vadd.f32 %v773, %v774
        %v776 = vsel %vm302, %v757, %v766
        %v777 = vsel %vm304, %v776, %v775
        %v778 = vsel %vm306, %v777, 0.0
        %779 = vadd.xlane.f32.xlu0 %v778
        %v780 = vpop.xlane.xlu0 %779
        %v782 = vrot.slane %v780, 1
        %v784 = vsub.f32 %v780, %v782
        %v785 = vmul.f32 %v780, 2.0
        %v786 = vmul.f32 %v784, %v784
        %v787 = vmul.f32 %v785, %v785
        %v789 = vrot.slane %v787, 2
        %v791 = vadd.f32 %v786, %v789
        %v792 = vrsqrt.pop %v791
        %v793 = vmul.f32 %v792, %v791
        %v794 = vmul.f32 %v793, %v792
        %v795 = vmul.f32 0.5, %v794
        %v796 = vsub.f32 1.5, %v795
        %v797 = vmul.f32 %v792, %v796
        %v798 = vmul.f32 %v791, %v797
        %vm799 = vcmp.eq.f32.partialorder %v791, inf
        %v800 = vsel %vm799, %v791, %v798
        %vm801 = vcmp.eq.f32.partialorder %v791, 0.0
        %v802 = vand.u32 %v791, 2147483648
        %v803 = vsel %vm801, %v802, %v800
        %v804 = vmax.f32 %v803, 1e-20
        %v805 = vrcp.pop %v804
        %v806 = vmul.f32 %v804, %v805
        %v807 = vsub.f32 1.0, %v806
        %v808 = vmul.f32 %v805, %v807
        %v809 = vadd.f32 %v805, %v808
        %vm810 = vweird.f32 %v804
        %vm811 = vweird.f32 %v805
        %vm812 = vmor %vm810, %vm811
        %v813 = vsel %vm812, %v805, %v809
        %v814 = vand.u32 2147483647, %v804
        %vm815 = vcmp.eq.f32.partialorder %v814, 8.507059e+37
        %v816 = vand.u32 %v804, 2147483648
        %v817 = vor.u32 1.1754944e-38, %v816
        %v818 = vsel %vm815, %v817, %v813
        %v819 = vmul.f32 %v784, %v818
        %v820 = vadd.f32 %v819, 1.0
        %v821 = vmul.f32 %v820, 0.5
        %v822 = vmax.f32 %v821, 0.0
        %v823 = vrsqrt.pop %v822
        %v824 = vmul.f32 %v823, %v822
        %v825 = vmul.f32 %v824, %v823
        %v826 = vmul.f32 0.5, %v825
        %v827 = vsub.f32 1.5, %v826
        %v828 = vmul.f32 %v823, %v827
        %v829 = vmul.f32 %v822, %v828
        %vm830 = vcmp.eq.f32.partialorder %v822, inf
        %v831 = vsel %vm830, %v822, %v829
        %vm832 = vcmp.eq.f32.partialorder %v822, 0.0
        %v833 = vand.u32 %v822, 2147483648
        %v834 = vsel %vm832, %v833, %v831
        %v835 = vsub.f32 1.0, %v819
        %v836 = vmul.f32 %v835, 0.5
        %v837 = vmax.f32 %v836, 0.0
        %v838 = vrsqrt.pop %v837
        %v839 = vmul.f32 %v838, %v837
        %v840 = vmul.f32 %v839, %v838
        %v841 = vmul.f32 0.5, %v840
        %v842 = vsub.f32 1.5, %v841
        %v843 = vmul.f32 %v838, %v842
        %v844 = vmul.f32 %v837, %v843
        %vm845 = vcmp.eq.f32.partialorder %v837, inf
        %v846 = vsel %vm845, %v837, %v844
        %vm847 = vcmp.eq.f32.partialorder %v837, 0.0
        %v848 = vand.u32 %v837, 2147483648
        %v849 = vsel %vm847, %v848, %v846
        %vm850 = vcmp.ge.f32.partialorder %v785, 0.0
        %v851 = vsub.f32 0.0, %v849
        %v853 = vrot.slane %v849, 6
        %v856 = vrot.slane %v851, 6
        %v858 = vsel %vm850, %v853, %v856
        %vm859 = vcmp.lt.f32.partialorder %v803, 1e-12
        %v860 = vsel %vm859, 1.0, %v834
        %v862 = vrot.slane %v858, 2
        %v864 = vsel %vm859, 0.0, %v862
        %s866 = vtos %v860
        %v867 = vstv %s866
        %v869 = vmul.f32 %v867, %v232
        %v870 = vmul.f32 %v867, %v233
        %s872 = vtos %v864
        %v873 = vstv %s872
        %v875 = vmul.f32 %v873, %v235
        %v876 = vmul.f32 %v873, %v236
        %v877 = vadd.f32 %v869, %v875
        %v878 = vadd.f32 %v870, %v876
        %v879 = vmul.f32 %v867, %v235
        %v880 = vmul.f32 %v867, %v236
        %v881 = vmul.f32 %v873, %v232
        %v882 = vmul.f32 %v873, %v233
        %v883 = vsub.f32 %v879, %v881
        %v884 = vsub.f32 %v880, %v882
        %v885 = vsel %vm659, %v877, 1e+30
        %v886 = vsel %vm660, %v878, 1e+30
        %v887 = vmin.f32 %v885, %v886
        %v888 = vrot.slane %v887, 4
        %v889 = vmin.f32 %v887, %v888
        %v890 = vrot.slane %v889, 2
        %v891 = vmin.f32 %v889, %v890
        %v892 = vrot.slane %v891, 1
        %v893 = vmin.f32 %v891, %v892
        %v894 = vsel %vm659, %v883, 1e+30
        %v895 = vsel %vm660, %v884, 1e+30
        %v896 = vmin.f32 %v894, %v895
        %v897 = vrot.slane %v896, 4
        %v898 = vmin.f32 %v896, %v897
        %v899 = vrot.slane %v898, 2
        %v900 = vmin.f32 %v898, %v899
        %v901 = vrot.slane %v900, 1
        %v902 = vmin.f32 %v900, %v901
        %v903 = vsel %vm659, %v238, 1e+30
        %v904 = vsel %vm660, %v239, 1e+30
        %v905 = vmin.f32 %v903, %v904
        %v906 = vrot.slane %v905, 4
        %v907 = vmin.f32 %v905, %v906
        %v908 = vrot.slane %v907, 2
        %v909 = vmin.f32 %v907, %v908
        %v910 = vrot.slane %v909, 1
        %v911 = vmin.f32 %v909, %v910
        %v912 = vsel %vm302, %v893, %v902
        %v913 = vsel %vm304, %v912, %v911
        %v914 = vsel %vm659, %v877, -1e+30
        %v915 = vsel %vm660, %v878, -1e+30
        %v916 = vmax.f32 %v914, %v915
        %v917 = vrot.slane %v916, 4
        %v918 = vmax.f32 %v916, %v917
        %v919 = vrot.slane %v918, 2
        %v920 = vmax.f32 %v918, %v919
        %v921 = vrot.slane %v920, 1
        %v922 = vmax.f32 %v920, %v921
        %v923 = vsel %vm659, %v883, -1e+30
        %v924 = vsel %vm660, %v884, -1e+30
        %v925 = vmax.f32 %v923, %v924
        %v926 = vrot.slane %v925, 4
        %v927 = vmax.f32 %v925, %v926
        %v928 = vrot.slane %v927, 2
        %v929 = vmax.f32 %v927, %v928
        %v930 = vrot.slane %v929, 1
        %v931 = vmax.f32 %v929, %v930
        %v932 = vsel %vm659, %v238, -1e+30
        %v933 = vsel %vm660, %v239, -1e+30
        %v934 = vmax.f32 %v932, %v933
        %v935 = vrot.slane %v934, 4
        %v936 = vmax.f32 %v934, %v935
        %v937 = vrot.slane %v936, 2
        %v938 = vmax.f32 %v936, %v937
        %v939 = vrot.slane %v938, 1
        %v940 = vmax.f32 %v938, %v939
        %v941 = vsel %vm302, %v922, %v931
        %v942 = vsel %vm304, %v941, %v940
        %v943 = vsel %vm306, %v913, inf
        %944 = vmin.xlane.f32.xlu0 %v943
        %v945 = vpop.xlane.xlu0 %944
        %v946 = vsel %vm306, %v942, -inf
        %947 = vmax.xlane.f32.xlu0 %v946
        %v948 = vpop.xlane.xlu0 %947
        %v949 = vsub.f32 %v948, %v945
        %v950 = vadd.f32 %v945, %v948
        %v951 = vmul.f32 %v950, 0.5
        %v952 = vmul.f32 %v860, %v951
        %v954 = vrot.slane %v951, 1
        %v956 = vmul.f32 %v864, %v954
        %v957 = vsub.f32 %v952, %v956
        %v958 = vmul.f32 %v864, %v951
        %v959 = vmul.f32 %v860, %v954
        %v960 = vadd.f32 %v958, %v959
        %962 = vset.pattern.permute.xlu0 0
        %963 = vperm.xlu0 %962, %v957
        %v964 = vpop.permute.xlu0 %963
        %v966 = vsel %vm576, %v964, 0.0
        %968 = vset.pattern.permute.xlu0 0
        %969 = vperm.xlu0 %968, %v960
        %v970 = vpop.permute.xlu0 %969
        %v972 = vsel %vm583, %v970, %v966
        %v974 = vrot.slane %v972, 6
        %v976 = vsel %vm590, %v951, %v974
        %v978 = vrot.slane %v976, 2
        %v980 = vsel %vm595, %v949, %v978
        %v982 = vrot.slane %v980, 7
        %v984 = vsel %vm600, %v949, %v982
        %v986 = vrot.slane %v984, 7
        %v988 = vsel %vm605, %v949, %v986
        %990 = vset.pattern.permute.xlu0 0
        %991 = vperm.xlu0 %990, %v784
        %v992 = vpop.permute.xlu0 %991
        %v995 = vrot.slane %v988, 2
        %v997 = vsel %vm610, %v992, %v995
        %v999 = vrot.slane %v997, 6
        %v1001 = vsel %vm620, %v785, %v999
        %v1003 = vrot.slane %v1001, 2
        %v1005 = vsel %vm625, %v694, %v1003
        %vm1006 = vcmp.gt.f32.partialorder %v694, 0.5
        %v1007 = vsel %vm1006, 1, 0
        %vm1008 = vcmp.eq.s32.totalorder %v1007, 1
        %v1009 = vsel %vm1008, %v1005, 0.0
        %1010 = vst [vmem:[%s217 + $0x1] sm:$0x1] %v1009
        %s1011 = sadd.s32 %s247, 8
        %s1012 = sld [smem:[#allocation5 + %s1011]]
        %s1013 = sadd.s32 %s247, 9
        %s1014 = sld [smem:[#allocation5 + %s1013]]
        %s1015 = sadd.s32 %s247, 10
        %s1016 = sld [smem:[#allocation5 + %s1015]]
        %s1017 = sadd.s32 %s247, 11
        %s1018 = sld [smem:[#allocation5 + %s1017]]
        %v1019 = vstv %s1018
        %vm1020 = vcmp.lt.f32.partialorder %v243, %v1019
        %vm1021 = vcmp.lt.f32.partialorder %v244, %v1019
        %v1022 = vstv %s1014
        %vm1023 = vcmp.ge.f32.partialorder %v243, %v1022
        %vm1024 = vcmp.ge.f32.partialorder %v244, %v1022
        %vm1025 = vmand %vm1020, %vm1023
        %vm1026 = vmand %vm1021, %vm1024
        %v1027 = vstv %s1016
        %vm1028 = vcmp.lt.f32.partialorder %v240, %v1027
        %vm1029 = vcmp.lt.f32.partialorder %v241, %v1027
        %vm1030 = vmand %vm1025, %vm1028
        %vm1031 = vmand %vm1026, %vm1029
        %v1032 = vstv %s1012
        %vm1033 = vcmp.ge.f32.partialorder %v240, %v1032
        %vm1034 = vcmp.ge.f32.partialorder %v241, %v1032
        %vm1035 = vmand %vm1030, %vm1033
        %vm1036 = vmand %vm1031, %vm1034
        %v1037 = vsel %vm1035, 1, 0
        %v1038 = vsel %vm1036, 1, 0
        %v1039 = vcvt.s32.f32 %v1037
        %v1040 = vcvt.s32.f32 %v1038
        %v1041 = vmul.f32 %v1039, %v232
        %v1042 = vmul.f32 %v1040, %v233
        %v1043 = vmul.f32 %v1039, %v235
        %v1044 = vmul.f32 %v1040, %v236
        %v1045 = vadd.f32 %v1039, %v1040
        %v1046 = vrot.slane %v1045, 4
        %v1047 = vadd.f32 %v1045, %v1046
        %v1048 = vrot.slane %v1047, 2
        %v1049 = vadd.f32 %v1047, %v1048
        %v1050 = vrot.slane %v1049, 1
        %v1051 = vadd.f32 %v1049, %v1050
        %v1052 = vadd.f32 %v1041, %v1042
        %v1053 = vrot.slane %v1052, 4
        %v1054 = vadd.f32 %v1052, %v1053
        %v1055 = vrot.slane %v1054, 2
        %v1056 = vadd.f32 %v1054, %v1055
        %v1057 = vrot.slane %v1056, 1
        %v1058 = vadd.f32 %v1056, %v1057
        %v1059 = vadd.f32 %v1043, %v1044
        %v1060 = vrot.slane %v1059, 4
        %v1061 = vadd.f32 %v1059, %v1060
        %v1062 = vrot.slane %v1061, 2
        %v1063 = vadd.f32 %v1061, %v1062
        %v1064 = vrot.slane %v1063, 1
        %v1065 = vadd.f32 %v1063, %v1064
        %v1066 = vsel %vm302, %v1051, %v1058
        %v1067 = vsel %vm304, %v1066, %v1065
        %v1068 = vsel %vm306, %v1067, 0.0
        %1069 = vadd.xlane.f32.xlu0 %v1068
        %v1070 = vpop.xlane.xlu0 %1069
        %v1071 = vmax.f32 %v1070, 1.0
        %v1073 = vrot.slane %v1071, 7
        %v1075 = vrcp.pop %v1073
        %v1076 = vmul.f32 %v1073, %v1075
        %v1077 = vsub.f32 1.0, %v1076
        %v1078 = vmul.f32 %v1075, %v1077
        %v1079 = vadd.f32 %v1075, %v1078
        %vm1080 = vweird.f32 %v1073
        %vm1081 = vweird.f32 %v1075
        %vm1082 = vmor %vm1080, %vm1081
        %v1083 = vsel %vm1082, %v1075, %v1079
        %v1084 = vand.u32 2147483647, %v1073
        %vm1085 = vcmp.eq.f32.partialorder %v1084, 8.507059e+37
        %v1086 = vand.u32 %v1073, 2147483648
        %v1087 = vor.u32 1.1754944e-38, %v1086
        %v1088 = vsel %vm1085, %v1087, %v1083
        %v1089 = vmul.f32 %v1070, %v1088
        %v1090 = vrot.slane %v1071, 6
        %v1092 = vrcp.pop %v1090
        %v1093 = vmul.f32 %v1090, %v1092
        %v1094 = vsub.f32 1.0, %v1093
        %v1095 = vmul.f32 %v1092, %v1094
        %v1096 = vadd.f32 %v1092, %v1095
        %vm1097 = vweird.f32 %v1090
        %vm1098 = vweird.f32 %v1092
        %vm1099 = vmor %vm1097, %vm1098
        %v1100 = vsel %vm1099, %v1092, %v1096
        %v1101 = vand.u32 2147483647, %v1090
        %vm1102 = vcmp.eq.f32.partialorder %v1101, 8.507059e+37
        %v1103 = vand.u32 %v1090, 2147483648
        %v1104 = vor.u32 1.1754944e-38, %v1103
        %v1105 = vsel %vm1102, %v1104, %v1100
        %v1106 = vmul.f32 %v1070, %v1105
        %v1108 = vrot.slane %v1089, 1
        %s1109 = vtos %v1108
        %v1110 = vstv %s1109
        %v1112 = vsub.f32 %v232, %v1110
        %v1113 = vsub.f32 %v233, %v1110
        %v1115 = vrot.slane %v1106, 2
        %s1116 = vtos %v1115
        %v1117 = vstv %s1116
        %v1119 = vsub.f32 %v235, %v1117
        %v1120 = vsub.f32 %v236, %v1117
        %v1121 = vmul.f32 %v1039, %v1112
        %v1122 = vmul.f32 %v1040, %v1113
        %v1123 = vmul.f32 %v1039, %v1119
        %v1124 = vmul.f32 %v1040, %v1120
        %v1125 = vmul.f32 %v1121, %v1112
        %v1126 = vmul.f32 %v1122, %v1113
        %v1127 = vadd.f32 %v1125, %v1126
        %v1128 = vrot.slane %v1127, 4
        %v1129 = vadd.f32 %v1127, %v1128
        %v1130 = vrot.slane %v1129, 2
        %v1131 = vadd.f32 %v1129, %v1130
        %v1132 = vrot.slane %v1131, 1
        %v1133 = vadd.f32 %v1131, %v1132
        %v1134 = vmul.f32 %v1123, %v1119
        %v1135 = vmul.f32 %v1124, %v1120
        %v1136 = vadd.f32 %v1134, %v1135
        %v1137 = vrot.slane %v1136, 4
        %v1138 = vadd.f32 %v1136, %v1137
        %v1139 = vrot.slane %v1138, 2
        %v1140 = vadd.f32 %v1138, %v1139
        %v1141 = vrot.slane %v1140, 1
        %v1142 = vadd.f32 %v1140, %v1141
        %v1143 = vmul.f32 %v1121, %v1119
        %v1144 = vmul.f32 %v1122, %v1120
        %v1145 = vadd.f32 %v1143, %v1144
        %v1146 = vrot.slane %v1145, 4
        %v1147 = vadd.f32 %v1145, %v1146
        %v1148 = vrot.slane %v1147, 2
        %v1149 = vadd.f32 %v1147, %v1148
        %v1150 = vrot.slane %v1149, 1
        %v1151 = vadd.f32 %v1149, %v1150
        %v1152 = vsel %vm302, %v1133, %v1142
        %v1153 = vsel %vm304, %v1152, %v1151
        %v1154 = vsel %vm306, %v1153, 0.0
        %1155 = vadd.xlane.f32.xlu0 %v1154
        %v1156 = vpop.xlane.xlu0 %1155
        %v1158 = vrot.slane %v1156, 1
        %v1160 = vsub.f32 %v1156, %v1158
        %v1161 = vmul.f32 %v1156, 2.0
        %v1162 = vmul.f32 %v1160, %v1160
        %v1163 = vmul.f32 %v1161, %v1161
        %v1165 = vrot.slane %v1163, 2
        %v1167 = vadd.f32 %v1162, %v1165
        %v1168 = vrsqrt.pop %v1167
        %v1169 = vmul.f32 %v1168, %v1167
        %v1170 = vmul.f32 %v1169, %v1168
        %v1171 = vmul.f32 0.5, %v1170
        %v1172 = vsub.f32 1.5, %v1171
        %v1173 = vmul.f32 %v1168, %v1172
        %v1174 = vmul.f32 %v1167, %v1173
        %vm1175 = vcmp.eq.f32.partialorder %v1167, inf
        %v1176 = vsel %vm1175, %v1167, %v1174
        %vm1177 = vcmp.eq.f32.partialorder %v1167, 0.0
        %v1178 = vand.u32 %v1167, 2147483648
        %v1179 = vsel %vm1177, %v1178, %v1176
        %v1180 = vmax.f32 %v1179, 1e-20
        %v1181 = vrcp.pop %v1180
        %v1182 = vmul.f32 %v1180, %v1181
        %v1183 = vsub.f32 1.0, %v1182
        %v1184 = vmul.f32 %v1181, %v1183
        %v1185 = vadd.f32 %v1181, %v1184
        %vm1186 = vweird.f32 %v1180
        %vm1187 = vweird.f32 %v1181
        %vm1188 = vmor %vm1186, %vm1187
        %v1189 = vsel %vm1188, %v1181, %v1185
        %v1190 = vand.u32 2147483647, %v1180
        %vm1191 = vcmp.eq.f32.partialorder %v1190, 8.507059e+37
        %v1192 = vand.u32 %v1180, 2147483648
        %v1193 = vor.u32 1.1754944e-38, %v1192
        %v1194 = vsel %vm1191, %v1193, %v1189
        %v1195 = vmul.f32 %v1160, %v1194
        %v1196 = vadd.f32 %v1195, 1.0
        %v1197 = vmul.f32 %v1196, 0.5
        %v1198 = vmax.f32 %v1197, 0.0
        %v1199 = vrsqrt.pop %v1198
        %v1200 = vmul.f32 %v1199, %v1198
        %v1201 = vmul.f32 %v1200, %v1199
        %v1202 = vmul.f32 0.5, %v1201
        %v1203 = vsub.f32 1.5, %v1202
        %v1204 = vmul.f32 %v1199, %v1203
        %v1205 = vmul.f32 %v1198, %v1204
        %vm1206 = vcmp.eq.f32.partialorder %v1198, inf
        %v1207 = vsel %vm1206, %v1198, %v1205
        %vm1208 = vcmp.eq.f32.partialorder %v1198, 0.0
        %v1209 = vand.u32 %v1198, 2147483648
        %v1210 = vsel %vm1208, %v1209, %v1207
        %v1211 = vsub.f32 1.0, %v1195
        %v1212 = vmul.f32 %v1211, 0.5
        %v1213 = vmax.f32 %v1212, 0.0
        %v1214 = vrsqrt.pop %v1213
        %v1215 = vmul.f32 %v1214, %v1213
        %v1216 = vmul.f32 %v1215, %v1214
        %v1217 = vmul.f32 0.5, %v1216
        %v1218 = vsub.f32 1.5, %v1217
        %v1219 = vmul.f32 %v1214, %v1218
        %v1220 = vmul.f32 %v1213, %v1219
        %vm1221 = vcmp.eq.f32.partialorder %v1213, inf
        %v1222 = vsel %vm1221, %v1213, %v1220
        %vm1223 = vcmp.eq.f32.partialorder %v1213, 0.0
        %v1224 = vand.u32 %v1213, 2147483648
        %v1225 = vsel %vm1223, %v1224, %v1222
        %vm1226 = vcmp.ge.f32.partialorder %v1161, 0.0
        %v1227 = vsub.f32 0.0, %v1225
        %v1229 = vrot.slane %v1225, 6
        %v1232 = vrot.slane %v1227, 6
        %v1234 = vsel %vm1226, %v1229, %v1232
        %vm1235 = vcmp.lt.f32.partialorder %v1179, 1e-12
        %v1236 = vsel %vm1235, 1.0, %v1210
        %v1238 = vrot.slane %v1234, 2
        %v1240 = vsel %vm1235, 0.0, %v1238
        %s1242 = vtos %v1236
        %v1243 = vstv %s1242
        %v1245 = vmul.f32 %v1243, %v232
        %v1246 = vmul.f32 %v1243, %v233
        %s1248 = vtos %v1240
        %v1249 = vstv %s1248
        %v1251 = vmul.f32 %v1249, %v235
        %v1252 = vmul.f32 %v1249, %v236
        %v1253 = vadd.f32 %v1245, %v1251
        %v1254 = vadd.f32 %v1246, %v1252
        %v1255 = vmul.f32 %v1243, %v235
        %v1256 = vmul.f32 %v1243, %v236
        %v1257 = vmul.f32 %v1249, %v232
        %v1258 = vmul.f32 %v1249, %v233
        %v1259 = vsub.f32 %v1255, %v1257
        %v1260 = vsub.f32 %v1256, %v1258
        %v1261 = vsel %vm1035, %v1253, 1e+30
        %v1262 = vsel %vm1036, %v1254, 1e+30
        %v1263 = vmin.f32 %v1261, %v1262
        %v1264 = vrot.slane %v1263, 4
        %v1265 = vmin.f32 %v1263, %v1264
        %v1266 = vrot.slane %v1265, 2
        %v1267 = vmin.f32 %v1265, %v1266
        %v1268 = vrot.slane %v1267, 1
        %v1269 = vmin.f32 %v1267, %v1268
        %v1270 = vsel %vm1035, %v1259, 1e+30
        %v1271 = vsel %vm1036, %v1260, 1e+30
        %v1272 = vmin.f32 %v1270, %v1271
        %v1273 = vrot.slane %v1272, 4
        %v1274 = vmin.f32 %v1272, %v1273
        %v1275 = vrot.slane %v1274, 2
        %v1276 = vmin.f32 %v1274, %v1275
        %v1277 = vrot.slane %v1276, 1
        %v1278 = vmin.f32 %v1276, %v1277
        %v1279 = vsel %vm1035, %v238, 1e+30
        %v1280 = vsel %vm1036, %v239, 1e+30
        %v1281 = vmin.f32 %v1279, %v1280
        %v1282 = vrot.slane %v1281, 4
        %v1283 = vmin.f32 %v1281, %v1282
        %v1284 = vrot.slane %v1283, 2
        %v1285 = vmin.f32 %v1283, %v1284
        %v1286 = vrot.slane %v1285, 1
        %v1287 = vmin.f32 %v1285, %v1286
        %v1288 = vsel %vm302, %v1269, %v1278
        %v1289 = vsel %vm304, %v1288, %v1287
        %v1290 = vsel %vm1035, %v1253, -1e+30
        %v1291 = vsel %vm1036, %v1254, -1e+30
        %v1292 = vmax.f32 %v1290, %v1291
        %v1293 = vrot.slane %v1292, 4
        %v1294 = vmax.f32 %v1292, %v1293
        %v1295 = vrot.slane %v1294, 2
        %v1296 = vmax.f32 %v1294, %v1295
        %v1297 = vrot.slane %v1296, 1
        %v1298 = vmax.f32 %v1296, %v1297
        %v1299 = vsel %vm1035, %v1259, -1e+30
        %v1300 = vsel %vm1036, %v1260, -1e+30
        %v1301 = vmax.f32 %v1299, %v1300
        %v1302 = vrot.slane %v1301, 4
        %v1303 = vmax.f32 %v1301, %v1302
        %v1304 = vrot.slane %v1303, 2
        %v1305 = vmax.f32 %v1303, %v1304
        %v1306 = vrot.slane %v1305, 1
        %v1307 = vmax.f32 %v1305, %v1306
        %v1308 = vsel %vm1035, %v238, -1e+30
        %v1309 = vsel %vm1036, %v239, -1e+30
        %v1310 = vmax.f32 %v1308, %v1309
        %v1311 = vrot.slane %v1310, 4
        %v1312 = vmax.f32 %v1310, %v1311
        %v1313 = vrot.slane %v1312, 2
        %v1314 = vmax.f32 %v1312, %v1313
        %v1315 = vrot.slane %v1314, 1
        %v1316 = vmax.f32 %v1314, %v1315
        %v1317 = vsel %vm302, %v1298, %v1307
        %v1318 = vsel %vm304, %v1317, %v1316
        %v1319 = vsel %vm306, %v1289, inf
        %1320 = vmin.xlane.f32.xlu0 %v1319
        %v1321 = vpop.xlane.xlu0 %1320
        %v1322 = vsel %vm306, %v1318, -inf
        %1323 = vmax.xlane.f32.xlu0 %v1322
        %v1324 = vpop.xlane.xlu0 %1323
        %v1325 = vsub.f32 %v1324, %v1321
        %v1326 = vadd.f32 %v1321, %v1324
        %v1327 = vmul.f32 %v1326, 0.5
        %v1328 = vmul.f32 %v1236, %v1327
        %v1330 = vrot.slane %v1327, 1
        %v1332 = vmul.f32 %v1240, %v1330
        %v1333 = vsub.f32 %v1328, %v1332
        %v1334 = vmul.f32 %v1240, %v1327
        %v1335 = vmul.f32 %v1236, %v1330
        %v1336 = vadd.f32 %v1334, %v1335
        %1338 = vset.pattern.permute.xlu0 0
        %1339 = vperm.xlu0 %1338, %v1333
        %v1340 = vpop.permute.xlu0 %1339
        %v1342 = vsel %vm576, %v1340, 0.0
        %1344 = vset.pattern.permute.xlu0 0
        %1345 = vperm.xlu0 %1344, %v1336
        %v1346 = vpop.permute.xlu0 %1345
        %v1348 = vsel %vm583, %v1346, %v1342
        %v1350 = vrot.slane %v1348, 6
        %v1352 = vsel %vm590, %v1327, %v1350
        %v1354 = vrot.slane %v1352, 2
        %v1356 = vsel %vm595, %v1325, %v1354
        %v1358 = vrot.slane %v1356, 7
        %v1360 = vsel %vm600, %v1325, %v1358
        %v1362 = vrot.slane %v1360, 7
        %v1364 = vsel %vm605, %v1325, %v1362
        %1366 = vset.pattern.permute.xlu0 0
        %1367 = vperm.xlu0 %1366, %v1160
        %v1368 = vpop.permute.xlu0 %1367
        %v1371 = vrot.slane %v1364, 2
        %v1373 = vsel %vm610, %v1368, %v1371
        %v1375 = vrot.slane %v1373, 6
        %v1377 = vsel %vm620, %v1161, %v1375
        %v1379 = vrot.slane %v1377, 2
        %v1381 = vsel %vm625, %v1070, %v1379
        %vm1382 = vcmp.gt.f32.partialorder %v1070, 0.5
        %v1383 = vsel %vm1382, 1, 0
        %vm1384 = vcmp.eq.s32.totalorder %v1383, 1
        %v1385 = vsel %vm1384, %v1381, 0.0
        %1386 = vst [vmem:[%s217 + $0x2] sm:$0x1] %v1385
        %s1387 = sadd.s32 %s247, 12
        %s1388 = sld [smem:[#allocation5 + %s1387]]
        %s1389 = sadd.s32 %s247, 13
        %s1390 = sld [smem:[#allocation5 + %s1389]]
        %s1391 = sadd.s32 %s247, 14
        %s1392 = sld [smem:[#allocation5 + %s1391]]
        %s1393 = sadd.s32 %s247, 15
        %s1394 = sld [smem:[#allocation5 + %s1393]]
        %v1395 = vstv %s1394
        %vm1396 = vcmp.lt.f32.partialorder %v243, %v1395
        %vm1397 = vcmp.lt.f32.partialorder %v244, %v1395
        %v1398 = vstv %s1390
        %vm1399 = vcmp.ge.f32.partialorder %v243, %v1398
        %vm1400 = vcmp.ge.f32.partialorder %v244, %v1398
        %vm1401 = vmand %vm1396, %vm1399
        %vm1402 = vmand %vm1397, %vm1400
        %v1403 = vstv %s1392
        %vm1404 = vcmp.lt.f32.partialorder %v240, %v1403
        %vm1405 = vcmp.lt.f32.partialorder %v241, %v1403
        %vm1406 = vmand %vm1401, %vm1404
        %vm1407 = vmand %vm1402, %vm1405
        %v1408 = vstv %s1388
        %vm1409 = vcmp.ge.f32.partialorder %v240, %v1408
        %vm1410 = vcmp.ge.f32.partialorder %v241, %v1408
        %vm1411 = vmand %vm1406, %vm1409
        %vm1412 = vmand %vm1407, %vm1410
        %v1413 = vsel %vm1411, 1, 0
        %v1414 = vsel %vm1412, 1, 0
        %v1415 = vcvt.s32.f32 %v1413
        %v1416 = vcvt.s32.f32 %v1414
        %v1417 = vmul.f32 %v1415, %v232
        %v1418 = vmul.f32 %v1416, %v233
        %v1419 = vmul.f32 %v1415, %v235
        %v1420 = vmul.f32 %v1416, %v236
        %v1421 = vadd.f32 %v1415, %v1416
        %v1422 = vrot.slane %v1421, 4
        %v1423 = vadd.f32 %v1421, %v1422
        %v1424 = vrot.slane %v1423, 2
        %v1425 = vadd.f32 %v1423, %v1424
        %v1426 = vrot.slane %v1425, 1
        %v1427 = vadd.f32 %v1425, %v1426
        %v1428 = vadd.f32 %v1417, %v1418
        %v1429 = vrot.slane %v1428, 4
        %v1430 = vadd.f32 %v1428, %v1429
        %v1431 = vrot.slane %v1430, 2
        %v1432 = vadd.f32 %v1430, %v1431
        %v1433 = vrot.slane %v1432, 1
        %v1434 = vadd.f32 %v1432, %v1433
        %v1435 = vadd.f32 %v1419, %v1420
        %v1436 = vrot.slane %v1435, 4
        %v1437 = vadd.f32 %v1435, %v1436
        %v1438 = vrot.slane %v1437, 2
        %v1439 = vadd.f32 %v1437, %v1438
        %v1440 = vrot.slane %v1439, 1
        %v1441 = vadd.f32 %v1439, %v1440
        %v1442 = vsel %vm302, %v1427, %v1434
        %v1443 = vsel %vm304, %v1442, %v1441
        %v1444 = vsel %vm306, %v1443, 0.0
        %1445 = vadd.xlane.f32.xlu0 %v1444
        %v1446 = vpop.xlane.xlu0 %1445
        %v1447 = vmax.f32 %v1446, 1.0
        %v1449 = vrot.slane %v1447, 7
        %v1451 = vrcp.pop %v1449
        %v1452 = vmul.f32 %v1449, %v1451
        %v1453 = vsub.f32 1.0, %v1452
        %v1454 = vmul.f32 %v1451, %v1453
        %v1455 = vadd.f32 %v1451, %v1454
        %vm1456 = vweird.f32 %v1449
        %vm1457 = vweird.f32 %v1451
        %vm1458 = vmor %vm1456, %vm1457
        %v1459 = vsel %vm1458, %v1451, %v1455
        %v1460 = vand.u32 2147483647, %v1449
        %vm1461 = vcmp.eq.f32.partialorder %v1460, 8.507059e+37
        %v1462 = vand.u32 %v1449, 2147483648
        %v1463 = vor.u32 1.1754944e-38, %v1462
        %v1464 = vsel %vm1461, %v1463, %v1459
        %v1465 = vmul.f32 %v1446, %v1464
        %v1466 = vrot.slane %v1447, 6
        %v1468 = vrcp.pop %v1466
        %v1469 = vmul.f32 %v1466, %v1468
        %v1470 = vsub.f32 1.0, %v1469
        %v1471 = vmul.f32 %v1468, %v1470
        %v1472 = vadd.f32 %v1468, %v1471
        %vm1473 = vweird.f32 %v1466
        %vm1474 = vweird.f32 %v1468
        %vm1475 = vmor %vm1473, %vm1474
        %v1476 = vsel %vm1475, %v1468, %v1472
        %v1477 = vand.u32 2147483647, %v1466
        %vm1478 = vcmp.eq.f32.partialorder %v1477, 8.507059e+37
        %v1479 = vand.u32 %v1466, 2147483648
        %v1480 = vor.u32 1.1754944e-38, %v1479
        %v1481 = vsel %vm1478, %v1480, %v1476
        %v1482 = vmul.f32 %v1446, %v1481
        %v1484 = vrot.slane %v1465, 1
        %s1485 = vtos %v1484
        %v1486 = vstv %s1485
        %v1488 = vsub.f32 %v232, %v1486
        %v1489 = vsub.f32 %v233, %v1486
        %v1491 = vrot.slane %v1482, 2
        %s1492 = vtos %v1491
        %v1493 = vstv %s1492
        %v1495 = vsub.f32 %v235, %v1493
        %v1496 = vsub.f32 %v236, %v1493
        %v1497 = vmul.f32 %v1415, %v1488
        %v1498 = vmul.f32 %v1416, %v1489
        %v1499 = vmul.f32 %v1415, %v1495
        %v1500 = vmul.f32 %v1416, %v1496
        %v1501 = vmul.f32 %v1497, %v1488
        %v1502 = vmul.f32 %v1498, %v1489
        %v1503 = vadd.f32 %v1501, %v1502
        %v1504 = vrot.slane %v1503, 4
        %v1505 = vadd.f32 %v1503, %v1504
        %v1506 = vrot.slane %v1505, 2
        %v1507 = vadd.f32 %v1505, %v1506
        %v1508 = vrot.slane %v1507, 1
        %v1509 = vadd.f32 %v1507, %v1508
        %v1510 = vmul.f32 %v1499, %v1495
        %v1511 = vmul.f32 %v1500, %v1496
        %v1512 = vadd.f32 %v1510, %v1511
        %v1513 = vrot.slane %v1512, 4
        %v1514 = vadd.f32 %v1512, %v1513
        %v1515 = vrot.slane %v1514, 2
        %v1516 = vadd.f32 %v1514, %v1515
        %v1517 = vrot.slane %v1516, 1
        %v1518 = vadd.f32 %v1516, %v1517
        %v1519 = vmul.f32 %v1497, %v1495
        %v1520 = vmul.f32 %v1498, %v1496
        %v1521 = vadd.f32 %v1519, %v1520
        %v1522 = vrot.slane %v1521, 4
        %v1523 = vadd.f32 %v1521, %v1522
        %v1524 = vrot.slane %v1523, 2
        %v1525 = vadd.f32 %v1523, %v1524
        %v1526 = vrot.slane %v1525, 1
        %v1527 = vadd.f32 %v1525, %v1526
        %v1528 = vsel %vm302, %v1509, %v1518
        %v1529 = vsel %vm304, %v1528, %v1527
        %v1530 = vsel %vm306, %v1529, 0.0
        %1531 = vadd.xlane.f32.xlu0 %v1530
        %v1532 = vpop.xlane.xlu0 %1531
        %v1534 = vrot.slane %v1532, 1
        %v1536 = vsub.f32 %v1532, %v1534
        %v1537 = vmul.f32 %v1532, 2.0
        %v1538 = vmul.f32 %v1536, %v1536
        %v1539 = vmul.f32 %v1537, %v1537
        %v1541 = vrot.slane %v1539, 2
        %v1543 = vadd.f32 %v1538, %v1541
        %v1544 = vrsqrt.pop %v1543
        %v1545 = vmul.f32 %v1544, %v1543
        %v1546 = vmul.f32 %v1545, %v1544
        %v1547 = vmul.f32 0.5, %v1546
        %v1548 = vsub.f32 1.5, %v1547
        %v1549 = vmul.f32 %v1544, %v1548
        %v1550 = vmul.f32 %v1543, %v1549
        %vm1551 = vcmp.eq.f32.partialorder %v1543, inf
        %v1552 = vsel %vm1551, %v1543, %v1550
        %vm1553 = vcmp.eq.f32.partialorder %v1543, 0.0
        %v1554 = vand.u32 %v1543, 2147483648
        %v1555 = vsel %vm1553, %v1554, %v1552
        %v1556 = vmax.f32 %v1555, 1e-20
        %v1557 = vrcp.pop %v1556
        %v1558 = vmul.f32 %v1556, %v1557
        %v1559 = vsub.f32 1.0, %v1558
        %v1560 = vmul.f32 %v1557, %v1559
        %v1561 = vadd.f32 %v1557, %v1560
        %vm1562 = vweird.f32 %v1556
        %vm1563 = vweird.f32 %v1557
        %vm1564 = vmor %vm1562, %vm1563
        %v1565 = vsel %vm1564, %v1557, %v1561
        %v1566 = vand.u32 2147483647, %v1556
        %vm1567 = vcmp.eq.f32.partialorder %v1566, 8.507059e+37
        %v1568 = vand.u32 %v1556, 2147483648
        %v1569 = vor.u32 1.1754944e-38, %v1568
        %v1570 = vsel %vm1567, %v1569, %v1565
        %v1571 = vmul.f32 %v1536, %v1570
        %v1572 = vadd.f32 %v1571, 1.0
        %v1573 = vmul.f32 %v1572, 0.5
        %v1574 = vmax.f32 %v1573, 0.0
        %v1575 = vrsqrt.pop %v1574
        %v1576 = vmul.f32 %v1575, %v1574
        %v1577 = vmul.f32 %v1576, %v1575
        %v1578 = vmul.f32 0.5, %v1577
        %v1579 = vsub.f32 1.5, %v1578
        %v1580 = vmul.f32 %v1575, %v1579
        %v1581 = vmul.f32 %v1574, %v1580
        %vm1582 = vcmp.eq.f32.partialorder %v1574, inf
        %v1583 = vsel %vm1582, %v1574, %v1581
        %vm1584 = vcmp.eq.f32.partialorder %v1574, 0.0
        %v1585 = vand.u32 %v1574, 2147483648
        %v1586 = vsel %vm1584, %v1585, %v1583
        %v1587 = vsub.f32 1.0, %v1571
        %v1588 = vmul.f32 %v1587, 0.5
        %v1589 = vmax.f32 %v1588, 0.0
        %v1590 = vrsqrt.pop %v1589
        %v1591 = vmul.f32 %v1590, %v1589
        %v1592 = vmul.f32 %v1591, %v1590
        %v1593 = vmul.f32 0.5, %v1592
        %v1594 = vsub.f32 1.5, %v1593
        %v1595 = vmul.f32 %v1590, %v1594
        %v1596 = vmul.f32 %v1589, %v1595
        %vm1597 = vcmp.eq.f32.partialorder %v1589, inf
        %v1598 = vsel %vm1597, %v1589, %v1596
        %vm1599 = vcmp.eq.f32.partialorder %v1589, 0.0
        %v1600 = vand.u32 %v1589, 2147483648
        %v1601 = vsel %vm1599, %v1600, %v1598
        %vm1602 = vcmp.ge.f32.partialorder %v1537, 0.0
        %v1603 = vsub.f32 0.0, %v1601
        %v1605 = vrot.slane %v1601, 6
        %v1608 = vrot.slane %v1603, 6
        %v1610 = vsel %vm1602, %v1605, %v1608
        %vm1611 = vcmp.lt.f32.partialorder %v1555, 1e-12
        %v1612 = vsel %vm1611, 1.0, %v1586
        %v1614 = vrot.slane %v1610, 2
        %v1616 = vsel %vm1611, 0.0, %v1614
        %s1618 = vtos %v1612
        %v1619 = vstv %s1618
        %v1621 = vmul.f32 %v1619, %v232
        %v1622 = vmul.f32 %v1619, %v233
        %s1624 = vtos %v1616
        %v1625 = vstv %s1624
        %v1627 = vmul.f32 %v1625, %v235
        %v1628 = vmul.f32 %v1625, %v236
        %v1629 = vadd.f32 %v1621, %v1627
        %v1630 = vadd.f32 %v1622, %v1628
        %v1631 = vmul.f32 %v1619, %v235
        %v1632 = vmul.f32 %v1619, %v236
        %v1633 = vmul.f32 %v1625, %v232
        %v1634 = vmul.f32 %v1625, %v233
        %v1635 = vsub.f32 %v1631, %v1633
        %v1636 = vsub.f32 %v1632, %v1634
        %v1637 = vsel %vm1411, %v1629, 1e+30
        %v1638 = vsel %vm1412, %v1630, 1e+30
        %v1639 = vmin.f32 %v1637, %v1638
        %v1640 = vrot.slane %v1639, 4
        %v1641 = vmin.f32 %v1639, %v1640
        %v1642 = vrot.slane %v1641, 2
        %v1643 = vmin.f32 %v1641, %v1642
        %v1644 = vrot.slane %v1643, 1
        %v1645 = vmin.f32 %v1643, %v1644
        %v1646 = vsel %vm1411, %v1635, 1e+30
        %v1647 = vsel %vm1412, %v1636, 1e+30
        %v1648 = vmin.f32 %v1646, %v1647
        %v1649 = vrot.slane %v1648, 4
        %v1650 = vmin.f32 %v1648, %v1649
        %v1651 = vrot.slane %v1650, 2
        %v1652 = vmin.f32 %v1650, %v1651
        %v1653 = vrot.slane %v1652, 1
        %v1654 = vmin.f32 %v1652, %v1653
        %v1655 = vsel %vm1411, %v238, 1e+30
        %v1656 = vsel %vm1412, %v239, 1e+30
        %v1657 = vmin.f32 %v1655, %v1656
        %v1658 = vrot.slane %v1657, 4
        %v1659 = vmin.f32 %v1657, %v1658
        %v1660 = vrot.slane %v1659, 2
        %v1661 = vmin.f32 %v1659, %v1660
        %v1662 = vrot.slane %v1661, 1
        %v1663 = vmin.f32 %v1661, %v1662
        %v1664 = vsel %vm302, %v1645, %v1654
        %v1665 = vsel %vm304, %v1664, %v1663
        %v1666 = vsel %vm1411, %v1629, -1e+30
        %v1667 = vsel %vm1412, %v1630, -1e+30
        %v1668 = vmax.f32 %v1666, %v1667
        %v1669 = vrot.slane %v1668, 4
        %v1670 = vmax.f32 %v1668, %v1669
        %v1671 = vrot.slane %v1670, 2
        %v1672 = vmax.f32 %v1670, %v1671
        %v1673 = vrot.slane %v1672, 1
        %v1674 = vmax.f32 %v1672, %v1673
        %v1675 = vsel %vm1411, %v1635, -1e+30
        %v1676 = vsel %vm1412, %v1636, -1e+30
        %v1677 = vmax.f32 %v1675, %v1676
        %v1678 = vrot.slane %v1677, 4
        %v1679 = vmax.f32 %v1677, %v1678
        %v1680 = vrot.slane %v1679, 2
        %v1681 = vmax.f32 %v1679, %v1680
        %v1682 = vrot.slane %v1681, 1
        %v1683 = vmax.f32 %v1681, %v1682
        %v1684 = vsel %vm1411, %v238, -1e+30
        %v1685 = vsel %vm1412, %v239, -1e+30
        %v1686 = vmax.f32 %v1684, %v1685
        %v1687 = vrot.slane %v1686, 4
        %v1688 = vmax.f32 %v1686, %v1687
        %v1689 = vrot.slane %v1688, 2
        %v1690 = vmax.f32 %v1688, %v1689
        %v1691 = vrot.slane %v1690, 1
        %v1692 = vmax.f32 %v1690, %v1691
        %v1693 = vsel %vm302, %v1674, %v1683
        %v1694 = vsel %vm304, %v1693, %v1692
        %v1695 = vsel %vm306, %v1665, inf
        %1696 = vmin.xlane.f32.xlu0 %v1695
        %v1697 = vpop.xlane.xlu0 %1696
        %v1698 = vsel %vm306, %v1694, -inf
        %1699 = vmax.xlane.f32.xlu0 %v1698
        %v1700 = vpop.xlane.xlu0 %1699
        %v1701 = vsub.f32 %v1700, %v1697
        %v1702 = vadd.f32 %v1697, %v1700
        %v1703 = vmul.f32 %v1702, 0.5
        %v1704 = vmul.f32 %v1612, %v1703
        %v1706 = vrot.slane %v1703, 1
        %v1708 = vmul.f32 %v1616, %v1706
        %v1709 = vsub.f32 %v1704, %v1708
        %v1710 = vmul.f32 %v1616, %v1703
        %v1711 = vmul.f32 %v1612, %v1706
        %v1712 = vadd.f32 %v1710, %v1711
        %1714 = vset.pattern.permute.xlu0 0
        %1715 = vperm.xlu0 %1714, %v1709
        %v1716 = vpop.permute.xlu0 %1715
        %v1718 = vsel %vm576, %v1716, 0.0
        %1720 = vset.pattern.permute.xlu0 0
        %1721 = vperm.xlu0 %1720, %v1712
        %v1722 = vpop.permute.xlu0 %1721
        %v1724 = vsel %vm583, %v1722, %v1718
        %v1726 = vrot.slane %v1724, 6
        %v1728 = vsel %vm590, %v1703, %v1726
        %v1730 = vrot.slane %v1728, 2
        %v1732 = vsel %vm595, %v1701, %v1730
        %v1734 = vrot.slane %v1732, 7
        %v1736 = vsel %vm600, %v1701, %v1734
        %v1738 = vrot.slane %v1736, 7
        %v1740 = vsel %vm605, %v1701, %v1738
        %1742 = vset.pattern.permute.xlu0 0
        %1743 = vperm.xlu0 %1742, %v1536
        %v1744 = vpop.permute.xlu0 %1743
        %v1747 = vrot.slane %v1740, 2
        %v1749 = vsel %vm610, %v1744, %v1747
        %v1751 = vrot.slane %v1749, 6
        %v1753 = vsel %vm620, %v1537, %v1751
        %v1755 = vrot.slane %v1753, 2
        %v1757 = vsel %vm625, %v1446, %v1755
        %vm1758 = vcmp.gt.f32.partialorder %v1446, 0.5
        %v1759 = vsel %vm1758, 1, 0
        %vm1760 = vcmp.eq.s32.totalorder %v1759, 1
        %v1761 = vsel %vm1760, %v1757, 0.0
        %1762 = vst [vmem:[%s217 + $0x3] sm:$0x1] %v1761
        %s1763 = sadd.s32 %s247, 16
        %s1764 = sld [smem:[#allocation5 + %s1763]]
        %s1765 = sadd.s32 %s247, 17
        %s1766 = sld [smem:[#allocation5 + %s1765]]
        %s1767 = sadd.s32 %s247, 18
        %s1768 = sld [smem:[#allocation5 + %s1767]]
        %s1769 = sadd.s32 %s247, 19
        %s1770 = sld [smem:[#allocation5 + %s1769]]
        %v1771 = vstv %s1770
        %vm1772 = vcmp.lt.f32.partialorder %v243, %v1771
        %vm1773 = vcmp.lt.f32.partialorder %v244, %v1771
        %v1774 = vstv %s1766
        %vm1775 = vcmp.ge.f32.partialorder %v243, %v1774
        %vm1776 = vcmp.ge.f32.partialorder %v244, %v1774
        %vm1777 = vmand %vm1772, %vm1775
        %vm1778 = vmand %vm1773, %vm1776
        %v1779 = vstv %s1768
        %vm1780 = vcmp.lt.f32.partialorder %v240, %v1779
        %vm1781 = vcmp.lt.f32.partialorder %v241, %v1779
        %vm1782 = vmand %vm1777, %vm1780
        %vm1783 = vmand %vm1778, %vm1781
        %v1784 = vstv %s1764
        %vm1785 = vcmp.ge.f32.partialorder %v240, %v1784
        %vm1786 = vcmp.ge.f32.partialorder %v241, %v1784
        %vm1787 = vmand %vm1782, %vm1785
        %vm1788 = vmand %vm1783, %vm1786
        %v1789 = vsel %vm1787, 1, 0
        %v1790 = vsel %vm1788, 1, 0
        %v1791 = vcvt.s32.f32 %v1789
        %v1792 = vcvt.s32.f32 %v1790
        %v1793 = vmul.f32 %v1791, %v232
        %v1794 = vmul.f32 %v1792, %v233
        %v1795 = vmul.f32 %v1791, %v235
        %v1796 = vmul.f32 %v1792, %v236
        %v1797 = vadd.f32 %v1791, %v1792
        %v1798 = vrot.slane %v1797, 4
        %v1799 = vadd.f32 %v1797, %v1798
        %v1800 = vrot.slane %v1799, 2
        %v1801 = vadd.f32 %v1799, %v1800
        %v1802 = vrot.slane %v1801, 1
        %v1803 = vadd.f32 %v1801, %v1802
        %v1804 = vadd.f32 %v1793, %v1794
        %v1805 = vrot.slane %v1804, 4
        %v1806 = vadd.f32 %v1804, %v1805
        %v1807 = vrot.slane %v1806, 2
        %v1808 = vadd.f32 %v1806, %v1807
        %v1809 = vrot.slane %v1808, 1
        %v1810 = vadd.f32 %v1808, %v1809
        %v1811 = vadd.f32 %v1795, %v1796
        %v1812 = vrot.slane %v1811, 4
        %v1813 = vadd.f32 %v1811, %v1812
        %v1814 = vrot.slane %v1813, 2
        %v1815 = vadd.f32 %v1813, %v1814
        %v1816 = vrot.slane %v1815, 1
        %v1817 = vadd.f32 %v1815, %v1816
        %v1818 = vsel %vm302, %v1803, %v1810
        %v1819 = vsel %vm304, %v1818, %v1817
        %v1820 = vsel %vm306, %v1819, 0.0
        %1821 = vadd.xlane.f32.xlu0 %v1820
        %v1822 = vpop.xlane.xlu0 %1821
        %v1823 = vmax.f32 %v1822, 1.0
        %v1825 = vrot.slane %v1823, 7
        %v1827 = vrcp.pop %v1825
        %v1828 = vmul.f32 %v1825, %v1827
        %v1829 = vsub.f32 1.0, %v1828
        %v1830 = vmul.f32 %v1827, %v1829
        %v1831 = vadd.f32 %v1827, %v1830
        %vm1832 = vweird.f32 %v1825
        %vm1833 = vweird.f32 %v1827
        %vm1834 = vmor %vm1832, %vm1833
        %v1835 = vsel %vm1834, %v1827, %v1831
        %v1836 = vand.u32 2147483647, %v1825
        %vm1837 = vcmp.eq.f32.partialorder %v1836, 8.507059e+37
        %v1838 = vand.u32 %v1825, 2147483648
        %v1839 = vor.u32 1.1754944e-38, %v1838
        %v1840 = vsel %vm1837, %v1839, %v1835
        %v1841 = vmul.f32 %v1822, %v1840
        %v1842 = vrot.slane %v1823, 6
        %v1844 = vrcp.pop %v1842
        %v1845 = vmul.f32 %v1842, %v1844
        %v1846 = vsub.f32 1.0, %v1845
        %v1847 = vmul.f32 %v1844, %v1846
        %v1848 = vadd.f32 %v1844, %v1847
        %vm1849 = vweird.f32 %v1842
        %vm1850 = vweird.f32 %v1844
        %vm1851 = vmor %vm1849, %vm1850
        %v1852 = vsel %vm1851, %v1844, %v1848
        %v1853 = vand.u32 2147483647, %v1842
        %vm1854 = vcmp.eq.f32.partialorder %v1853, 8.507059e+37
        %v1855 = vand.u32 %v1842, 2147483648
        %v1856 = vor.u32 1.1754944e-38, %v1855
        %v1857 = vsel %vm1854, %v1856, %v1852
        %v1858 = vmul.f32 %v1822, %v1857
        %v1860 = vrot.slane %v1841, 1
        %s1861 = vtos %v1860
        %v1862 = vstv %s1861
        %v1864 = vsub.f32 %v232, %v1862
        %v1865 = vsub.f32 %v233, %v1862
        %v1867 = vrot.slane %v1858, 2
        %s1868 = vtos %v1867
        %v1869 = vstv %s1868
        %v1871 = vsub.f32 %v235, %v1869
        %v1872 = vsub.f32 %v236, %v1869
        %v1873 = vmul.f32 %v1791, %v1864
        %v1874 = vmul.f32 %v1792, %v1865
        %v1875 = vmul.f32 %v1791, %v1871
        %v1876 = vmul.f32 %v1792, %v1872
        %v1877 = vmul.f32 %v1873, %v1864
        %v1878 = vmul.f32 %v1874, %v1865
        %v1879 = vadd.f32 %v1877, %v1878
        %v1880 = vrot.slane %v1879, 4
        %v1881 = vadd.f32 %v1879, %v1880
        %v1882 = vrot.slane %v1881, 2
        %v1883 = vadd.f32 %v1881, %v1882
        %v1884 = vrot.slane %v1883, 1
        %v1885 = vadd.f32 %v1883, %v1884
        %v1886 = vmul.f32 %v1875, %v1871
        %v1887 = vmul.f32 %v1876, %v1872
        %v1888 = vadd.f32 %v1886, %v1887
        %v1889 = vrot.slane %v1888, 4
        %v1890 = vadd.f32 %v1888, %v1889
        %v1891 = vrot.slane %v1890, 2
        %v1892 = vadd.f32 %v1890, %v1891
        %v1893 = vrot.slane %v1892, 1
        %v1894 = vadd.f32 %v1892, %v1893
        %v1895 = vmul.f32 %v1873, %v1871
        %v1896 = vmul.f32 %v1874, %v1872
        %v1897 = vadd.f32 %v1895, %v1896
        %v1898 = vrot.slane %v1897, 4
        %v1899 = vadd.f32 %v1897, %v1898
        %v1900 = vrot.slane %v1899, 2
        %v1901 = vadd.f32 %v1899, %v1900
        %v1902 = vrot.slane %v1901, 1
        %v1903 = vadd.f32 %v1901, %v1902
        %v1904 = vsel %vm302, %v1885, %v1894
        %v1905 = vsel %vm304, %v1904, %v1903
        %v1906 = vsel %vm306, %v1905, 0.0
        %1907 = vadd.xlane.f32.xlu0 %v1906
        %v1908 = vpop.xlane.xlu0 %1907
        %v1910 = vrot.slane %v1908, 1
        %v1912 = vsub.f32 %v1908, %v1910
        %v1913 = vmul.f32 %v1908, 2.0
        %v1914 = vmul.f32 %v1912, %v1912
        %v1915 = vmul.f32 %v1913, %v1913
        %v1917 = vrot.slane %v1915, 2
        %v1919 = vadd.f32 %v1914, %v1917
        %v1920 = vrsqrt.pop %v1919
        %v1921 = vmul.f32 %v1920, %v1919
        %v1922 = vmul.f32 %v1921, %v1920
        %v1923 = vmul.f32 0.5, %v1922
        %v1924 = vsub.f32 1.5, %v1923
        %v1925 = vmul.f32 %v1920, %v1924
        %v1926 = vmul.f32 %v1919, %v1925
        %vm1927 = vcmp.eq.f32.partialorder %v1919, inf
        %v1928 = vsel %vm1927, %v1919, %v1926
        %vm1929 = vcmp.eq.f32.partialorder %v1919, 0.0
        %v1930 = vand.u32 %v1919, 2147483648
        %v1931 = vsel %vm1929, %v1930, %v1928
        %v1932 = vmax.f32 %v1931, 1e-20
        %v1933 = vrcp.pop %v1932
        %v1934 = vmul.f32 %v1932, %v1933
        %v1935 = vsub.f32 1.0, %v1934
        %v1936 = vmul.f32 %v1933, %v1935
        %v1937 = vadd.f32 %v1933, %v1936
        %vm1938 = vweird.f32 %v1932
        %vm1939 = vweird.f32 %v1933
        %vm1940 = vmor %vm1938, %vm1939
        %v1941 = vsel %vm1940, %v1933, %v1937
        %v1942 = vand.u32 2147483647, %v1932
        %vm1943 = vcmp.eq.f32.partialorder %v1942, 8.507059e+37
        %v1944 = vand.u32 %v1932, 2147483648
        %v1945 = vor.u32 1.1754944e-38, %v1944
        %v1946 = vsel %vm1943, %v1945, %v1941
        %v1947 = vmul.f32 %v1912, %v1946
        %v1948 = vadd.f32 %v1947, 1.0
        %v1949 = vmul.f32 %v1948, 0.5
        %v1950 = vmax.f32 %v1949, 0.0
        %v1951 = vrsqrt.pop %v1950
        %v1952 = vmul.f32 %v1951, %v1950
        %v1953 = vmul.f32 %v1952, %v1951
        %v1954 = vmul.f32 0.5, %v1953
        %v1955 = vsub.f32 1.5, %v1954
        %v1956 = vmul.f32 %v1951, %v1955
        %v1957 = vmul.f32 %v1950, %v1956
        %vm1958 = vcmp.eq.f32.partialorder %v1950, inf
        %v1959 = vsel %vm1958, %v1950, %v1957
        %vm1960 = vcmp.eq.f32.partialorder %v1950, 0.0
        %v1961 = vand.u32 %v1950, 2147483648
        %v1962 = vsel %vm1960, %v1961, %v1959
        %v1963 = vsub.f32 1.0, %v1947
        %v1964 = vmul.f32 %v1963, 0.5
        %v1965 = vmax.f32 %v1964, 0.0
        %v1966 = vrsqrt.pop %v1965
        %v1967 = vmul.f32 %v1966, %v1965
        %v1968 = vmul.f32 %v1967, %v1966
        %v1969 = vmul.f32 0.5, %v1968
        %v1970 = vsub.f32 1.5, %v1969
        %v1971 = vmul.f32 %v1966, %v1970
        %v1972 = vmul.f32 %v1965, %v1971
        %vm1973 = vcmp.eq.f32.partialorder %v1965, inf
        %v1974 = vsel %vm1973, %v1965, %v1972
        %vm1975 = vcmp.eq.f32.partialorder %v1965, 0.0
        %v1976 = vand.u32 %v1965, 2147483648
        %v1977 = vsel %vm1975, %v1976, %v1974
        %vm1978 = vcmp.ge.f32.partialorder %v1913, 0.0
        %v1979 = vsub.f32 0.0, %v1977
        %v1981 = vrot.slane %v1977, 6
        %v1984 = vrot.slane %v1979, 6
        %v1986 = vsel %vm1978, %v1981, %v1984
        %vm1987 = vcmp.lt.f32.partialorder %v1931, 1e-12
        %v1988 = vsel %vm1987, 1.0, %v1962
        %v1990 = vrot.slane %v1986, 2
        %v1992 = vsel %vm1987, 0.0, %v1990
        %s1994 = vtos %v1988
        %v1995 = vstv %s1994
        %v1997 = vmul.f32 %v1995, %v232
        %v1998 = vmul.f32 %v1995, %v233
        %s2000 = vtos %v1992
        %v2001 = vstv %s2000
        %v2003 = vmul.f32 %v2001, %v235
        %v2004 = vmul.f32 %v2001, %v236
        %v2005 = vadd.f32 %v1997, %v2003
        %v2006 = vadd.f32 %v1998, %v2004
        %v2007 = vmul.f32 %v1995, %v235
        %v2008 = vmul.f32 %v1995, %v236
        %v2009 = vmul.f32 %v2001, %v232
        %v2010 = vmul.f32 %v2001, %v233
        %v2011 = vsub.f32 %v2007, %v2009
        %v2012 = vsub.f32 %v2008, %v2010
        %v2013 = vsel %vm1787, %v2005, 1e+30
        %v2014 = vsel %vm1788, %v2006, 1e+30
        %v2015 = vmin.f32 %v2013, %v2014
        %v2016 = vrot.slane %v2015, 4
        %v2017 = vmin.f32 %v2015, %v2016
        %v2018 = vrot.slane %v2017, 2
        %v2019 = vmin.f32 %v2017, %v2018
        %v2020 = vrot.slane %v2019, 1
        %v2021 = vmin.f32 %v2019, %v2020
        %v2022 = vsel %vm1787, %v2011, 1e+30
        %v2023 = vsel %vm1788, %v2012, 1e+30
        %v2024 = vmin.f32 %v2022, %v2023
        %v2025 = vrot.slane %v2024, 4
        %v2026 = vmin.f32 %v2024, %v2025
        %v2027 = vrot.slane %v2026, 2
        %v2028 = vmin.f32 %v2026, %v2027
        %v2029 = vrot.slane %v2028, 1
        %v2030 = vmin.f32 %v2028, %v2029
        %v2031 = vsel %vm1787, %v238, 1e+30
        %v2032 = vsel %vm1788, %v239, 1e+30
        %v2033 = vmin.f32 %v2031, %v2032
        %v2034 = vrot.slane %v2033, 4
        %v2035 = vmin.f32 %v2033, %v2034
        %v2036 = vrot.slane %v2035, 2
        %v2037 = vmin.f32 %v2035, %v2036
        %v2038 = vrot.slane %v2037, 1
        %v2039 = vmin.f32 %v2037, %v2038
        %v2040 = vsel %vm302, %v2021, %v2030
        %v2041 = vsel %vm304, %v2040, %v2039
        %v2042 = vsel %vm1787, %v2005, -1e+30
        %v2043 = vsel %vm1788, %v2006, -1e+30
        %v2044 = vmax.f32 %v2042, %v2043
        %v2045 = vrot.slane %v2044, 4
        %v2046 = vmax.f32 %v2044, %v2045
        %v2047 = vrot.slane %v2046, 2
        %v2048 = vmax.f32 %v2046, %v2047
        %v2049 = vrot.slane %v2048, 1
        %v2050 = vmax.f32 %v2048, %v2049
        %v2051 = vsel %vm1787, %v2011, -1e+30
        %v2052 = vsel %vm1788, %v2012, -1e+30
        %v2053 = vmax.f32 %v2051, %v2052
        %v2054 = vrot.slane %v2053, 4
        %v2055 = vmax.f32 %v2053, %v2054
        %v2056 = vrot.slane %v2055, 2
        %v2057 = vmax.f32 %v2055, %v2056
        %v2058 = vrot.slane %v2057, 1
        %v2059 = vmax.f32 %v2057, %v2058
        %v2060 = vsel %vm1787, %v238, -1e+30
        %v2061 = vsel %vm1788, %v239, -1e+30
        %v2062 = vmax.f32 %v2060, %v2061
        %v2063 = vrot.slane %v2062, 4
        %v2064 = vmax.f32 %v2062, %v2063
        %v2065 = vrot.slane %v2064, 2
        %v2066 = vmax.f32 %v2064, %v2065
        %v2067 = vrot.slane %v2066, 1
        %v2068 = vmax.f32 %v2066, %v2067
        %v2069 = vsel %vm302, %v2050, %v2059
        %v2070 = vsel %vm304, %v2069, %v2068
        %v2071 = vsel %vm306, %v2041, inf
        %2072 = vmin.xlane.f32.xlu0 %v2071
        %v2073 = vpop.xlane.xlu0 %2072
        %v2074 = vsel %vm306, %v2070, -inf
        %2075 = vmax.xlane.f32.xlu0 %v2074
        %v2076 = vpop.xlane.xlu0 %2075
        %v2077 = vsub.f32 %v2076, %v2073
        %v2078 = vadd.f32 %v2073, %v2076
        %v2079 = vmul.f32 %v2078, 0.5
        %v2080 = vmul.f32 %v1988, %v2079
        %v2082 = vrot.slane %v2079, 1
        %v2084 = vmul.f32 %v1992, %v2082
        %v2085 = vsub.f32 %v2080, %v2084
        %v2086 = vmul.f32 %v1992, %v2079
        %v2087 = vmul.f32 %v1988, %v2082
        %v2088 = vadd.f32 %v2086, %v2087
        %2090 = vset.pattern.permute.xlu0 0
        %2091 = vperm.xlu0 %2090, %v2085
        %v2092 = vpop.permute.xlu0 %2091
        %v2094 = vsel %vm576, %v2092, 0.0
        %2096 = vset.pattern.permute.xlu0 0
        %2097 = vperm.xlu0 %2096, %v2088
        %v2098 = vpop.permute.xlu0 %2097
        %v2100 = vsel %vm583, %v2098, %v2094
        %v2102 = vrot.slane %v2100, 6
        %v2104 = vsel %vm590, %v2079, %v2102
        %v2106 = vrot.slane %v2104, 2
        %v2108 = vsel %vm595, %v2077, %v2106
        %v2110 = vrot.slane %v2108, 7
        %v2112 = vsel %vm600, %v2077, %v2110
        %v2114 = vrot.slane %v2112, 7
        %v2116 = vsel %vm605, %v2077, %v2114
        %2118 = vset.pattern.permute.xlu0 0
        %2119 = vperm.xlu0 %2118, %v1912
        %v2120 = vpop.permute.xlu0 %2119
        %v2123 = vrot.slane %v2116, 2
        %v2125 = vsel %vm610, %v2120, %v2123
        %v2127 = vrot.slane %v2125, 6
        %v2129 = vsel %vm620, %v1913, %v2127
        %v2131 = vrot.slane %v2129, 2
        %v2133 = vsel %vm625, %v1822, %v2131
        %vm2134 = vcmp.gt.f32.partialorder %v1822, 0.5
        %v2135 = vsel %vm2134, 1, 0
        %vm2136 = vcmp.eq.s32.totalorder %v2135, 1
        %v2137 = vsel %vm2136, %v2133, 0.0
        %2138 = vst [vmem:[%s217 + $0x4] sm:$0x1] %v2137
        %s2139 = sadd.s32 %s247, 20
        %s2140 = sld [smem:[#allocation5 + %s2139]]
        %s2141 = sadd.s32 %s247, 21
        %s2142 = sld [smem:[#allocation5 + %s2141]]
        %s2143 = sadd.s32 %s247, 22
        %s2144 = sld [smem:[#allocation5 + %s2143]]
        %s2145 = sadd.s32 %s247, 23
        %s2146 = sld [smem:[#allocation5 + %s2145]]
        %v2147 = vstv %s2146
        %vm2148 = vcmp.lt.f32.partialorder %v243, %v2147
        %vm2149 = vcmp.lt.f32.partialorder %v244, %v2147
        %v2150 = vstv %s2142
        %vm2151 = vcmp.ge.f32.partialorder %v243, %v2150
        %vm2152 = vcmp.ge.f32.partialorder %v244, %v2150
        %vm2153 = vmand %vm2148, %vm2151
        %vm2154 = vmand %vm2149, %vm2152
        %v2155 = vstv %s2144
        %vm2156 = vcmp.lt.f32.partialorder %v240, %v2155
        %vm2157 = vcmp.lt.f32.partialorder %v241, %v2155
        %vm2158 = vmand %vm2153, %vm2156
        %vm2159 = vmand %vm2154, %vm2157
        %v2160 = vstv %s2140
        %vm2161 = vcmp.ge.f32.partialorder %v240, %v2160
        %vm2162 = vcmp.ge.f32.partialorder %v241, %v2160
        %vm2163 = vmand %vm2158, %vm2161
        %vm2164 = vmand %vm2159, %vm2162
        %v2165 = vsel %vm2163, 1, 0
        %v2166 = vsel %vm2164, 1, 0
        %v2167 = vcvt.s32.f32 %v2165
        %v2168 = vcvt.s32.f32 %v2166
        %v2169 = vmul.f32 %v2167, %v232
        %v2170 = vmul.f32 %v2168, %v233
        %v2171 = vmul.f32 %v2167, %v235
        %v2172 = vmul.f32 %v2168, %v236
        %v2173 = vadd.f32 %v2167, %v2168
        %v2174 = vrot.slane %v2173, 4
        %v2175 = vadd.f32 %v2173, %v2174
        %v2176 = vrot.slane %v2175, 2
        %v2177 = vadd.f32 %v2175, %v2176
        %v2178 = vrot.slane %v2177, 1
        %v2179 = vadd.f32 %v2177, %v2178
        %v2180 = vadd.f32 %v2169, %v2170
        %v2181 = vrot.slane %v2180, 4
        %v2182 = vadd.f32 %v2180, %v2181
        %v2183 = vrot.slane %v2182, 2
        %v2184 = vadd.f32 %v2182, %v2183
        %v2185 = vrot.slane %v2184, 1
        %v2186 = vadd.f32 %v2184, %v2185
        %v2187 = vadd.f32 %v2171, %v2172
        %v2188 = vrot.slane %v2187, 4
        %v2189 = vadd.f32 %v2187, %v2188
        %v2190 = vrot.slane %v2189, 2
        %v2191 = vadd.f32 %v2189, %v2190
        %v2192 = vrot.slane %v2191, 1
        %v2193 = vadd.f32 %v2191, %v2192
        %v2194 = vsel %vm302, %v2179, %v2186
        %v2195 = vsel %vm304, %v2194, %v2193
        %v2196 = vsel %vm306, %v2195, 0.0
        %2197 = vadd.xlane.f32.xlu0 %v2196
        %v2198 = vpop.xlane.xlu0 %2197
        %v2199 = vmax.f32 %v2198, 1.0
        %v2201 = vrot.slane %v2199, 7
        %v2203 = vrcp.pop %v2201
        %v2204 = vmul.f32 %v2201, %v2203
        %v2205 = vsub.f32 1.0, %v2204
        %v2206 = vmul.f32 %v2203, %v2205
        %v2207 = vadd.f32 %v2203, %v2206
        %vm2208 = vweird.f32 %v2201
        %vm2209 = vweird.f32 %v2203
        %vm2210 = vmor %vm2208, %vm2209
        %v2211 = vsel %vm2210, %v2203, %v2207
        %v2212 = vand.u32 2147483647, %v2201
        %vm2213 = vcmp.eq.f32.partialorder %v2212, 8.507059e+37
        %v2214 = vand.u32 %v2201, 2147483648
        %v2215 = vor.u32 1.1754944e-38, %v2214
        %v2216 = vsel %vm2213, %v2215, %v2211
        %v2217 = vmul.f32 %v2198, %v2216
        %v2218 = vrot.slane %v2199, 6
        %v2220 = vrcp.pop %v2218
        %v2221 = vmul.f32 %v2218, %v2220
        %v2222 = vsub.f32 1.0, %v2221
        %v2223 = vmul.f32 %v2220, %v2222
        %v2224 = vadd.f32 %v2220, %v2223
        %vm2225 = vweird.f32 %v2218
        %vm2226 = vweird.f32 %v2220
        %vm2227 = vmor %vm2225, %vm2226
        %v2228 = vsel %vm2227, %v2220, %v2224
        %v2229 = vand.u32 2147483647, %v2218
        %vm2230 = vcmp.eq.f32.partialorder %v2229, 8.507059e+37
        %v2231 = vand.u32 %v2218, 2147483648
        %v2232 = vor.u32 1.1754944e-38, %v2231
        %v2233 = vsel %vm2230, %v2232, %v2228
        %v2234 = vmul.f32 %v2198, %v2233
        %v2236 = vrot.slane %v2217, 1
        %s2237 = vtos %v2236
        %v2238 = vstv %s2237
        %v2240 = vsub.f32 %v232, %v2238
        %v2241 = vsub.f32 %v233, %v2238
        %v2243 = vrot.slane %v2234, 2
        %s2244 = vtos %v2243
        %v2245 = vstv %s2244
        %v2247 = vsub.f32 %v235, %v2245
        %v2248 = vsub.f32 %v236, %v2245
        %v2249 = vmul.f32 %v2167, %v2240
        %v2250 = vmul.f32 %v2168, %v2241
        %v2251 = vmul.f32 %v2167, %v2247
        %v2252 = vmul.f32 %v2168, %v2248
        %v2253 = vmul.f32 %v2249, %v2240
        %v2254 = vmul.f32 %v2250, %v2241
        %v2255 = vadd.f32 %v2253, %v2254
        %v2256 = vrot.slane %v2255, 4
        %v2257 = vadd.f32 %v2255, %v2256
        %v2258 = vrot.slane %v2257, 2
        %v2259 = vadd.f32 %v2257, %v2258
        %v2260 = vrot.slane %v2259, 1
        %v2261 = vadd.f32 %v2259, %v2260
        %v2262 = vmul.f32 %v2251, %v2247
        %v2263 = vmul.f32 %v2252, %v2248
        %v2264 = vadd.f32 %v2262, %v2263
        %v2265 = vrot.slane %v2264, 4
        %v2266 = vadd.f32 %v2264, %v2265
        %v2267 = vrot.slane %v2266, 2
        %v2268 = vadd.f32 %v2266, %v2267
        %v2269 = vrot.slane %v2268, 1
        %v2270 = vadd.f32 %v2268, %v2269
        %v2271 = vmul.f32 %v2249, %v2247
        %v2272 = vmul.f32 %v2250, %v2248
        %v2273 = vadd.f32 %v2271, %v2272
        %v2274 = vrot.slane %v2273, 4
        %v2275 = vadd.f32 %v2273, %v2274
        %v2276 = vrot.slane %v2275, 2
        %v2277 = vadd.f32 %v2275, %v2276
        %v2278 = vrot.slane %v2277, 1
        %v2279 = vadd.f32 %v2277, %v2278
        %v2280 = vsel %vm302, %v2261, %v2270
        %v2281 = vsel %vm304, %v2280, %v2279
        %v2282 = vsel %vm306, %v2281, 0.0
        %2283 = vadd.xlane.f32.xlu0 %v2282
        %v2284 = vpop.xlane.xlu0 %2283
        %v2286 = vrot.slane %v2284, 1
        %v2288 = vsub.f32 %v2284, %v2286
        %v2289 = vmul.f32 %v2284, 2.0
        %v2290 = vmul.f32 %v2288, %v2288
        %v2291 = vmul.f32 %v2289, %v2289
        %v2293 = vrot.slane %v2291, 2
        %v2295 = vadd.f32 %v2290, %v2293
        %v2296 = vrsqrt.pop %v2295
        %v2297 = vmul.f32 %v2296, %v2295
        %v2298 = vmul.f32 %v2297, %v2296
        %v2299 = vmul.f32 0.5, %v2298
        %v2300 = vsub.f32 1.5, %v2299
        %v2301 = vmul.f32 %v2296, %v2300
        %v2302 = vmul.f32 %v2295, %v2301
        %vm2303 = vcmp.eq.f32.partialorder %v2295, inf
        %v2304 = vsel %vm2303, %v2295, %v2302
        %vm2305 = vcmp.eq.f32.partialorder %v2295, 0.0
        %v2306 = vand.u32 %v2295, 2147483648
        %v2307 = vsel %vm2305, %v2306, %v2304
        %v2308 = vmax.f32 %v2307, 1e-20
        %v2309 = vrcp.pop %v2308
        %v2310 = vmul.f32 %v2308, %v2309
        %v2311 = vsub.f32 1.0, %v2310
        %v2312 = vmul.f32 %v2309, %v2311
        %v2313 = vadd.f32 %v2309, %v2312
        %vm2314 = vweird.f32 %v2308
        %vm2315 = vweird.f32 %v2309
        %vm2316 = vmor %vm2314, %vm2315
        %v2317 = vsel %vm2316, %v2309, %v2313
        %v2318 = vand.u32 2147483647, %v2308
        %vm2319 = vcmp.eq.f32.partialorder %v2318, 8.507059e+37
        %v2320 = vand.u32 %v2308, 2147483648
        %v2321 = vor.u32 1.1754944e-38, %v2320
        %v2322 = vsel %vm2319, %v2321, %v2317
        %v2323 = vmul.f32 %v2288, %v2322
        %v2324 = vadd.f32 %v2323, 1.0
        %v2325 = vmul.f32 %v2324, 0.5
        %v2326 = vmax.f32 %v2325, 0.0
        %v2327 = vrsqrt.pop %v2326
        %v2328 = vmul.f32 %v2327, %v2326
        %v2329 = vmul.f32 %v2328, %v2327
        %v2330 = vmul.f32 0.5, %v2329
        %v2331 = vsub.f32 1.5, %v2330
        %v2332 = vmul.f32 %v2327, %v2331
        %v2333 = vmul.f32 %v2326, %v2332
        %vm2334 = vcmp.eq.f32.partialorder %v2326, inf
        %v2335 = vsel %vm2334, %v2326, %v2333
        %vm2336 = vcmp.eq.f32.partialorder %v2326, 0.0
        %v2337 = vand.u32 %v2326, 2147483648
        %v2338 = vsel %vm2336, %v2337, %v2335
        %v2339 = vsub.f32 1.0, %v2323
        %v2340 = vmul.f32 %v2339, 0.5
        %v2341 = vmax.f32 %v2340, 0.0
        %v2342 = vrsqrt.pop %v2341
        %v2343 = vmul.f32 %v2342, %v2341
        %v2344 = vmul.f32 %v2343, %v2342
        %v2345 = vmul.f32 0.5, %v2344
        %v2346 = vsub.f32 1.5, %v2345
        %v2347 = vmul.f32 %v2342, %v2346
        %v2348 = vmul.f32 %v2341, %v2347
        %vm2349 = vcmp.eq.f32.partialorder %v2341, inf
        %v2350 = vsel %vm2349, %v2341, %v2348
        %vm2351 = vcmp.eq.f32.partialorder %v2341, 0.0
        %v2352 = vand.u32 %v2341, 2147483648
        %v2353 = vsel %vm2351, %v2352, %v2350
        %vm2354 = vcmp.ge.f32.partialorder %v2289, 0.0
        %v2355 = vsub.f32 0.0, %v2353
        %v2357 = vrot.slane %v2353, 6
        %v2360 = vrot.slane %v2355, 6
        %v2362 = vsel %vm2354, %v2357, %v2360
        %vm2363 = vcmp.lt.f32.partialorder %v2307, 1e-12
        %v2364 = vsel %vm2363, 1.0, %v2338
        %v2366 = vrot.slane %v2362, 2
        %v2368 = vsel %vm2363, 0.0, %v2366
        %s2370 = vtos %v2364
        %v2371 = vstv %s2370
        %v2373 = vmul.f32 %v2371, %v232
        %v2374 = vmul.f32 %v2371, %v233
        %s2376 = vtos %v2368
        %v2377 = vstv %s2376
        %v2379 = vmul.f32 %v2377, %v235
        %v2380 = vmul.f32 %v2377, %v236
        %v2381 = vadd.f32 %v2373, %v2379
        %v2382 = vadd.f32 %v2374, %v2380
        %v2383 = vmul.f32 %v2371, %v235
        %v2384 = vmul.f32 %v2371, %v236
        %v2385 = vmul.f32 %v2377, %v232
        %v2386 = vmul.f32 %v2377, %v233
        %v2387 = vsub.f32 %v2383, %v2385
        %v2388 = vsub.f32 %v2384, %v2386
        %v2389 = vsel %vm2163, %v2381, 1e+30
        %v2390 = vsel %vm2164, %v2382, 1e+30
        %v2391 = vmin.f32 %v2389, %v2390
        %v2392 = vrot.slane %v2391, 4
        %v2393 = vmin.f32 %v2391, %v2392
        %v2394 = vrot.slane %v2393, 2
        %v2395 = vmin.f32 %v2393, %v2394
        %v2396 = vrot.slane %v2395, 1
        %v2397 = vmin.f32 %v2395, %v2396
        %v2398 = vsel %vm2163, %v2387, 1e+30
        %v2399 = vsel %vm2164, %v2388, 1e+30
        %v2400 = vmin.f32 %v2398, %v2399
        %v2401 = vrot.slane %v2400, 4
        %v2402 = vmin.f32 %v2400, %v2401
        %v2403 = vrot.slane %v2402, 2
        %v2404 = vmin.f32 %v2402, %v2403
        %v2405 = vrot.slane %v2404, 1
        %v2406 = vmin.f32 %v2404, %v2405
        %v2407 = vsel %vm2163, %v238, 1e+30
        %v2408 = vsel %vm2164, %v239, 1e+30
        %v2409 = vmin.f32 %v2407, %v2408
        %v2410 = vrot.slane %v2409, 4
        %v2411 = vmin.f32 %v2409, %v2410
        %v2412 = vrot.slane %v2411, 2
        %v2413 = vmin.f32 %v2411, %v2412
        %v2414 = vrot.slane %v2413, 1
        %v2415 = vmin.f32 %v2413, %v2414
        %v2416 = vsel %vm302, %v2397, %v2406
        %v2417 = vsel %vm304, %v2416, %v2415
        %v2418 = vsel %vm2163, %v2381, -1e+30
        %v2419 = vsel %vm2164, %v2382, -1e+30
        %v2420 = vmax.f32 %v2418, %v2419
        %v2421 = vrot.slane %v2420, 4
        %v2422 = vmax.f32 %v2420, %v2421
        %v2423 = vrot.slane %v2422, 2
        %v2424 = vmax.f32 %v2422, %v2423
        %v2425 = vrot.slane %v2424, 1
        %v2426 = vmax.f32 %v2424, %v2425
        %v2427 = vsel %vm2163, %v2387, -1e+30
        %v2428 = vsel %vm2164, %v2388, -1e+30
        %v2429 = vmax.f32 %v2427, %v2428
        %v2430 = vrot.slane %v2429, 4
        %v2431 = vmax.f32 %v2429, %v2430
        %v2432 = vrot.slane %v2431, 2
        %v2433 = vmax.f32 %v2431, %v2432
        %v2434 = vrot.slane %v2433, 1
        %v2435 = vmax.f32 %v2433, %v2434
        %v2436 = vsel %vm2163, %v238, -1e+30
        %v2437 = vsel %vm2164, %v239, -1e+30
        %v2438 = vmax.f32 %v2436, %v2437
        %v2439 = vrot.slane %v2438, 4
        %v2440 = vmax.f32 %v2438, %v2439
        %v2441 = vrot.slane %v2440, 2
        %v2442 = vmax.f32 %v2440, %v2441
        %v2443 = vrot.slane %v2442, 1
        %v2444 = vmax.f32 %v2442, %v2443
        %v2445 = vsel %vm302, %v2426, %v2435
        %v2446 = vsel %vm304, %v2445, %v2444
        %v2447 = vsel %vm306, %v2417, inf
        %2448 = vmin.xlane.f32.xlu0 %v2447
        %v2449 = vpop.xlane.xlu0 %2448
        %v2450 = vsel %vm306, %v2446, -inf
        %2451 = vmax.xlane.f32.xlu0 %v2450
        %v2452 = vpop.xlane.xlu0 %2451
        %v2453 = vsub.f32 %v2452, %v2449
        %v2454 = vadd.f32 %v2449, %v2452
        %v2455 = vmul.f32 %v2454, 0.5
        %v2456 = vmul.f32 %v2364, %v2455
        %v2458 = vrot.slane %v2455, 1
        %v2460 = vmul.f32 %v2368, %v2458
        %v2461 = vsub.f32 %v2456, %v2460
        %v2462 = vmul.f32 %v2368, %v2455
        %v2463 = vmul.f32 %v2364, %v2458
        %v2464 = vadd.f32 %v2462, %v2463
        %2466 = vset.pattern.permute.xlu0 0
        %2467 = vperm.xlu0 %2466, %v2461
        %v2468 = vpop.permute.xlu0 %2467
        %v2470 = vsel %vm576, %v2468, 0.0
        %2472 = vset.pattern.permute.xlu0 0
        %2473 = vperm.xlu0 %2472, %v2464
        %v2474 = vpop.permute.xlu0 %2473
        %v2476 = vsel %vm583, %v2474, %v2470
        %v2478 = vrot.slane %v2476, 6
        %v2480 = vsel %vm590, %v2455, %v2478
        %v2482 = vrot.slane %v2480, 2
        %v2484 = vsel %vm595, %v2453, %v2482
        %v2486 = vrot.slane %v2484, 7
        %v2488 = vsel %vm600, %v2453, %v2486
        %v2490 = vrot.slane %v2488, 7
        %v2492 = vsel %vm605, %v2453, %v2490
        %2494 = vset.pattern.permute.xlu0 0
        %2495 = vperm.xlu0 %2494, %v2288
        %v2496 = vpop.permute.xlu0 %2495
        %v2499 = vrot.slane %v2492, 2
        %v2501 = vsel %vm610, %v2496, %v2499
        %v2503 = vrot.slane %v2501, 6
        %v2505 = vsel %vm620, %v2289, %v2503
        %v2507 = vrot.slane %v2505, 2
        %v2509 = vsel %vm625, %v2198, %v2507
        %vm2510 = vcmp.gt.f32.partialorder %v2198, 0.5
        %v2511 = vsel %vm2510, 1, 0
        %vm2512 = vcmp.eq.s32.totalorder %v2511, 1
        %v2513 = vsel %vm2512, %v2509, 0.0
        %2514 = vst [vmem:[%s217 + $0x5] sm:$0x1] %v2513
        %s2515 = sadd.s32 %s247, 24
        %s2516 = sld [smem:[#allocation5 + %s2515]]
        %s2517 = sadd.s32 %s247, 25
        %s2518 = sld [smem:[#allocation5 + %s2517]]
        %s2519 = sadd.s32 %s247, 26
        %s2520 = sld [smem:[#allocation5 + %s2519]]
        %s2521 = sadd.s32 %s247, 27
        %s2522 = sld [smem:[#allocation5 + %s2521]]
        %v2523 = vstv %s2522
        %vm2524 = vcmp.lt.f32.partialorder %v243, %v2523
        %vm2525 = vcmp.lt.f32.partialorder %v244, %v2523
        %v2526 = vstv %s2518
        %vm2527 = vcmp.ge.f32.partialorder %v243, %v2526
        %vm2528 = vcmp.ge.f32.partialorder %v244, %v2526
        %vm2529 = vmand %vm2524, %vm2527
        %vm2530 = vmand %vm2525, %vm2528
        %v2531 = vstv %s2520
        %vm2532 = vcmp.lt.f32.partialorder %v240, %v2531
        %vm2533 = vcmp.lt.f32.partialorder %v241, %v2531
        %vm2534 = vmand %vm2529, %vm2532
        %vm2535 = vmand %vm2530, %vm2533
        %v2536 = vstv %s2516
        %vm2537 = vcmp.ge.f32.partialorder %v240, %v2536
        %vm2538 = vcmp.ge.f32.partialorder %v241, %v2536
        %vm2539 = vmand %vm2534, %vm2537
        %vm2540 = vmand %vm2535, %vm2538
        %v2541 = vsel %vm2539, 1, 0
        %v2542 = vsel %vm2540, 1, 0
        %v2543 = vcvt.s32.f32 %v2541
        %v2544 = vcvt.s32.f32 %v2542
        %v2545 = vmul.f32 %v2543, %v232
        %v2546 = vmul.f32 %v2544, %v233
        %v2547 = vmul.f32 %v2543, %v235
        %v2548 = vmul.f32 %v2544, %v236
        %v2549 = vadd.f32 %v2543, %v2544
        %v2550 = vrot.slane %v2549, 4
        %v2551 = vadd.f32 %v2549, %v2550
        %v2552 = vrot.slane %v2551, 2
        %v2553 = vadd.f32 %v2551, %v2552
        %v2554 = vrot.slane %v2553, 1
        %v2555 = vadd.f32 %v2553, %v2554
        %v2556 = vadd.f32 %v2545, %v2546
        %v2557 = vrot.slane %v2556, 4
        %v2558 = vadd.f32 %v2556, %v2557
        %v2559 = vrot.slane %v2558, 2
        %v2560 = vadd.f32 %v2558, %v2559
        %v2561 = vrot.slane %v2560, 1
        %v2562 = vadd.f32 %v2560, %v2561
        %v2563 = vadd.f32 %v2547, %v2548
        %v2564 = vrot.slane %v2563, 4
        %v2565 = vadd.f32 %v2563, %v2564
        %v2566 = vrot.slane %v2565, 2
        %v2567 = vadd.f32 %v2565, %v2566
        %v2568 = vrot.slane %v2567, 1
        %v2569 = vadd.f32 %v2567, %v2568
        %v2570 = vsel %vm302, %v2555, %v2562
        %v2571 = vsel %vm304, %v2570, %v2569
        %v2572 = vsel %vm306, %v2571, 0.0
        %2573 = vadd.xlane.f32.xlu0 %v2572
        %v2574 = vpop.xlane.xlu0 %2573
        %v2575 = vmax.f32 %v2574, 1.0
        %v2577 = vrot.slane %v2575, 7
        %v2579 = vrcp.pop %v2577
        %v2580 = vmul.f32 %v2577, %v2579
        %v2581 = vsub.f32 1.0, %v2580
        %v2582 = vmul.f32 %v2579, %v2581
        %v2583 = vadd.f32 %v2579, %v2582
        %vm2584 = vweird.f32 %v2577
        %vm2585 = vweird.f32 %v2579
        %vm2586 = vmor %vm2584, %vm2585
        %v2587 = vsel %vm2586, %v2579, %v2583
        %v2588 = vand.u32 2147483647, %v2577
        %vm2589 = vcmp.eq.f32.partialorder %v2588, 8.507059e+37
        %v2590 = vand.u32 %v2577, 2147483648
        %v2591 = vor.u32 1.1754944e-38, %v2590
        %v2592 = vsel %vm2589, %v2591, %v2587
        %v2593 = vmul.f32 %v2574, %v2592
        %v2594 = vrot.slane %v2575, 6
        %v2596 = vrcp.pop %v2594
        %v2597 = vmul.f32 %v2594, %v2596
        %v2598 = vsub.f32 1.0, %v2597
        %v2599 = vmul.f32 %v2596, %v2598
        %v2600 = vadd.f32 %v2596, %v2599
        %vm2601 = vweird.f32 %v2594
        %vm2602 = vweird.f32 %v2596
        %vm2603 = vmor %vm2601, %vm2602
        %v2604 = vsel %vm2603, %v2596, %v2600
        %v2605 = vand.u32 2147483647, %v2594
        %vm2606 = vcmp.eq.f32.partialorder %v2605, 8.507059e+37
        %v2607 = vand.u32 %v2594, 2147483648
        %v2608 = vor.u32 1.1754944e-38, %v2607
        %v2609 = vsel %vm2606, %v2608, %v2604
        %v2610 = vmul.f32 %v2574, %v2609
        %v2612 = vrot.slane %v2593, 1
        %s2613 = vtos %v2612
        %v2614 = vstv %s2613
        %v2616 = vsub.f32 %v232, %v2614
        %v2617 = vsub.f32 %v233, %v2614
        %v2619 = vrot.slane %v2610, 2
        %s2620 = vtos %v2619
        %v2621 = vstv %s2620
        %v2623 = vsub.f32 %v235, %v2621
        %v2624 = vsub.f32 %v236, %v2621
        %v2625 = vmul.f32 %v2543, %v2616
        %v2626 = vmul.f32 %v2544, %v2617
        %v2627 = vmul.f32 %v2543, %v2623
        %v2628 = vmul.f32 %v2544, %v2624
        %v2629 = vmul.f32 %v2625, %v2616
        %v2630 = vmul.f32 %v2626, %v2617
        %v2631 = vadd.f32 %v2629, %v2630
        %v2632 = vrot.slane %v2631, 4
        %v2633 = vadd.f32 %v2631, %v2632
        %v2634 = vrot.slane %v2633, 2
        %v2635 = vadd.f32 %v2633, %v2634
        %v2636 = vrot.slane %v2635, 1
        %v2637 = vadd.f32 %v2635, %v2636
        %v2638 = vmul.f32 %v2627, %v2623
        %v2639 = vmul.f32 %v2628, %v2624
        %v2640 = vadd.f32 %v2638, %v2639
        %v2641 = vrot.slane %v2640, 4
        %v2642 = vadd.f32 %v2640, %v2641
        %v2643 = vrot.slane %v2642, 2
        %v2644 = vadd.f32 %v2642, %v2643
        %v2645 = vrot.slane %v2644, 1
        %v2646 = vadd.f32 %v2644, %v2645
        %v2647 = vmul.f32 %v2625, %v2623
        %v2648 = vmul.f32 %v2626, %v2624
        %v2649 = vadd.f32 %v2647, %v2648
        %v2650 = vrot.slane %v2649, 4
        %v2651 = vadd.f32 %v2649, %v2650
        %v2652 = vrot.slane %v2651, 2
        %v2653 = vadd.f32 %v2651, %v2652
        %v2654 = vrot.slane %v2653, 1
        %v2655 = vadd.f32 %v2653, %v2654
        %v2656 = vsel %vm302, %v2637, %v2646
        %v2657 = vsel %vm304, %v2656, %v2655
        %v2658 = vsel %vm306, %v2657, 0.0
        %2659 = vadd.xlane.f32.xlu0 %v2658
        %v2660 = vpop.xlane.xlu0 %2659
        %v2662 = vrot.slane %v2660, 1
        %v2664 = vsub.f32 %v2660, %v2662
        %v2665 = vmul.f32 %v2660, 2.0
        %v2666 = vmul.f32 %v2664, %v2664
        %v2667 = vmul.f32 %v2665, %v2665
        %v2669 = vrot.slane %v2667, 2
        %v2671 = vadd.f32 %v2666, %v2669
        %v2672 = vrsqrt.pop %v2671
        %v2673 = vmul.f32 %v2672, %v2671
        %v2674 = vmul.f32 %v2673, %v2672
        %v2675 = vmul.f32 0.5, %v2674
        %v2676 = vsub.f32 1.5, %v2675
        %v2677 = vmul.f32 %v2672, %v2676
        %v2678 = vmul.f32 %v2671, %v2677
        %vm2679 = vcmp.eq.f32.partialorder %v2671, inf
        %v2680 = vsel %vm2679, %v2671, %v2678
        %vm2681 = vcmp.eq.f32.partialorder %v2671, 0.0
        %v2682 = vand.u32 %v2671, 2147483648
        %v2683 = vsel %vm2681, %v2682, %v2680
        %v2684 = vmax.f32 %v2683, 1e-20
        %v2685 = vrcp.pop %v2684
        %v2686 = vmul.f32 %v2684, %v2685
        %v2687 = vsub.f32 1.0, %v2686
        %v2688 = vmul.f32 %v2685, %v2687
        %v2689 = vadd.f32 %v2685, %v2688
        %vm2690 = vweird.f32 %v2684
        %vm2691 = vweird.f32 %v2685
        %vm2692 = vmor %vm2690, %vm2691
        %v2693 = vsel %vm2692, %v2685, %v2689
        %v2694 = vand.u32 2147483647, %v2684
        %vm2695 = vcmp.eq.f32.partialorder %v2694, 8.507059e+37
        %v2696 = vand.u32 %v2684, 2147483648
        %v2697 = vor.u32 1.1754944e-38, %v2696
        %v2698 = vsel %vm2695, %v2697, %v2693
        %v2699 = vmul.f32 %v2664, %v2698
        %v2700 = vadd.f32 %v2699, 1.0
        %v2701 = vmul.f32 %v2700, 0.5
        %v2702 = vmax.f32 %v2701, 0.0
        %v2703 = vrsqrt.pop %v2702
        %v2704 = vmul.f32 %v2703, %v2702
        %v2705 = vmul.f32 %v2704, %v2703
        %v2706 = vmul.f32 0.5, %v2705
        %v2707 = vsub.f32 1.5, %v2706
        %v2708 = vmul.f32 %v2703, %v2707
        %v2709 = vmul.f32 %v2702, %v2708
        %vm2710 = vcmp.eq.f32.partialorder %v2702, inf
        %v2711 = vsel %vm2710, %v2702, %v2709
        %vm2712 = vcmp.eq.f32.partialorder %v2702, 0.0
        %v2713 = vand.u32 %v2702, 2147483648
        %v2714 = vsel %vm2712, %v2713, %v2711
        %v2715 = vsub.f32 1.0, %v2699
        %v2716 = vmul.f32 %v2715, 0.5
        %v2717 = vmax.f32 %v2716, 0.0
        %v2718 = vrsqrt.pop %v2717
        %v2719 = vmul.f32 %v2718, %v2717
        %v2720 = vmul.f32 %v2719, %v2718
        %v2721 = vmul.f32 0.5, %v2720
        %v2722 = vsub.f32 1.5, %v2721
        %v2723 = vmul.f32 %v2718, %v2722
        %v2724 = vmul.f32 %v2717, %v2723
        %vm2725 = vcmp.eq.f32.partialorder %v2717, inf
        %v2726 = vsel %vm2725, %v2717, %v2724
        %vm2727 = vcmp.eq.f32.partialorder %v2717, 0.0
        %v2728 = vand.u32 %v2717, 2147483648
        %v2729 = vsel %vm2727, %v2728, %v2726
        %vm2730 = vcmp.ge.f32.partialorder %v2665, 0.0
        %v2731 = vsub.f32 0.0, %v2729
        %v2733 = vrot.slane %v2729, 6
        %v2736 = vrot.slane %v2731, 6
        %v2738 = vsel %vm2730, %v2733, %v2736
        %vm2739 = vcmp.lt.f32.partialorder %v2683, 1e-12
        %v2740 = vsel %vm2739, 1.0, %v2714
        %v2742 = vrot.slane %v2738, 2
        %v2744 = vsel %vm2739, 0.0, %v2742
        %s2746 = vtos %v2740
        %v2747 = vstv %s2746
        %v2749 = vmul.f32 %v2747, %v232
        %v2750 = vmul.f32 %v2747, %v233
        %s2752 = vtos %v2744
        %v2753 = vstv %s2752
        %v2755 = vmul.f32 %v2753, %v235
        %v2756 = vmul.f32 %v2753, %v236
        %v2757 = vadd.f32 %v2749, %v2755
        %v2758 = vadd.f32 %v2750, %v2756
        %v2759 = vmul.f32 %v2747, %v235
        %v2760 = vmul.f32 %v2747, %v236
        %v2761 = vmul.f32 %v2753, %v232
        %v2762 = vmul.f32 %v2753, %v233
        %v2763 = vsub.f32 %v2759, %v2761
        %v2764 = vsub.f32 %v2760, %v2762
        %v2765 = vsel %vm2539, %v2757, 1e+30
        %v2766 = vsel %vm2540, %v2758, 1e+30
        %v2767 = vmin.f32 %v2765, %v2766
        %v2768 = vrot.slane %v2767, 4
        %v2769 = vmin.f32 %v2767, %v2768
        %v2770 = vrot.slane %v2769, 2
        %v2771 = vmin.f32 %v2769, %v2770
        %v2772 = vrot.slane %v2771, 1
        %v2773 = vmin.f32 %v2771, %v2772
        %v2774 = vsel %vm2539, %v2763, 1e+30
        %v2775 = vsel %vm2540, %v2764, 1e+30
        %v2776 = vmin.f32 %v2774, %v2775
        %v2777 = vrot.slane %v2776, 4
        %v2778 = vmin.f32 %v2776, %v2777
        %v2779 = vrot.slane %v2778, 2
        %v2780 = vmin.f32 %v2778, %v2779
        %v2781 = vrot.slane %v2780, 1
        %v2782 = vmin.f32 %v2780, %v2781
        %v2783 = vsel %vm2539, %v238, 1e+30
        %v2784 = vsel %vm2540, %v239, 1e+30
        %v2785 = vmin.f32 %v2783, %v2784
        %v2786 = vrot.slane %v2785, 4
        %v2787 = vmin.f32 %v2785, %v2786
        %v2788 = vrot.slane %v2787, 2
        %v2789 = vmin.f32 %v2787, %v2788
        %v2790 = vrot.slane %v2789, 1
        %v2791 = vmin.f32 %v2789, %v2790
        %v2792 = vsel %vm302, %v2773, %v2782
        %v2793 = vsel %vm304, %v2792, %v2791
        %v2794 = vsel %vm2539, %v2757, -1e+30
        %v2795 = vsel %vm2540, %v2758, -1e+30
        %v2796 = vmax.f32 %v2794, %v2795
        %v2797 = vrot.slane %v2796, 4
        %v2798 = vmax.f32 %v2796, %v2797
        %v2799 = vrot.slane %v2798, 2
        %v2800 = vmax.f32 %v2798, %v2799
        %v2801 = vrot.slane %v2800, 1
        %v2802 = vmax.f32 %v2800, %v2801
        %v2803 = vsel %vm2539, %v2763, -1e+30
        %v2804 = vsel %vm2540, %v2764, -1e+30
        %v2805 = vmax.f32 %v2803, %v2804
        %v2806 = vrot.slane %v2805, 4
        %v2807 = vmax.f32 %v2805, %v2806
        %v2808 = vrot.slane %v2807, 2
        %v2809 = vmax.f32 %v2807, %v2808
        %v2810 = vrot.slane %v2809, 1
        %v2811 = vmax.f32 %v2809, %v2810
        %v2812 = vsel %vm2539, %v238, -1e+30
        %v2813 = vsel %vm2540, %v239, -1e+30
        %v2814 = vmax.f32 %v2812, %v2813
        %v2815 = vrot.slane %v2814, 4
        %v2816 = vmax.f32 %v2814, %v2815
        %v2817 = vrot.slane %v2816, 2
        %v2818 = vmax.f32 %v2816, %v2817
        %v2819 = vrot.slane %v2818, 1
        %v2820 = vmax.f32 %v2818, %v2819
        %v2821 = vsel %vm302, %v2802, %v2811
        %v2822 = vsel %vm304, %v2821, %v2820
        %v2823 = vsel %vm306, %v2793, inf
        %2824 = vmin.xlane.f32.xlu0 %v2823
        %v2825 = vpop.xlane.xlu0 %2824
        %v2826 = vsel %vm306, %v2822, -inf
        %2827 = vmax.xlane.f32.xlu0 %v2826
        %v2828 = vpop.xlane.xlu0 %2827
        %v2829 = vsub.f32 %v2828, %v2825
        %v2830 = vadd.f32 %v2825, %v2828
        %v2831 = vmul.f32 %v2830, 0.5
        %v2832 = vmul.f32 %v2740, %v2831
        %v2834 = vrot.slane %v2831, 1
        %v2836 = vmul.f32 %v2744, %v2834
        %v2837 = vsub.f32 %v2832, %v2836
        %v2838 = vmul.f32 %v2744, %v2831
        %v2839 = vmul.f32 %v2740, %v2834
        %v2840 = vadd.f32 %v2838, %v2839
        %2842 = vset.pattern.permute.xlu0 0
        %2843 = vperm.xlu0 %2842, %v2837
        %v2844 = vpop.permute.xlu0 %2843
        %v2846 = vsel %vm576, %v2844, 0.0
        %2848 = vset.pattern.permute.xlu0 0
        %2849 = vperm.xlu0 %2848, %v2840
        %v2850 = vpop.permute.xlu0 %2849
        %v2852 = vsel %vm583, %v2850, %v2846
        %v2854 = vrot.slane %v2852, 6
        %v2856 = vsel %vm590, %v2831, %v2854
        %v2858 = vrot.slane %v2856, 2
        %v2860 = vsel %vm595, %v2829, %v2858
        %v2862 = vrot.slane %v2860, 7
        %v2864 = vsel %vm600, %v2829, %v2862
        %v2866 = vrot.slane %v2864, 7
        %v2868 = vsel %vm605, %v2829, %v2866
        %2870 = vset.pattern.permute.xlu0 0
        %2871 = vperm.xlu0 %2870, %v2664
        %v2872 = vpop.permute.xlu0 %2871
        %v2875 = vrot.slane %v2868, 2
        %v2877 = vsel %vm610, %v2872, %v2875
        %v2879 = vrot.slane %v2877, 6
        %v2881 = vsel %vm620, %v2665, %v2879
        %v2883 = vrot.slane %v2881, 2
        %v2885 = vsel %vm625, %v2574, %v2883
        %vm2886 = vcmp.gt.f32.partialorder %v2574, 0.5
        %v2887 = vsel %vm2886, 1, 0
        %vm2888 = vcmp.eq.s32.totalorder %v2887, 1
        %v2889 = vsel %vm2888, %v2885, 0.0
        %2890 = vst [vmem:[%s217 + $0x6] sm:$0x1] %v2889
        %s2891 = sadd.s32 %s247, 28
        %s2892 = sld [smem:[#allocation5 + %s2891]]
        %s2893 = sadd.s32 %s247, 29
        %s2894 = sld [smem:[#allocation5 + %s2893]]
        %s2895 = sadd.s32 %s247, 30
        %s2896 = sld [smem:[#allocation5 + %s2895]]
        %s2897 = sadd.s32 %s247, 31
        %s2898 = sld [smem:[#allocation5 + %s2897]]
        %v2899 = vstv %s2898
        %vm2900 = vcmp.lt.f32.partialorder %v243, %v2899
        %vm2901 = vcmp.lt.f32.partialorder %v244, %v2899
        %v2902 = vstv %s2894
        %vm2903 = vcmp.ge.f32.partialorder %v243, %v2902
        %vm2904 = vcmp.ge.f32.partialorder %v244, %v2902
        %vm2905 = vmand %vm2900, %vm2903
        %vm2906 = vmand %vm2901, %vm2904
        %v2907 = vstv %s2896
        %vm2908 = vcmp.lt.f32.partialorder %v240, %v2907
        %vm2909 = vcmp.lt.f32.partialorder %v241, %v2907
        %vm2910 = vmand %vm2905, %vm2908
        %vm2911 = vmand %vm2906, %vm2909
        %v2912 = vstv %s2892
        %vm2913 = vcmp.ge.f32.partialorder %v240, %v2912
        %vm2914 = vcmp.ge.f32.partialorder %v241, %v2912
        %vm2915 = vmand %vm2910, %vm2913
        %vm2916 = vmand %vm2911, %vm2914
        %v2917 = vsel %vm2915, 1, 0
        %v2918 = vsel %vm2916, 1, 0
        %v2919 = vcvt.s32.f32 %v2917
        %v2920 = vcvt.s32.f32 %v2918
        %v2921 = vmul.f32 %v2919, %v232
        %v2922 = vmul.f32 %v2920, %v233
        %v2923 = vmul.f32 %v2919, %v235
        %v2924 = vmul.f32 %v2920, %v236
        %v2925 = vadd.f32 %v2919, %v2920
        %v2926 = vrot.slane %v2925, 4
        %v2927 = vadd.f32 %v2925, %v2926
        %v2928 = vrot.slane %v2927, 2
        %v2929 = vadd.f32 %v2927, %v2928
        %v2930 = vrot.slane %v2929, 1
        %v2931 = vadd.f32 %v2929, %v2930
        %v2932 = vadd.f32 %v2921, %v2922
        %v2933 = vrot.slane %v2932, 4
        %v2934 = vadd.f32 %v2932, %v2933
        %v2935 = vrot.slane %v2934, 2
        %v2936 = vadd.f32 %v2934, %v2935
        %v2937 = vrot.slane %v2936, 1
        %v2938 = vadd.f32 %v2936, %v2937
        %v2939 = vadd.f32 %v2923, %v2924
        %v2940 = vrot.slane %v2939, 4
        %v2941 = vadd.f32 %v2939, %v2940
        %v2942 = vrot.slane %v2941, 2
        %v2943 = vadd.f32 %v2941, %v2942
        %v2944 = vrot.slane %v2943, 1
        %v2945 = vadd.f32 %v2943, %v2944
        %v2946 = vsel %vm302, %v2931, %v2938
        %v2947 = vsel %vm304, %v2946, %v2945
        %v2948 = vsel %vm306, %v2947, 0.0
        %2949 = vadd.xlane.f32.xlu0 %v2948
        %v2950 = vpop.xlane.xlu0 %2949
        %v2951 = vmax.f32 %v2950, 1.0
        %v2953 = vrot.slane %v2951, 7
        %v2955 = vrcp.pop %v2953
        %v2956 = vmul.f32 %v2953, %v2955
        %v2957 = vsub.f32 1.0, %v2956
        %v2958 = vmul.f32 %v2955, %v2957
        %v2959 = vadd.f32 %v2955, %v2958
        %vm2960 = vweird.f32 %v2953
        %vm2961 = vweird.f32 %v2955
        %vm2962 = vmor %vm2960, %vm2961
        %v2963 = vsel %vm2962, %v2955, %v2959
        %v2964 = vand.u32 2147483647, %v2953
        %vm2965 = vcmp.eq.f32.partialorder %v2964, 8.507059e+37
        %v2966 = vand.u32 %v2953, 2147483648
        %v2967 = vor.u32 1.1754944e-38, %v2966
        %v2968 = vsel %vm2965, %v2967, %v2963
        %v2969 = vmul.f32 %v2950, %v2968
        %v2970 = vrot.slane %v2951, 6
        %v2972 = vrcp.pop %v2970
        %v2973 = vmul.f32 %v2970, %v2972
        %v2974 = vsub.f32 1.0, %v2973
        %v2975 = vmul.f32 %v2972, %v2974
        %v2976 = vadd.f32 %v2972, %v2975
        %vm2977 = vweird.f32 %v2970
        %vm2978 = vweird.f32 %v2972
        %vm2979 = vmor %vm2977, %vm2978
        %v2980 = vsel %vm2979, %v2972, %v2976
        %v2981 = vand.u32 2147483647, %v2970
        %vm2982 = vcmp.eq.f32.partialorder %v2981, 8.507059e+37
        %v2983 = vand.u32 %v2970, 2147483648
        %v2984 = vor.u32 1.1754944e-38, %v2983
        %v2985 = vsel %vm2982, %v2984, %v2980
        %v2986 = vmul.f32 %v2950, %v2985
        %v2988 = vrot.slane %v2969, 1
        %s2989 = vtos %v2988
        %v2990 = vstv %s2989
        %v2992 = vsub.f32 %v232, %v2990
        %v2993 = vsub.f32 %v233, %v2990
        %v2995 = vrot.slane %v2986, 2
        %s2996 = vtos %v2995
        %v2997 = vstv %s2996
        %v2999 = vsub.f32 %v235, %v2997
        %v3000 = vsub.f32 %v236, %v2997
        %v3001 = vmul.f32 %v2919, %v2992
        %v3002 = vmul.f32 %v2920, %v2993
        %v3003 = vmul.f32 %v2919, %v2999
        %v3004 = vmul.f32 %v2920, %v3000
        %v3005 = vmul.f32 %v3001, %v2992
        %v3006 = vmul.f32 %v3002, %v2993
        %v3007 = vadd.f32 %v3005, %v3006
        %v3008 = vrot.slane %v3007, 4
        %v3009 = vadd.f32 %v3007, %v3008
        %v3010 = vrot.slane %v3009, 2
        %v3011 = vadd.f32 %v3009, %v3010
        %v3012 = vrot.slane %v3011, 1
        %v3013 = vadd.f32 %v3011, %v3012
        %v3014 = vmul.f32 %v3003, %v2999
        %v3015 = vmul.f32 %v3004, %v3000
        %v3016 = vadd.f32 %v3014, %v3015
        %v3017 = vrot.slane %v3016, 4
        %v3018 = vadd.f32 %v3016, %v3017
        %v3019 = vrot.slane %v3018, 2
        %v3020 = vadd.f32 %v3018, %v3019
        %v3021 = vrot.slane %v3020, 1
        %v3022 = vadd.f32 %v3020, %v3021
        %v3023 = vmul.f32 %v3001, %v2999
        %v3024 = vmul.f32 %v3002, %v3000
        %v3025 = vadd.f32 %v3023, %v3024
        %v3026 = vrot.slane %v3025, 4
        %v3027 = vadd.f32 %v3025, %v3026
        %v3028 = vrot.slane %v3027, 2
        %v3029 = vadd.f32 %v3027, %v3028
        %v3030 = vrot.slane %v3029, 1
        %v3031 = vadd.f32 %v3029, %v3030
        %v3032 = vsel %vm302, %v3013, %v3022
        %v3033 = vsel %vm304, %v3032, %v3031
        %v3034 = vsel %vm306, %v3033, 0.0
        %3035 = vadd.xlane.f32.xlu0 %v3034
        %v3036 = vpop.xlane.xlu0 %3035
        %v3038 = vrot.slane %v3036, 1
        %v3040 = vsub.f32 %v3036, %v3038
        %v3041 = vmul.f32 %v3036, 2.0
        %v3042 = vmul.f32 %v3040, %v3040
        %v3043 = vmul.f32 %v3041, %v3041
        %v3045 = vrot.slane %v3043, 2
        %v3047 = vadd.f32 %v3042, %v3045
        %v3048 = vrsqrt.pop %v3047
        %v3049 = vmul.f32 %v3048, %v3047
        %v3050 = vmul.f32 %v3049, %v3048
        %v3051 = vmul.f32 0.5, %v3050
        %v3052 = vsub.f32 1.5, %v3051
        %v3053 = vmul.f32 %v3048, %v3052
        %v3054 = vmul.f32 %v3047, %v3053
        %vm3055 = vcmp.eq.f32.partialorder %v3047, inf
        %v3056 = vsel %vm3055, %v3047, %v3054
        %vm3057 = vcmp.eq.f32.partialorder %v3047, 0.0
        %v3058 = vand.u32 %v3047, 2147483648
        %v3059 = vsel %vm3057, %v3058, %v3056
        %v3060 = vmax.f32 %v3059, 1e-20
        %v3061 = vrcp.pop %v3060
        %v3062 = vmul.f32 %v3060, %v3061
        %v3063 = vsub.f32 1.0, %v3062
        %v3064 = vmul.f32 %v3061, %v3063
        %v3065 = vadd.f32 %v3061, %v3064
        %vm3066 = vweird.f32 %v3060
        %vm3067 = vweird.f32 %v3061
        %vm3068 = vmor %vm3066, %vm3067
        %v3069 = vsel %vm3068, %v3061, %v3065
        %v3070 = vand.u32 2147483647, %v3060
        %vm3071 = vcmp.eq.f32.partialorder %v3070, 8.507059e+37
        %v3072 = vand.u32 %v3060, 2147483648
        %v3073 = vor.u32 1.1754944e-38, %v3072
        %v3074 = vsel %vm3071, %v3073, %v3069
        %v3075 = vmul.f32 %v3040, %v3074
        %v3076 = vadd.f32 %v3075, 1.0
        %v3077 = vmul.f32 %v3076, 0.5
        %v3078 = vmax.f32 %v3077, 0.0
        %v3079 = vrsqrt.pop %v3078
        %v3080 = vmul.f32 %v3079, %v3078
        %v3081 = vmul.f32 %v3080, %v3079
        %v3082 = vmul.f32 0.5, %v3081
        %v3083 = vsub.f32 1.5, %v3082
        %v3084 = vmul.f32 %v3079, %v3083
        %v3085 = vmul.f32 %v3078, %v3084
        %vm3086 = vcmp.eq.f32.partialorder %v3078, inf
        %v3087 = vsel %vm3086, %v3078, %v3085
        %vm3088 = vcmp.eq.f32.partialorder %v3078, 0.0
        %v3089 = vand.u32 %v3078, 2147483648
        %v3090 = vsel %vm3088, %v3089, %v3087
        %v3091 = vsub.f32 1.0, %v3075
        %v3092 = vmul.f32 %v3091, 0.5
        %v3093 = vmax.f32 %v3092, 0.0
        %v3094 = vrsqrt.pop %v3093
        %v3095 = vmul.f32 %v3094, %v3093
        %v3096 = vmul.f32 %v3095, %v3094
        %v3097 = vmul.f32 0.5, %v3096
        %v3098 = vsub.f32 1.5, %v3097
        %v3099 = vmul.f32 %v3094, %v3098
        %v3100 = vmul.f32 %v3093, %v3099
        %vm3101 = vcmp.eq.f32.partialorder %v3093, inf
        %v3102 = vsel %vm3101, %v3093, %v3100
        %vm3103 = vcmp.eq.f32.partialorder %v3093, 0.0
        %v3104 = vand.u32 %v3093, 2147483648
        %v3105 = vsel %vm3103, %v3104, %v3102
        %vm3106 = vcmp.ge.f32.partialorder %v3041, 0.0
        %v3107 = vsub.f32 0.0, %v3105
        %v3109 = vrot.slane %v3105, 6
        %v3112 = vrot.slane %v3107, 6
        %v3114 = vsel %vm3106, %v3109, %v3112
        %vm3115 = vcmp.lt.f32.partialorder %v3059, 1e-12
        %v3116 = vsel %vm3115, 1.0, %v3090
        %v3118 = vrot.slane %v3114, 2
        %v3120 = vsel %vm3115, 0.0, %v3118
        %s3122 = vtos %v3116
        %v3123 = vstv %s3122
        %v3125 = vmul.f32 %v3123, %v232
        %v3126 = vmul.f32 %v3123, %v233
        %s3128 = vtos %v3120
        %v3129 = vstv %s3128
        %v3131 = vmul.f32 %v3129, %v235
        %v3132 = vmul.f32 %v3129, %v236
        %v3133 = vadd.f32 %v3125, %v3131
        %v3134 = vadd.f32 %v3126, %v3132
        %v3135 = vmul.f32 %v3123, %v235
        %v3136 = vmul.f32 %v3123, %v236
        %v3137 = vmul.f32 %v3129, %v232
        %v3138 = vmul.f32 %v3129, %v233
        %v3139 = vsub.f32 %v3135, %v3137
        %v3140 = vsub.f32 %v3136, %v3138
        %v3141 = vsel %vm2915, %v3133, 1e+30
        %v3142 = vsel %vm2916, %v3134, 1e+30
        %v3143 = vmin.f32 %v3141, %v3142
        %v3144 = vrot.slane %v3143, 4
        %v3145 = vmin.f32 %v3143, %v3144
        %v3146 = vrot.slane %v3145, 2
        %v3147 = vmin.f32 %v3145, %v3146
        %v3148 = vrot.slane %v3147, 1
        %v3149 = vmin.f32 %v3147, %v3148
        %v3150 = vsel %vm2915, %v3139, 1e+30
        %v3151 = vsel %vm2916, %v3140, 1e+30
        %v3152 = vmin.f32 %v3150, %v3151
        %v3153 = vrot.slane %v3152, 4
        %v3154 = vmin.f32 %v3152, %v3153
        %v3155 = vrot.slane %v3154, 2
        %v3156 = vmin.f32 %v3154, %v3155
        %v3157 = vrot.slane %v3156, 1
        %v3158 = vmin.f32 %v3156, %v3157
        %v3159 = vsel %vm2915, %v238, 1e+30
        %v3160 = vsel %vm2916, %v239, 1e+30
        %v3161 = vmin.f32 %v3159, %v3160
        %v3162 = vrot.slane %v3161, 4
        %v3163 = vmin.f32 %v3161, %v3162
        %v3164 = vrot.slane %v3163, 2
        %v3165 = vmin.f32 %v3163, %v3164
        %v3166 = vrot.slane %v3165, 1
        %v3167 = vmin.f32 %v3165, %v3166
        %v3168 = vsel %vm302, %v3149, %v3158
        %v3169 = vsel %vm304, %v3168, %v3167
        %v3170 = vsel %vm2915, %v3133, -1e+30
        %v3171 = vsel %vm2916, %v3134, -1e+30
        %v3172 = vmax.f32 %v3170, %v3171
        %v3173 = vrot.slane %v3172, 4
        %v3174 = vmax.f32 %v3172, %v3173
        %v3175 = vrot.slane %v3174, 2
        %v3176 = vmax.f32 %v3174, %v3175
        %v3177 = vrot.slane %v3176, 1
        %v3178 = vmax.f32 %v3176, %v3177
        %v3179 = vsel %vm2915, %v3139, -1e+30
        %v3180 = vsel %vm2916, %v3140, -1e+30
        %v3181 = vmax.f32 %v3179, %v3180
        %v3182 = vrot.slane %v3181, 4
        %v3183 = vmax.f32 %v3181, %v3182
        %v3184 = vrot.slane %v3183, 2
        %v3185 = vmax.f32 %v3183, %v3184
        %v3186 = vrot.slane %v3185, 1
        %v3187 = vmax.f32 %v3185, %v3186
        %v3188 = vsel %vm2915, %v238, -1e+30
        %v3189 = vsel %vm2916, %v239, -1e+30
        %v3190 = vmax.f32 %v3188, %v3189
        %v3191 = vrot.slane %v3190, 4
        %v3192 = vmax.f32 %v3190, %v3191
        %v3193 = vrot.slane %v3192, 2
        %v3194 = vmax.f32 %v3192, %v3193
        %v3195 = vrot.slane %v3194, 1
        %v3196 = vmax.f32 %v3194, %v3195
        %v3197 = vsel %vm302, %v3178, %v3187
        %v3198 = vsel %vm304, %v3197, %v3196
        %v3199 = vsel %vm306, %v3169, inf
        %3200 = vmin.xlane.f32.xlu0 %v3199
        %v3201 = vpop.xlane.xlu0 %3200
        %v3202 = vsel %vm306, %v3198, -inf
        %3203 = vmax.xlane.f32.xlu0 %v3202
        %v3204 = vpop.xlane.xlu0 %3203
        %v3205 = vsub.f32 %v3204, %v3201
        %v3206 = vadd.f32 %v3201, %v3204
        %v3207 = vmul.f32 %v3206, 0.5
        %v3208 = vmul.f32 %v3116, %v3207
        %v3210 = vrot.slane %v3207, 1
        %v3212 = vmul.f32 %v3120, %v3210
        %v3213 = vsub.f32 %v3208, %v3212
        %v3214 = vmul.f32 %v3120, %v3207
        %v3215 = vmul.f32 %v3116, %v3210
        %v3216 = vadd.f32 %v3214, %v3215
        %3218 = vset.pattern.permute.xlu0 0
        %3219 = vperm.xlu0 %3218, %v3213
        %v3220 = vpop.permute.xlu0 %3219
        %v3222 = vsel %vm576, %v3220, 0.0
        %3224 = vset.pattern.permute.xlu0 0
        %3225 = vperm.xlu0 %3224, %v3216
        %v3226 = vpop.permute.xlu0 %3225
        %v3228 = vsel %vm583, %v3226, %v3222
        %v3230 = vrot.slane %v3228, 6
        %v3232 = vsel %vm590, %v3207, %v3230
        %v3234 = vrot.slane %v3232, 2
        %v3236 = vsel %vm595, %v3205, %v3234
        %v3238 = vrot.slane %v3236, 7
        %v3240 = vsel %vm600, %v3205, %v3238
        %v3242 = vrot.slane %v3240, 7
        %v3244 = vsel %vm605, %v3205, %v3242
        %3246 = vset.pattern.permute.xlu0 0
        %3247 = vperm.xlu0 %3246, %v3040
        %v3248 = vpop.permute.xlu0 %3247
        %v3251 = vrot.slane %v3244, 2
        %v3253 = vsel %vm610, %v3248, %v3251
        %v3255 = vrot.slane %v3253, 6
        %v3257 = vsel %vm620, %v3041, %v3255
        %v3259 = vrot.slane %v3257, 2
        %v3261 = vsel %vm625, %v2950, %v3259
        %vm3262 = vcmp.gt.f32.partialorder %v2950, 0.5
        %v3263 = vsel %vm3262, 1, 0
        %vm3264 = vcmp.eq.s32.totalorder %v3263, 1
        %v3265 = vsel %vm3264, %v3261, 0.0
        %3266 = vst [vmem:[%s217 + $0x7] sm:$0x1] %v3265
        %s3267 = sand.u32 %s118, 1
        %s3268 = scalar_lea.sflag [#allocation6], %s3267
        %s3269 = sand.u32 %s118, 1
        %s3270 = smul.addr %s3269, 8
        %s3271 = scalar_lea.vmem [#allocation8], %s3270
        // Predicated region
        $region37: #{_frustum_device.1} parent=31 // pred_check
          %p3272 = pneg %p128
        $region38: #{_frustum_device.1} parent=31 // pred_check_branch
          %3274 = sbr.rel (%p3272) target = $region40
        $region39: #{_frustum_device.1} parent=31 // pred_region
          %3276 = vsyncadd %s3268, 0
          %s3277 = smul.addr %s33, 8
          %s3278 = scalar_lea.hbm %s5, %s3277
          %s3280 = sshll.u32 %s3271, 4
          %s3281 = int_to_ptr.vmem [resolvable:$true] %s3280
          %s3282 = sshll.u32 %s3278, 4
          %s3283 = int_to_ptr.hbm [resolvable:$true] %s3282
          %3285 = dma.vmem_to_hbm [thread:$0]  %s3281, 128, %s3283, %s3268
        $region40: #{_frustum_device.1} parent=31 // pred_fallthru
          _
      $region32: #{_frustum_device.1} parent=5 // pred_fallthru
        _
      %p3286 = scmp.le.s32.totalorder 2, %s28
      // Predicated region
      $region41: #{_frustum_device.1} parent=5 // pred_check
        %p3287 = pneg %p3286
      $region42: #{_frustum_device.1} parent=5 // pred_check_branch
        %3289 = sbr.rel (%p3287) target = $region44
      $region43: #{_frustum_device.1} parent=5 // pred_region
        %s3290 = ssub.s32 %s28, 2
        // Predicated region
        $region45: #{_frustum_device.1} parent=43 // pred_check
          %p3291 = pneg %p134
        $region46: #{_frustum_device.1} parent=43 // pred_check_branch
          %3293 = sbr.rel (%p3291) target = $region48
        $region47: #{_frustum_device.1} parent=43 // pred_region
          %s3294 = sand.u32 %s119, 1
          %s3295 = scalar_lea.sflag [#allocation6], %s3294
          %s3296 = sand.u32 %s119, 1
          %s3297 = smul.addr %s3296, 8
          %s3298 = scalar_lea.vmem [#allocation8], %s3297
          %3300 = dma.done %s3295, 128
        $region48: #{_frustum_device.1} parent=43 // pred_fallthru
          _
      $region44: #{_frustum_device.1} parent=5 // pred_fallthru
        _
    $region6: #{_frustum_device.1} parent=1 // loop_footer
      %s32 = sadd.s32 1, %s28
    $region7: #{_frustum_device.1} parent=1 // loop_footer_branch
      %27 = sbr.rel target = $region3
    $region8: #{_frustum_device.1} parent=1 // loop_exit
      _
    %3301 = vsyncpa [#allocation6], 1
    %s3302 = scalar_lea.sflag [#allocation6], 1
    %3303 = vsyncpa %s3302, 1
    %3304 = vsyncpa [#allocation7], 1
    %s3305 = scalar_lea.sflag [#allocation7], 1
    %3306 = vsyncpa %s3305, 1

</llo_original>
